<compile_context>
chip_gen: v5e
topology: v5e:2x2
jax: 0.10.0
libtpu: 0.0.40
codegen_flags: <defaults>
</compile_context>

<pallas_src>
import math
import numpy as np
import jax
import jax.numpy as jnp
from jax.experimental import pallas as pl
from jax.experimental.pallas import tpu as pltpu

_K_BP = 51                 # band-pass FIR length
_K_ST = 25                 # spatiotemporal conv length
_PAD_BP = _K_BP // 2       # 25
_PAD_ST = _K_ST // 2       # 12
_HALO = _PAD_BP + _PAD_ST  # 37


def _bandpass_filter(low, high, kernel_size=_K_BP, sample_rate=250):
    nyq = sample_rate / 2.0
    ln, hn = low / nyq, high / nyq
    n = np.arange(kernel_size) - (kernel_size - 1) / 2.0
    h = np.empty(kernel_size, np.float64)
    nz = n != 0
    h[nz] = (np.sin(np.pi * hn * n[nz]) - np.sin(np.pi * ln * n[nz])) / (np.pi * n[nz])
    h[kernel_size // 2] = hn - ln
    window = 0.54 - 0.46 * np.cos(2 * np.pi * np.arange(kernel_size) / (kernel_size - 1))
    h = h * window
    h = h / h.sum()
    return h.astype(np.float32)


def init_params(key, dim, n_channels):
    freq_bands = {'delta': (0.5, 4), 'theta': (4, 8), 'alpha': (8, 13),
                  'beta': (13, 30), 'gamma': (30, 100)}
    filters = jnp.asarray(np.stack([_bandpass_filter(lo, hi)
                                    for lo, hi in freq_bands.values()]))  # (5, 51)
    c_sp, c_fu = 16, dim // 2
    c_comb = c_sp + c_fu
    ks = jax.random.split(key, 7)

    def conv_init(k, shape, fan_in):          # torch Conv2d default U(-1/sqrt(fan_in), ..)
        bound = 1.0 / math.sqrt(fan_in)
        return jax.random.uniform(k, shape, jnp.float32, -bound, bound)

    ws = conv_init(ks[0], (c_sp, n_channels), n_channels)               # Conv2d(1,16,(H,1))
    wf = conv_init(ks[1], (c_fu, len(freq_bands)), len(freq_bands))     # Conv2d(5,dim//2,1)
    wst = conv_init(ks[2], (_K_ST, dim, c_comb), c_comb * _K_ST)        # Conv2d(c_comb,dim,(1,25))
    gamma = jax.random.uniform(ks[3], (dim,), jnp.float32, 0.5, 1.5)
    beta = 0.1 * jax.random.normal(ks[4], (dim,), jnp.float32)
    r_mean = 0.1 * jax.random.normal(ks[5], (dim,), jnp.float32)
    r_var = jax.random.uniform(ks[6], (dim,), jnp.float32, 0.5, 1.5)
    eps = 1e-5
    scale = gamma / jnp.sqrt(r_var + eps)
    bias = beta - r_mean * scale
    # TODO(synk): training-mode BatchNorm batch statistics are not reproduced
    #             (eval-mode running stats folded into scale/bias).
    return {"spatial": ws, "filters": filters, "fusion": wf,
            "spatiotemporal": wst,
            "bn_scale": scale.reshape(dim, 1), "bn_bias": bias.reshape(dim, 1)}


def _choose_time_tile(W):
    if W >= 512:
        return 512                              # per-tile w_out = 128 -> lane-dense stores
    return max(128, ((W + 127) // 128) * 128)   # single tile, lane-multiple


def frequency_aware_tokenizer(x, params):
    """x: (B, 1, n_channels, W) f32 (NCHW)  ->  (B, W//4, dim) f32."""
    B, C_in, H, W = x.shape
    assert C_in == 1 and W % 4 == 0
    ws = params["spatial"].astype(jnp.float32)            # (16, H)
    filt = params["filters"].astype(jnp.float32)          # (5, 51)
    wf = params["fusion"].astype(jnp.float32)             # (c_fu, 5)
    wst = params["spatiotemporal"].astype(jnp.float32)    # (25, dim, c_comb)
    scale = params["bn_scale"].astype(jnp.float32)        # (dim, 1)
    bias = params["bn_bias"].astype(jnp.float32)          # (dim, 1)

    c_sp, c_fu = ws.shape[0], wf.shape[0]
    k_st, dim, c_comb = wst.shape
    assert c_comb == c_sp + c_fu and k_st == _K_ST

    # Fold the 1x1 fusion into the FIR taps: eff[f, t] = sum_band wf[f,b] * filt[b,t]
    eff = wf @ filt                                        # (c_fu, 51)
    # Flatten temporal-conv weights for im2col: wstf[d, t*c_comb + c] = wst[t, d, c]
    wstf = jnp.transpose(wst, (1, 0, 2)).reshape(dim, k_st * c_comb)

    Wt = _choose_time_tile(W)
    n_t = -(-W // Wt)
    Wpad = n_t * Wt
    Wh = Wt + 2 * _HALO          # x window width per tile
    We = Wt + 2 * _PAD_ST        # extended (conv-input) width per tile
    w_out_t = Wt // 4

    # Per-(batch, tile) input windows with +/-37 halo; zeros outside [0, W).
    x2 = x[:, 0, :, :].astype(jnp.float32)                              # (B, H, W)
    xp = jnp.pad(x2, ((0, 0), (0, 0), (_HALO, (Wpad - W) + _HALO)))     # (B, H, Wpad+74)
    xwin = jnp.stack([xp[:, :, j * Wt: j * Wt + Wh] for j in range(n_t)],
                     axis=1)                                            # (B, n_t, H, Wh)

    # Reusable block-diagonal 0.25 pooling tile (adaptive_avg_pool2d((1, W//4))).
    pool = np.zeros((Wt, w_out_t), np.float32)
    pool[np.arange(Wt), np.arange(Wt) // 4] = 0.25
    pool = jnp.asarray(pool)

    inv_h = 1.0 / H

    def kernel(xwin_ref, ws_ref, eff_ref, wstf_ref, scale_ref, bias_ref, pool_ref,
               out_ref, sstack_ref, cstack_ref):
        j = pl.program_id(1)
        xw = xwin_ref[...]                                 # (H, Wh), loaded once

        # spatial_conv Conv2d(1,16,(H,1)) over the +/-12 extended tile (MXU).
        spatial = jnp.dot(ws_ref[...], xw[:, _PAD_BP:_PAD_BP + We],
                          preferred_element_type=jnp.float32)          # (c_sp, We)

        # H-mean hoisted above the FIR (exact: taps are per-band scalars).
        xbar = jnp.sum(xw, axis=0, keepdims=True) * inv_h              # (1, Wh)

        # Band-pass FIR + freq_fusion as one MXU matmul against a 51-row
        # shifted stack of xbar (value slices, written once to VMEM).
        for t in range(_K_BP):
            sstack_ref[t:t + 1, :] = xbar[:, t:t + We]
        freq = jnp.dot(eff_ref[...], sstack_ref[...],
                       preferred_element_type=jnp.float32)             # (c_fu, We)

        # The torch module zero-pads the *combined* features before the (1,25)
        # conv, so freq features at columns outside [0, W) must be exactly 0.
        gcol = jax.lax.broadcasted_iota(jnp.int32, (1, We), 1) + (j * Wt - _PAD_ST)
        freq = jnp.where((gcol >= 0) & (gcol < W), freq, 0.0)

        # im2col for the (1,25) spatiotemporal conv -> single K = 25*c_comb dot.
        for t in range(_K_ST):
            base = t * c_comb
            cstack_ref[base: base + c_sp, :] = spatial[:, t:t + Wt]
            cstack_ref[base + c_sp: base + c_comb, :] = freq[:, t:t + Wt]
        h = jnp.dot(wstf_ref[...], cstack_ref[...],
                    preferred_element_type=jnp.float32)                # (dim, Wt)

        # BatchNorm (eval mode, folded scale/bias) + erf-GELU
        # (Abramowitz-Stegun 7.1.26 erf, max abs err ~1.5e-7 vs exact GELU).
        h = h * scale_ref[...] + bias_ref[...]
        z = h * 0.7071067811865476
        az = jnp.abs(z)
        tt = 1.0 / (1.0 + 0.3275911 * az)
        poly = tt * (0.254829592 + tt * (-0.284496736 + tt * (1.421413741
                     + tt * (-1.453152027 + tt * 1.061405429))))
        erf_abs = 1.0 - poly * jnp.exp(-az * az)
        erf_z = jnp.where(z >= 0.0, erf_abs, -erf_abs)
        h = 0.5 * h * (1.0 + erf_z)

        # adaptive_avg_pool2d((1, W//4)) on this tile: block-diag 0.25 matmul.
        out_ref[...] = jnp.dot(h, pool_ref[...], preferred_element_type=jnp.float32)

    grid_spec = pltpu.PrefetchScalarGridSpec(
        num_scalar_prefetch=0,
        grid=(B, n_t),
        in_specs=[
            pl.BlockSpec((None, None, H, Wh), lambda b, j: (b, j, 0, 0)),     # x windows
            pl.BlockSpec((c_sp, H), lambda b, j: (0, 0)),                     # spatial W
            pl.BlockSpec((c_fu, _K_BP), lambda b, j: (0, 0)),                 # eff = wf @ filt
            pl.BlockSpec((dim, k_st * c_comb), lambda b, j: (0, 0)),          # wst flattened
            pl.BlockSpec((dim, 1), lambda b, j: (0, 0)),                      # bn scale
            pl.BlockSpec((dim, 1), lambda b, j: (0, 0)),                      # bn bias
            pl.BlockSpec((Wt, w_out_t), lambda b, j: (0, 0)),                 # pool tile
        ],
        out_specs=pl.BlockSpec((None, dim, w_out_t), lambda b, j: (b, 0, j)),
        scratch_shapes=[
            pltpu.VMEM((_K_BP, We), jnp.float32),             # shifted-xbar stack
            pltpu.VMEM((k_st * c_comb, Wt), jnp.float32),     # im2col stack
        ],
    )
    out = pl.pallas_call(
        kernel,
        out_shape=jax.ShapeDtypeStruct((B, dim, Wpad // 4), jnp.float32),
        grid_spec=grid_spec,
        compiler_params=pltpu.CompilerParams(
            dimension_semantics=("parallel", "parallel"),
            vmem_limit_bytes=32 * 1024 * 1024),
    )(xwin, ws, eff, wstf, scale, bias, pool)

    # drop padded pooling bins, then flatten(2,3).transpose(1,2) -> (B, W//4, dim)
    out = out[:, :, :W // 4]
    return jnp.transpose(out, (0, 2, 1))


if __name__ == "__main__":
    B, n_channels, W, dim = 2, 8, 64, 32        # small demo; module defaults dim=64, n_channels=22
    key = jax.random.PRNGKey(0)
    k_param, k_x = jax.random.split(key)
    params = init_params(k_param, dim, n_channels)
    x = jax.random.normal(k_x, (B, 1, n_channels, W), jnp.float32)

    out = frequency_aware_tokenizer(x, params)
    out = jax.block_until_ready(out)
    assert out.shape == (B, W // 4, dim), out.shape
    assert bool(jnp.all(jnp.isfinite(out)))
    print("KERNEL_OK")
</pallas_src>

<mosaic_0001>
module attributes {stable_mosaic.version = 11 : i64} {
  func.func @kernel(%arg0: i32, %arg1: i32, %arg2: memref<1x1x8x202xf32, #tpu.memory_space<vmem>>, %arg3: memref<16x8xf32, #tpu.memory_space<vmem>>, %arg4: memref<16x51xf32, #tpu.memory_space<vmem>>, %arg5: memref<32x800xf32, #tpu.memory_space<vmem>>, %arg6: memref<32x1xf32, #tpu.memory_space<vmem>>, %arg7: memref<32x1xf32, #tpu.memory_space<vmem>>, %arg8: memref<128x32xf32, #tpu.memory_space<vmem>>, %arg9: memref<1x32x32xf32, #tpu.memory_space<vmem>>, %arg10: memref<51x152xf32, #tpu.memory_space<vmem>>, %arg11: memref<800x128xf32, #tpu.memory_space<vmem>>) attributes {dimension_semantics = [#tpu.dimension_semantics<parallel>, #tpu.dimension_semantics<parallel>], iteration_bounds = array<i64: 2, 1>, scalar_prefetch = 0 : i64, scratch_operands = 2 : i64, tpu.core_type = #tpu.core_type<tc>, window_params = [{transform_indices = @transform_0, window_bounds = array<i64: 1, 1, 8, 202>}, {pipeline_mode = #tpu.pipeline_mode<synchronous>, transform_indices = @transform_1, window_bounds = array<i64: 16, 8>}, {pipeline_mode = #tpu.pipeline_mode<synchronous>, transform_indices = @transform_2, window_bounds = array<i64: 16, 51>}, {pipeline_mode = #tpu.pipeline_mode<synchronous>, transform_indices = @transform_3, window_bounds = array<i64: 32, 800>}, {pipeline_mode = #tpu.pipeline_mode<synchronous>, transform_indices = @transform_4, window_bounds = array<i64: 32, 1>}, {pipeline_mode = #tpu.pipeline_mode<synchronous>, transform_indices = @transform_5, window_bounds = array<i64: 32, 1>}, {pipeline_mode = #tpu.pipeline_mode<synchronous>, transform_indices = @transform_6, window_bounds = array<i64: 128, 32>}, {transform_indices = @transform_7, window_bounds = array<i64: 1, 32, 32>}]} {
    %c0 = arith.constant 0 : index
    %c0_0 = arith.constant 0 : index
    %c0_1 = arith.constant 0 : index
    %c0_2 = arith.constant 0 : index
    %0 = vector.load %arg2[%c0, %c0_0, %c0_1, %c0_2] : memref<1x1x8x202xf32, #tpu.memory_space<vmem>>, vector<1x1x8x202xf32>
    %1 = vector.shape_cast %0 : vector<1x1x8x202xf32> to vector<8x202xf32>
    %c0_3 = arith.constant 0 : index
    %c0_4 = arith.constant 0 : index
    %2 = vector.load %arg3[%c0_3, %c0_4] : memref<16x8xf32, #tpu.memory_space<vmem>>, vector<16x8xf32>
    %3 = vector.extract_strided_slice %1 {offsets = [0, 25], sizes = [8, 152], strides = [1, 1]} : vector<8x202xf32> to vector<8x152xf32>
    %cst = arith.constant dense<0.000000e+00> : vector<16x152xf32>
    %4 = tpu.matmul %2, %3, %cst {dimension_numbers = #tpu.dot_dimension_numbers<[1], [0], [0], [1], [0, 0, 1, 1], [], []>} : vector<16x8xf32>, vector<8x152xf32>, vector<16x152xf32> -> vector<16x152xf32>
    %cst_5 = arith.constant dense<0.000000e+00> : vector<202xf32>
    %5 = vector.multi_reduction <add>, %1, %cst_5 [0] : vector<8x202xf32> to vector<202xf32>
    %6 = vector.shape_cast %5 : vector<202xf32> to vector<1x202xf32>
    %cst_6 = arith.constant 1.250000e-01 : f32
    %7 = vector.broadcast %cst_6 : f32 to vector<1x202xf32>
    %8 = arith.mulf %6, %7 : vector<1x202xf32>
    %9 = vector.extract_strided_slice %8 {offsets = [0, 0], sizes = [1, 152], strides = [1, 1]} : vector<1x202xf32> to vector<1x152xf32>
    %c0_7 = arith.constant 0 : index
    %c0_8 = arith.constant 0 : index
    %10 = vector.load %arg10[%c0_7, %c0_8] : memref<51x152xf32, #tpu.memory_space<vmem>>, vector<1x152xf32>
    tpu.vector_store %arg10[%c0_7, %c0_8], %9 {strides = array<i32>} : memref<51x152xf32, #tpu.memory_space<vmem>>, vector<1x152xf32>,
    %11 = vector.extract_strided_slice %8 {offsets = [0, 1], sizes = [1, 152], strides = [1, 1]} : vector<1x202xf32> to vector<1x152xf32>
    %c1 = arith.constant 1 : index
    %c0_9 = arith.constant 0 : index
    %12 = vector.load %arg10[%c1, %c0_9] : memref<51x152xf32, #tpu.memory_space<vmem>>, vector<1x152xf32>
    tpu.vector_store %arg10[%c1, %c0_9], %11 {strides = array<i32>} : memref<51x152xf32, #tpu.memory_space<vmem>>, vector<1x152xf32>,
    %13 = vector.extract_strided_slice %8 {offsets = [0, 2], sizes = [1, 152], strides = [1, 1]} : vector<1x202xf32> to vector<1x152xf32>
    %c2 = arith.constant 2 : index
    %c0_10 = arith.constant 0 : index
    %14 = vector.load %arg10[%c2, %c0_10] : memref<51x152xf32, #tpu.memory_space<vmem>>, vector<1x152xf32>
    tpu.vector_store %arg10[%c2, %c0_10], %13 {strides = array<i32>} : memref<51x152xf32, #tpu.memory_space<vmem>>, vector<1x152xf32>,
    %15 = vector.extract_strided_slice %8 {offsets = [0, 3], sizes = [1, 152], strides = [1, 1]} : vector<1x202xf32> to vector<1x152xf32>
    %c3 = arith.constant 3 : index
    %c0_11 = arith.constant 0 : index
    %16 = vector.load %arg10[%c3, %c0_11] : memref<51x152xf32, #tpu.memory_space<vmem>>, vector<1x152xf32>
    tpu.vector_store %arg10[%c3, %c0_11], %15 {strides = array<i32>} : memref<51x152xf32, #tpu.memory_space<vmem>>, vector<1x152xf32>,
    %17 = vector.extract_strided_slice %8 {offsets = [0, 4], sizes = [1, 152], strides = [1, 1]} : vector<1x202xf32> to vector<1x152xf32>
    %c4 = arith.constant 4 : index
    %c0_12 = arith.constant 0 : index
    %18 = vector.load %arg10[%c4, %c0_12] : memref<51x152xf32, #tpu.memory_space<vmem>>, vector<1x152xf32>
    tpu.vector_store %arg10[%c4, %c0_12], %17 {strides = array<i32>} : memref<51x152xf32, #tpu.memory_space<vmem>>, vector<1x152xf32>,
    %19 = vector.extract_strided_slice %8 {offsets = [0, 5], sizes = [1, 152], strides = [1, 1]} : vector<1x202xf32> to vector<1x152xf32>
    %c5 = arith.constant 5 : index
    %c0_13 = arith.constant 0 : index
    %20 = vector.load %arg10[%c5, %c0_13] : memref<51x152xf32, #tpu.memory_space<vmem>>, vector<1x152xf32>
    tpu.vector_store %arg10[%c5, %c0_13], %19 {strides = array<i32>} : memref<51x152xf32, #tpu.memory_space<vmem>>, vector<1x152xf32>,
    %21 = vector.extract_strided_slice %8 {offsets = [0, 6], sizes = [1, 152], strides = [1, 1]} : vector<1x202xf32> to vector<1x152xf32>
    %c6 = arith.constant 6 : index
    %c0_14 = arith.constant 0 : index
    %22 = vector.load %arg10[%c6, %c0_14] : memref<51x152xf32, #tpu.memory_space<vmem>>, vector<1x152xf32>
    tpu.vector_store %arg10[%c6, %c0_14], %21 {strides = array<i32>} : memref<51x152xf32, #tpu.memory_space<vmem>>, vector<1x152xf32>,
    %23 = vector.extract_strided_slice %8 {offsets = [0, 7], sizes = [1, 152], strides = [1, 1]} : vector<1x202xf32> to vector<1x152xf32>
    %c7 = arith.constant 7 : index
    %c0_15 = arith.constant 0 : index
    %24 = vector.load %arg10[%c7, %c0_15] : memref<51x152xf32, #tpu.memory_space<vmem>>, vector<1x152xf32>
    tpu.vector_store %arg10[%c7, %c0_15], %23 {strides = array<i32>} : memref<51x152xf32, #tpu.memory_space<vmem>>, vector<1x152xf32>,
    %25 = vector.extract_strided_slice %8 {offsets = [0, 8], sizes = [1, 152], strides = [1, 1]} : vector<1x202xf32> to vector<1x152xf32>
    %c8 = arith.constant 8 : index
    %c0_16 = arith.constant 0 : index
    %26 = vector.load %arg10[%c8, %c0_16] : memref<51x152xf32, #tpu.memory_space<vmem>>, vector<1x152xf32>
    tpu.vector_store %arg10[%c8, %c0_16], %25 {strides = array<i32>} : memref<51x152xf32, #tpu.memory_space<vmem>>, vector<1x152xf32>,
    %27 = vector.extract_strided_slice %8 {offsets = [0, 9], sizes = [1, 152], strides = [1, 1]} : vector<1x202xf32> to vector<1x152xf32>
    %c9 = arith.constant 9 : index
    %c0_17 = arith.constant 0 : index
    %28 = vector.load %arg10[%c9, %c0_17] : memref<51x152xf32, #tpu.memory_space<vmem>>, vector<1x152xf32>
    tpu.vector_store %arg10[%c9, %c0_17], %27 {strides = array<i32>} : memref<51x152xf32, #tpu.memory_space<vmem>>, vector<1x152xf32>,
    %29 = vector.extract_strided_slice %8 {offsets = [0, 10], sizes = [1, 152], strides = [1, 1]} : vector<1x202xf32> to vector<1x152xf32>
    %c10 = arith.constant 10 : index
    %c0_18 = arith.constant 0 : index
    %30 = vector.load %arg10[%c10, %c0_18] : memref<51x152xf32, #tpu.memory_space<vmem>>, vector<1x152xf32>
    tpu.vector_store %arg10[%c10, %c0_18], %29 {strides = array<i32>} : memref<51x152xf32, #tpu.memory_space<vmem>>, vector<1x152xf32>,
    %31 = vector.extract_strided_slice %8 {offsets = [0, 11], sizes = [1, 152], strides = [1, 1]} : vector<1x202xf32> to vector<1x152xf32>
    %c11 = arith.constant 11 : index
    %c0_19 = arith.constant 0 : index
    %32 = vector.load %arg10[%c11, %c0_19] : memref<51x152xf32, #tpu.memory_space<vmem>>, vector<1x152xf32>
    tpu.vector_store %arg10[%c11, %c0_19], %31 {strides = array<i32>} : memref<51x152xf32, #tpu.memory_space<vmem>>, vector<1x152xf32>,
    %33 = vector.extract_strided_slice %8 {offsets = [0, 12], sizes = [1, 152], strides = [1, 1]} : vector<1x202xf32> to vector<1x152xf32>
    %c12 = arith.constant 12 : index
    %c0_20 = arith.constant 0 : index
    %34 = vector.load %arg10[%c12, %c0_20] : memref<51x152xf32, #tpu.memory_space<vmem>>, vector<1x152xf32>
    tpu.vector_store %arg10[%c12, %c0_20], %33 {strides = array<i32>} : memref<51x152xf32, #tpu.memory_space<vmem>>, vector<1x152xf32>,
    %35 = vector.extract_strided_slice %8 {offsets = [0, 13], sizes = [1, 152], strides = [1, 1]} : vector<1x202xf32> to vector<1x152xf32>
    %c13 = arith.constant 13 : index
    %c0_21 = arith.constant 0 : index
    %36 = vector.load %arg10[%c13, %c0_21] : memref<51x152xf32, #tpu.memory_space<vmem>>, vector<1x152xf32>
    tpu.vector_store %arg10[%c13, %c0_21], %35 {strides = array<i32>} : memref<51x152xf32, #tpu.memory_space<vmem>>, vector<1x152xf32>,
    %37 = vector.extract_strided_slice %8 {offsets = [0, 14], sizes = [1, 152], strides = [1, 1]} : vector<1x202xf32> to vector<1x152xf32>
    %c14 = arith.constant 14 : index
    %c0_22 = arith.constant 0 : index
    %38 = vector.load %arg10[%c14, %c0_22] : memref<51x152xf32, #tpu.memory_space<vmem>>, vector<1x152xf32>
    tpu.vector_store %arg10[%c14, %c0_22], %37 {strides = array<i32>} : memref<51x152xf32, #tpu.memory_space<vmem>>, vector<1x152xf32>,
    %39 = vector.extract_strided_slice %8 {offsets = [0, 15], sizes = [1, 152], strides = [1, 1]} : vector<1x202xf32> to vector<1x152xf32>
    %c15 = arith.constant 15 : index
    %c0_23 = arith.constant 0 : index
    %40 = vector.load %arg10[%c15, %c0_23] : memref<51x152xf32, #tpu.memory_space<vmem>>, vector<1x152xf32>
    tpu.vector_store %arg10[%c15, %c0_23], %39 {strides = array<i32>} : memref<51x152xf32, #tpu.memory_space<vmem>>, vector<1x152xf32>,
    %41 = vector.extract_strided_slice %8 {offsets = [0, 16], sizes = [1, 152], strides = [1, 1]} : vector<1x202xf32> to vector<1x152xf32>
    %c16 = arith.constant 16 : index
    %c0_24 = arith.constant 0 : index
    %42 = vector.load %arg10[%c16, %c0_24] : memref<51x152xf32, #tpu.memory_space<vmem>>, vector<1x152xf32>
    tpu.vector_store %arg10[%c16, %c0_24], %41 {strides = array<i32>} : memref<51x152xf32, #tpu.memory_space<vmem>>, vector<1x152xf32>,
    %43 = vector.extract_strided_slice %8 {offsets = [0, 17], sizes = [1, 152], strides = [1, 1]} : vector<1x202xf32> to vector<1x152xf32>
    %c17 = arith.constant 17 : index
    %c0_25 = arith.constant 0 : index
    %44 = vector.load %arg10[%c17, %c0_25] : memref<51x152xf32, #tpu.memory_space<vmem>>, vector<1x152xf32>
    tpu.vector_store %arg10[%c17, %c0_25], %43 {strides = array<i32>} : memref<51x152xf32, #tpu.memory_space<vmem>>, vector<1x152xf32>,
    %45 = vector.extract_strided_slice %8 {offsets = [0, 18], sizes = [1, 152], strides = [1, 1]} : vector<1x202xf32> to vector<1x152xf32>
    %c18 = arith.constant 18 : index
    %c0_26 = arith.constant 0 : index
    %46 = vector.load %arg10[%c18, %c0_26] : memref<51x152xf32, #tpu.memory_space<vmem>>, vector<1x152xf32>
    tpu.vector_store %arg10[%c18, %c0_26], %45 {strides = array<i32>} : memref<51x152xf32, #tpu.memory_space<vmem>>, vector<1x152xf32>,
    %47 = vector.extract_strided_slice %8 {offsets = [0, 19], sizes = [1, 152], strides = [1, 1]} : vector<1x202xf32> to vector<1x152xf32>
    %c19 = arith.constant 19 : index
    %c0_27 = arith.constant 0 : index
    %48 = vector.load %arg10[%c19, %c0_27] : memref<51x152xf32, #tpu.memory_space<vmem>>, vector<1x152xf32>
    tpu.vector_store %arg10[%c19, %c0_27], %47 {strides = array<i32>} : memref<51x152xf32, #tpu.memory_space<vmem>>, vector<1x152xf32>,
    %49 = vector.extract_strided_slice %8 {offsets = [0, 20], sizes = [1, 152], strides = [1, 1]} : vector<1x202xf32> to vector<1x152xf32>
    %c20 = arith.constant 20 : index
    %c0_28 = arith.constant 0 : index
    %50 = vector.load %arg10[%c20, %c0_28] : memref<51x152xf32, #tpu.memory_space<vmem>>, vector<1x152xf32>
    tpu.vector_store %arg10[%c20, %c0_28], %49 {strides = array<i32>} : memref<51x152xf32, #tpu.memory_space<vmem>>, vector<1x152xf32>,
    %51 = vector.extract_strided_slice %8 {offsets = [0, 21], sizes = [1, 152], strides = [1, 1]} : vector<1x202xf32> to vector<1x152xf32>
    %c21 = arith.constant 21 : index
    %c0_29 = arith.constant 0 : index
    %52 = vector.load %arg10[%c21, %c0_29] : memref<51x152xf32, #tpu.memory_space<vmem>>, vector<1x152xf32>
    tpu.vector_store %arg10[%c21, %c0_29], %51 {strides = array<i32>} : memref<51x152xf32, #tpu.memory_space<vmem>>, vector<1x152xf32>,
    %53 = vector.extract_strided_slice %8 {offsets = [0, 22], sizes = [1, 152], strides = [1, 1]} : vector<1x202xf32> to vector<1x152xf32>
    %c22 = arith.constant 22 : index
    %c0_30 = arith.constant 0 : index
    %54 = vector.load %arg10[%c22, %c0_30] : memref<51x152xf32, #tpu.memory_space<vmem>>, vector<1x152xf32>
    tpu.vector_store %arg10[%c22, %c0_30], %53 {strides = array<i32>} : memref<51x152xf32, #tpu.memory_space<vmem>>, vector<1x152xf32>,
    %55 = vector.extract_strided_slice %8 {offsets = [0, 23], sizes = [1, 152], strides = [1, 1]} : vector<1x202xf32> to vector<1x152xf32>
    %c23 = arith.constant 23 : index
    %c0_31 = arith.constant 0 : index
    %56 = vector.load %arg10[%c23, %c0_31] : memref<51x152xf32, #tpu.memory_space<vmem>>, vector<1x152xf32>
    tpu.vector_store %arg10[%c23, %c0_31], %55 {strides = array<i32>} : memref<51x152xf32, #tpu.memory_space<vmem>>, vector<1x152xf32>,
    %57 = vector.extract_strided_slice %8 {offsets = [0, 24], sizes = [1, 152], strides = [1, 1]} : vector<1x202xf32> to vector<1x152xf32>
    %c24 = arith.constant 24 : index
    %c0_32 = arith.constant 0 : index
    %58 = vector.load %arg10[%c24, %c0_32] : memref<51x152xf32, #tpu.memory_space<vmem>>, vector<1x152xf32>
    tpu.vector_store %arg10[%c24, %c0_32], %57 {strides = array<i32>} : memref<51x152xf32, #tpu.memory_space<vmem>>, vector<1x152xf32>,
    %59 = vector.extract_strided_slice %8 {offsets = [0, 25], sizes = [1, 152], strides = [1, 1]} : vector<1x202xf32> to vector<1x152xf32>
    %c25 = arith.constant 25 : index
    %c0_33 = arith.constant 0 : index
    %60 = vector.load %arg10[%c25, %c0_33] : memref<51x152xf32, #tpu.memory_space<vmem>>, vector<1x152xf32>
    tpu.vector_store %arg10[%c25, %c0_33], %59 {strides = array<i32>} : memref<51x152xf32, #tpu.memory_space<vmem>>, vector<1x152xf32>,
    %61 = vector.extract_strided_slice %8 {offsets = [0, 26], sizes = [1, 152], strides = [1, 1]} : vector<1x202xf32> to vector<1x152xf32>
    %c26 = arith.constant 26 : index
    %c0_34 = arith.constant 0 : index
    %62 = vector.load %arg10[%c26, %c0_34] : memref<51x152xf32, #tpu.memory_space<vmem>>, vector<1x152xf32>
    tpu.vector_store %arg10[%c26, %c0_34], %61 {strides = array<i32>} : memref<51x152xf32, #tpu.memory_space<vmem>>, vector<1x152xf32>,
    %63 = vector.extract_strided_slice %8 {offsets = [0, 27], sizes = [1, 152], strides = [1, 1]} : vector<1x202xf32> to vector<1x152xf32>
    %c27 = arith.constant 27 : index
    %c0_35 = arith.constant 0 : index
    %64 = vector.load %arg10[%c27, %c0_35] : memref<51x152xf32, #tpu.memory_space<vmem>>, vector<1x152xf32>
    tpu.vector_store %arg10[%c27, %c0_35], %63 {strides = array<i32>} : memref<51x152xf32, #tpu.memory_space<vmem>>, vector<1x152xf32>,
    %65 = vector.extract_strided_slice %8 {offsets = [0, 28], sizes = [1, 152], strides = [1, 1]} : vector<1x202xf32> to vector<1x152xf32>
    %c28 = arith.constant 28 : index
    %c0_36 = arith.constant 0 : index
    %66 = vector.load %arg10[%c28, %c0_36] : memref<51x152xf32, #tpu.memory_space<vmem>>, vector<1x152xf32>
    tpu.vector_store %arg10[%c28, %c0_36], %65 {strides = array<i32>} : memref<51x152xf32, #tpu.memory_space<vmem>>, vector<1x152xf32>,
    %67 = vector.extract_strided_slice %8 {offsets = [0, 29], sizes = [1, 152], strides = [1, 1]} : vector<1x202xf32> to vector<1x152xf32>
    %c29 = arith.constant 29 : index
    %c0_37 = arith.constant 0 : index
    %68 = vector.load %arg10[%c29, %c0_37] : memref<51x152xf32, #tpu.memory_space<vmem>>, vector<1x152xf32>
    tpu.vector_store %arg10[%c29, %c0_37], %67 {strides = array<i32>} : memref<51x152xf32, #tpu.memory_space<vmem>>, vector<1x152xf32>,
    %69 = vector.extract_strided_slice %8 {offsets = [0, 30], sizes = [1, 152], strides = [1, 1]} : vector<1x202xf32> to vector<1x152xf32>
    %c30 = arith.constant 30 : index
    %c0_38 = arith.constant 0 : index
    %70 = vector.load %arg10[%c30, %c0_38] : memref<51x152xf32, #tpu.memory_space<vmem>>, vector<1x152xf32>
    tpu.vector_store %arg10[%c30, %c0_38], %69 {strides = array<i32>} : memref<51x152xf32, #tpu.memory_space<vmem>>, vector<1x152xf32>,
    %71 = vector.extract_strided_slice %8 {offsets = [0, 31], sizes = [1, 152], strides = [1, 1]} : vector<1x202xf32> to vector<1x152xf32>
    %c31 = arith.constant 31 : index
    %c0_39 = arith.constant 0 : index
    %72 = vector.load %arg10[%c31, %c0_39] : memref<51x152xf32, #tpu.memory_space<vmem>>, vector<1x152xf32>
    tpu.vector_store %arg10[%c31, %c0_39], %71 {strides = array<i32>} : memref<51x152xf32, #tpu.memory_space<vmem>>, vector<1x152xf32>,
    %73 = vector.extract_strided_slice %8 {offsets = [0, 32], sizes = [1, 152], strides = [1, 1]} : vector<1x202xf32> to vector<1x152xf32>
    %c32 = arith.constant 32 : index
    %c0_40 = arith.constant 0 : index
    %74 = vector.load %arg10[%c32, %c0_40] : memref<51x152xf32, #tpu.memory_space<vmem>>, vector<1x152xf32>
    tpu.vector_store %arg10[%c32, %c0_40], %73 {strides = array<i32>} : memref<51x152xf32, #tpu.memory_space<vmem>>, vector<1x152xf32>,
    %75 = vector.extract_strided_slice %8 {offsets = [0, 33], sizes = [1, 152], strides = [1, 1]} : vector<1x202xf32> to vector<1x152xf32>
    %c33 = arith.constant 33 : index
    %c0_41 = arith.constant 0 : index
    %76 = vector.load %arg10[%c33, %c0_41] : memref<51x152xf32, #tpu.memory_space<vmem>>, vector<1x152xf32>
    tpu.vector_store %arg10[%c33, %c0_41], %75 {strides = array<i32>} : memref<51x152xf32, #tpu.memory_space<vmem>>, vector<1x152xf32>,
    %77 = vector.extract_strided_slice %8 {offsets = [0, 34], sizes = [1, 152], strides = [1, 1]} : vector<1x202xf32> to vector<1x152xf32>
    %c34 = arith.constant 34 : index
    %c0_42 = arith.constant 0 : index
    %78 = vector.load %arg10[%c34, %c0_42] : memref<51x152xf32, #tpu.memory_space<vmem>>, vector<1x152xf32>
    tpu.vector_store %arg10[%c34, %c0_42], %77 {strides = array<i32>} : memref<51x152xf32, #tpu.memory_space<vmem>>, vector<1x152xf32>,
    %79 = vector.extract_strided_slice %8 {offsets = [0, 35], sizes = [1, 152], strides = [1, 1]} : vector<1x202xf32> to vector<1x152xf32>
    %c35 = arith.constant 35 : index
    %c0_43 = arith.constant 0 : index
    %80 = vector.load %arg10[%c35, %c0_43] : memref<51x152xf32, #tpu.memory_space<vmem>>, vector<1x152xf32>
    tpu.vector_store %arg10[%c35, %c0_43], %79 {strides = array<i32>} : memref<51x152xf32, #tpu.memory_space<vmem>>, vector<1x152xf32>,
    %81 = vector.extract_strided_slice %8 {offsets = [0, 36], sizes = [1, 152], strides = [1, 1]} : vector<1x202xf32> to vector<1x152xf32>
    %c36 = arith.constant 36 : index
    %c0_44 = arith.constant 0 : index
    %82 = vector.load %arg10[%c36, %c0_44] : memref<51x152xf32, #tpu.memory_space<vmem>>, vector<1x152xf32>
    tpu.vector_store %arg10[%c36, %c0_44], %81 {strides = array<i32>} : memref<51x152xf32, #tpu.memory_space<vmem>>, vector<1x152xf32>,
    %83 = vector.extract_strided_slice %8 {offsets = [0, 37], sizes = [1, 152], strides = [1, 1]} : vector<1x202xf32> to vector<1x152xf32>
    %c37 = arith.constant 37 : index
    %c0_45 = arith.constant 0 : index
    %84 = vector.load %arg10[%c37, %c0_45] : memref<51x152xf32, #tpu.memory_space<vmem>>, vector<1x152xf32>
    tpu.vector_store %arg10[%c37, %c0_45], %83 {strides = array<i32>} : memref<51x152xf32, #tpu.memory_space<vmem>>, vector<1x152xf32>,
    %85 = vector.extract_strided_slice %8 {offsets = [0, 38], sizes = [1, 152], strides = [1, 1]} : vector<1x202xf32> to vector<1x152xf32>
    %c38 = arith.constant 38 : index
    %c0_46 = arith.constant 0 : index
    %86 = vector.load %arg10[%c38, %c0_46] : memref<51x152xf32, #tpu.memory_space<vmem>>, vector<1x152xf32>
    tpu.vector_store %arg10[%c38, %c0_46], %85 {strides = array<i32>} : memref<51x152xf32, #tpu.memory_space<vmem>>, vector<1x152xf32>,
    %87 = vector.extract_strided_slice %8 {offsets = [0, 39], sizes = [1, 152], strides = [1, 1]} : vector<1x202xf32> to vector<1x152xf32>
    %c39 = arith.constant 39 : index
    %c0_47 = arith.constant 0 : index
    %88 = vector.load %arg10[%c39, %c0_47] : memref<51x152xf32, #tpu.memory_space<vmem>>, vector<1x152xf32>
    tpu.vector_store %arg10[%c39, %c0_47], %87 {strides = array<i32>} : memref<51x152xf32, #tpu.memory_space<vmem>>, vector<1x152xf32>,
    %89 = vector.extract_strided_slice %8 {offsets = [0, 40], sizes = [1, 152], strides = [1, 1]} : vector<1x202xf32> to vector<1x152xf32>
    %c40 = arith.constant 40 : index
    %c0_48 = arith.constant 0 : index
    %90 = vector.load %arg10[%c40, %c0_48] : memref<51x152xf32, #tpu.memory_space<vmem>>, vector<1x152xf32>
    tpu.vector_store %arg10[%c40, %c0_48], %89 {strides = array<i32>} : memref<51x152xf32, #tpu.memory_space<vmem>>, vector<1x152xf32>,
    %91 = vector.extract_strided_slice %8 {offsets = [0, 41], sizes = [1, 152], strides = [1, 1]} : vector<1x202xf32> to vector<1x152xf32>
    %c41 = arith.constant 41 : index
    %c0_49 = arith.constant 0 : index
    %92 = vector.load %arg10[%c41, %c0_49] : memref<51x152xf32, #tpu.memory_space<vmem>>, vector<1x152xf32>
    tpu.vector_store %arg10[%c41, %c0_49], %91 {strides = array<i32>} : memref<51x152xf32, #tpu.memory_space<vmem>>, vector<1x152xf32>,
    %93 = vector.extract_strided_slice %8 {offsets = [0, 42], sizes = [1, 152], strides = [1, 1]} : vector<1x202xf32> to vector<1x152xf32>
    %c42 = arith.constant 42 : index
    %c0_50 = arith.constant 0 : index
    %94 = vector.load %arg10[%c42, %c0_50] : memref<51x152xf32, #tpu.memory_space<vmem>>, vector<1x152xf32>
    tpu.vector_store %arg10[%c42, %c0_50], %93 {strides = array<i32>} : memref<51x152xf32, #tpu.memory_space<vmem>>, vector<1x152xf32>,
    %95 = vector.extract_strided_slice %8 {offsets = [0, 43], sizes = [1, 152], strides = [1, 1]} : vector<1x202xf32> to vector<1x152xf32>
    %c43 = arith.constant 43 : index
    %c0_51 = arith.constant 0 : index
    %96 = vector.load %arg10[%c43, %c0_51] : memref<51x152xf32, #tpu.memory_space<vmem>>, vector<1x152xf32>
    tpu.vector_store %arg10[%c43, %c0_51], %95 {strides = array<i32>} : memref<51x152xf32, #tpu.memory_space<vmem>>, vector<1x152xf32>,
    %97 = vector.extract_strided_slice %8 {offsets = [0, 44], sizes = [1, 152], strides = [1, 1]} : vector<1x202xf32> to vector<1x152xf32>
    %c44 = arith.constant 44 : index
    %c0_52 = arith.constant 0 : index
    %98 = vector.load %arg10[%c44, %c0_52] : memref<51x152xf32, #tpu.memory_space<vmem>>, vector<1x152xf32>
    tpu.vector_store %arg10[%c44, %c0_52], %97 {strides = array<i32>} : memref<51x152xf32, #tpu.memory_space<vmem>>, vector<1x152xf32>,
    %99 = vector.extract_strided_slice %8 {offsets = [0, 45], sizes = [1, 152], strides = [1, 1]} : vector<1x202xf32> to vector<1x152xf32>
    %c45 = arith.constant 45 : index
    %c0_53 = arith.constant 0 : index
    %100 = vector.load %arg10[%c45, %c0_53] : memref<51x152xf32, #tpu.memory_space<vmem>>, vector<1x152xf32>
    tpu.vector_store %arg10[%c45, %c0_53], %99 {strides = array<i32>} : memref<51x152xf32, #tpu.memory_space<vmem>>, vector<1x152xf32>,
    %101 = vector.extract_strided_slice %8 {offsets = [0, 46], sizes = [1, 152], strides = [1, 1]} : vector<1x202xf32> to vector<1x152xf32>
    %c46 = arith.constant 46 : index
    %c0_54 = arith.constant 0 : index
    %102 = vector.load %arg10[%c46, %c0_54] : memref<51x152xf32, #tpu.memory_space<vmem>>, vector<1x152xf32>
    tpu.vector_store %arg10[%c46, %c0_54], %101 {strides = array<i32>} : memref<51x152xf32, #tpu.memory_space<vmem>>, vector<1x152xf32>,
    %103 = vector.extract_strided_slice %8 {offsets = [0, 47], sizes = [1, 152], strides = [1, 1]} : vector<1x202xf32> to vector<1x152xf32>
    %c47 = arith.constant 47 : index
    %c0_55 = arith.constant 0 : index
    %104 = vector.load %arg10[%c47, %c0_55] : memref<51x152xf32, #tpu.memory_space<vmem>>, vector<1x152xf32>
    tpu.vector_store %arg10[%c47, %c0_55], %103 {strides = array<i32>} : memref<51x152xf32, #tpu.memory_space<vmem>>, vector<1x152xf32>,
    %105 = vector.extract_strided_slice %8 {offsets = [0, 48], sizes = [1, 152], strides = [1, 1]} : vector<1x202xf32> to vector<1x152xf32>
    %c48 = arith.constant 48 : index
    %c0_56 = arith.constant 0 : index
    %106 = vector.load %arg10[%c48, %c0_56] : memref<51x152xf32, #tpu.memory_space<vmem>>, vector<1x152xf32>
    tpu.vector_store %arg10[%c48, %c0_56], %105 {strides = array<i32>} : memref<51x152xf32, #tpu.memory_space<vmem>>, vector<1x152xf32>,
    %107 = vector.extract_strided_slice %8 {offsets = [0, 49], sizes = [1, 152], strides = [1, 1]} : vector<1x202xf32> to vector<1x152xf32>
    %c49 = arith.constant 49 : index
    %c0_57 = arith.constant 0 : index
    %108 = vector.load %arg10[%c49, %c0_57] : memref<51x152xf32, #tpu.memory_space<vmem>>, vector<1x152xf32>
    tpu.vector_store %arg10[%c49, %c0_57], %107 {strides = array<i32>} : memref<51x152xf32, #tpu.memory_space<vmem>>, vector<1x152xf32>,
    %109 = vector.extract_strided_slice %8 {offsets = [0, 50], sizes = [1, 152], strides = [1, 1]} : vector<1x202xf32> to vector<1x152xf32>
    %c50 = arith.constant 50 : index
    %c0_58 = arith.constant 0 : index
    %110 = vector.load %arg10[%c50, %c0_58] : memref<51x152xf32, #tpu.memory_space<vmem>>, vector<1x152xf32>
    tpu.vector_store %arg10[%c50, %c0_58], %109 {strides = array<i32>} : memref<51x152xf32, #tpu.memory_space<vmem>>, vector<1x152xf32>,
    %c0_59 = arith.constant 0 : index
    %c0_60 = arith.constant 0 : index
    %111 = vector.load %arg4[%c0_59, %c0_60] : memref<16x51xf32, #tpu.memory_space<vmem>>, vector<16x51xf32>
    %c0_61 = arith.constant 0 : index
    %c0_62 = arith.constant 0 : index
    %112 = vector.load %arg10[%c0_61, %c0_62] : memref<51x152xf32, #tpu.memory_space<vmem>>, vector<51x152xf32>
    %cst_63 = arith.constant dense<0.000000e+00> : vector<16x152xf32>
    %113 = tpu.matmul %111, %112, %cst_63 {dimension_numbers = #tpu.dot_dimension_numbers<[1], [0], [0], [1], [0, 0, 1, 1], [], []>} : vector<16x51xf32>, vector<51x152xf32>, vector<16x152xf32> -> vector<16x152xf32>
    %114 = tpu.iota {dimensions = array<i32: 1>} : vector<1x152xi32>
    %c128_i32 = arith.constant 128 : i32
    %115 = arith.muli %arg1, %c128_i32 : i32
    %c12_i32 = arith.constant 12 : i32
    %116 = arith.subi %115, %c12_i32 : i32
    %117 = vector.broadcast %116 : i32 to vector<1x152xi32>
    %118 = arith.addi %114, %117 : vector<1x152xi32>
    %c0_i32 = arith.constant 0 : i32
    %119 = vector.broadcast %c0_i32 : i32 to vector<1x152xi32>
    %120 = arith.cmpi sge, %118, %119 : vector<1x152xi32>
    %c64_i32 = arith.constant 64 : i32
    %121 = vector.broadcast %c64_i32 : i32 to vector<1x152xi32>
    %122 = arith.cmpi slt, %118, %121 : vector<1x152xi32>
    %123 = arith.andi %120, %122 : vector<1x152xi1>
    %cst_64 = arith.constant 0.000000e+00 : f32
    %124 = vector.shape_cast %123 : vector<1x152xi1> to vector<1x152xi1>
    %125 = vector.broadcast %124 : vector<1x152xi1> to vector<16x152xi1>
    %126 = vector.broadcast %cst_64 : f32 to vector<16x152xf32>
    %127 = arith.select %125, %113, %126 : vector<16x152xi1>, vector<16x152xf32>
    %128 = vector.extract_strided_slice %4 {offsets = [0, 0], sizes = [16, 128], strides = [1, 1]} : vector<16x152xf32> to vector<16x128xf32>
    %c0_65 = arith.constant 0 : index
    %c0_66 = arith.constant 0 : index
    %129 = vector.load %arg11[%c0_65, %c0_66] : memref<800x128xf32, #tpu.memory_space<vmem>>, vector<16x128xf32>
    tpu.vector_store %arg11[%c0_65, %c0_66], %128 {strides = array<i32>} : memref<800x128xf32, #tpu.memory_space<vmem>>, vector<16x128xf32>,
    %130 = vector.extract_strided_slice %127 {offsets = [0, 0], sizes = [16, 128], strides = [1, 1]} : vector<16x152xf32> to vector<16x128xf32>
    %c16_67 = arith.constant 16 : index
    %c0_68 = arith.constant 0 : index
    %131 = vector.load %arg11[%c16_67, %c0_68] : memref<800x128xf32, #tpu.memory_space<vmem>>, vector<16x128xf32>
    tpu.vector_store %arg11[%c16_67, %c0_68], %130 {strides = array<i32>} : memref<800x128xf32, #tpu.memory_space<vmem>>, vector<16x128xf32>,
    %132 = vector.extract_strided_slice %4 {offsets = [0, 1], sizes = [16, 128], strides = [1, 1]} : vector<16x152xf32> to vector<16x128xf32>
    %c32_69 = arith.constant 32 : index
    %c0_70 = arith.constant 0 : index
    %133 = vector.load %arg11[%c32_69, %c0_70] : memref<800x128xf32, #tpu.memory_space<vmem>>, vector<16x128xf32>
    tpu.vector_store %arg11[%c32_69, %c0_70], %132 {strides = array<i32>} : memref<800x128xf32, #tpu.memory_space<vmem>>, vector<16x128xf32>,
    %134 = vector.extract_strided_slice %127 {offsets = [0, 1], sizes = [16, 128], strides = [1, 1]} : vector<16x152xf32> to vector<16x128xf32>
    %c48_71 = arith.constant 48 : index
    %c0_72 = arith.constant 0 : index
    %135 = vector.load %arg11[%c48_71, %c0_72] : memref<800x128xf32, #tpu.memory_space<vmem>>, vector<16x128xf32>
    tpu.vector_store %arg11[%c48_71, %c0_72], %134 {strides = array<i32>} : memref<800x128xf32, #tpu.memory_space<vmem>>, vector<16x128xf32>,
    %136 = vector.extract_strided_slice %4 {offsets = [0, 2], sizes = [16, 128], strides = [1, 1]} : vector<16x152xf32> to vector<16x128xf32>
    %c64 = arith.constant 64 : index
    %c0_73 = arith.constant 0 : index
    %137 = vector.load %arg11[%c64, %c0_73] : memref<800x128xf32, #tpu.memory_space<vmem>>, vector<16x128xf32>
    tpu.vector_store %arg11[%c64, %c0_73], %136 {strides = array<i32>} : memref<800x128xf32, #tpu.memory_space<vmem>>, vector<16x128xf32>,
    %138 = vector.extract_strided_slice %127 {offsets = [0, 2], sizes = [16, 128], strides = [1, 1]} : vector<16x152xf32> to vector<16x128xf32>
    %c80 = arith.constant 80 : index
    %c0_74 = arith.constant 0 : index
    %139 = vector.load %arg11[%c80, %c0_74] : memref<800x128xf32, #tpu.memory_space<vmem>>, vector<16x128xf32>
    tpu.vector_store %arg11[%c80, %c0_74], %138 {strides = array<i32>} : memref<800x128xf32, #tpu.memory_space<vmem>>, vector<16x128xf32>,
    %140 = vector.extract_strided_slice %4 {offsets = [0, 3], sizes = [16, 128], strides = [1, 1]} : vector<16x152xf32> to vector<16x128xf32>
    %c96 = arith.constant 96 : index
    %c0_75 = arith.constant 0 : index
    %141 = vector.load %arg11[%c96, %c0_75] : memref<800x128xf32, #tpu.memory_space<vmem>>, vector<16x128xf32>
    tpu.vector_store %arg11[%c96, %c0_75], %140 {strides = array<i32>} : memref<800x128xf32, #tpu.memory_space<vmem>>, vector<16x128xf32>,
    %142 = vector.extract_strided_slice %127 {offsets = [0, 3], sizes = [16, 128], strides = [1, 1]} : vector<16x152xf32> to vector<16x128xf32>
    %c112 = arith.constant 112 : index
    %c0_76 = arith.constant 0 : index
    %143 = vector.load %arg11[%c112, %c0_76] : memref<800x128xf32, #tpu.memory_space<vmem>>, vector<16x128xf32>
    tpu.vector_store %arg11[%c112, %c0_76], %142 {strides = array<i32>} : memref<800x128xf32, #tpu.memory_space<vmem>>, vector<16x128xf32>,
    %144 = vector.extract_strided_slice %4 {offsets = [0, 4], sizes = [16, 128], strides = [1, 1]} : vector<16x152xf32> to vector<16x128xf32>
    %c128 = arith.constant 128 : index
    %c0_77 = arith.constant 0 : index
    %145 = vector.load %arg11[%c128, %c0_77] : memref<800x128xf32, #tpu.memory_space<vmem>>, vector<16x128xf32>
    tpu.vector_store %arg11[%c128, %c0_77], %144 {strides = array<i32>} : memref<800x128xf32, #tpu.memory_space<vmem>>, vector<16x128xf32>,
    %146 = vector.extract_strided_slice %127 {offsets = [0, 4], sizes = [16, 128], strides = [1, 1]} : vector<16x152xf32> to vector<16x128xf32>
    %c144 = arith.constant 144 : index
    %c0_78 = arith.constant 0 : index
    %147 = vector.load %arg11[%c144, %c0_78] : memref<800x128xf32, #tpu.memory_space<vmem>>, vector<16x128xf32>
    tpu.vector_store %arg11[%c144, %c0_78], %146 {strides = array<i32>} : memref<800x128xf32, #tpu.memory_space<vmem>>, vector<16x128xf32>,
    %148 = vector.extract_strided_slice %4 {offsets = [0, 5], sizes = [16, 128], strides = [1, 1]} : vector<16x152xf32> to vector<16x128xf32>
    %c160 = arith.constant 160 : index
    %c0_79 = arith.constant 0 : index
    %149 = vector.load %arg11[%c160, %c0_79] : memref<800x128xf32, #tpu.memory_space<vmem>>, vector<16x128xf32>
    tpu.vector_store %arg11[%c160, %c0_79], %148 {strides = array<i32>} : memref<800x128xf32, #tpu.memory_space<vmem>>, vector<16x128xf32>,
    %150 = vector.extract_strided_slice %127 {offsets = [0, 5], sizes = [16, 128], strides = [1, 1]} : vector<16x152xf32> to vector<16x128xf32>
    %c176 = arith.constant 176 : index
    %c0_80 = arith.constant 0 : index
    %151 = vector.load %arg11[%c176, %c0_80] : memref<800x128xf32, #tpu.memory_space<vmem>>, vector<16x128xf32>
    tpu.vector_store %arg11[%c176, %c0_80], %150 {strides = array<i32>} : memref<800x128xf32, #tpu.memory_space<vmem>>, vector<16x128xf32>,
    %152 = vector.extract_strided_slice %4 {offsets = [0, 6], sizes = [16, 128], strides = [1, 1]} : vector<16x152xf32> to vector<16x128xf32>
    %c192 = arith.constant 192 : index
    %c0_81 = arith.constant 0 : index
    %153 = vector.load %arg11[%c192, %c0_81] : memref<800x128xf32, #tpu.memory_space<vmem>>, vector<16x128xf32>
    tpu.vector_store %arg11[%c192, %c0_81], %152 {strides = array<i32>} : memref<800x128xf32, #tpu.memory_space<vmem>>, vector<16x128xf32>,
    %154 = vector.extract_strided_slice %127 {offsets = [0, 6], sizes = [16, 128], strides = [1, 1]} : vector<16x152xf32> to vector<16x128xf32>
    %c208 = arith.constant 208 : index
    %c0_82 = arith.constant 0 : index
    %155 = vector.load %arg11[%c208, %c0_82] : memref<800x128xf32, #tpu.memory_space<vmem>>, vector<16x128xf32>
    tpu.vector_store %arg11[%c208, %c0_82], %154 {strides = array<i32>} : memref<800x128xf32, #tpu.memory_space<vmem>>, vector<16x128xf32>,
    %156 = vector.extract_strided_slice %4 {offsets = [0, 7], sizes = [16, 128], strides = [1, 1]} : vector<16x152xf32> to vector<16x128xf32>
    %c224 = arith.constant 224 : index
    %c0_83 = arith.constant 0 : index
    %157 = vector.load %arg11[%c224, %c0_83] : memref<800x128xf32, #tpu.memory_space<vmem>>, vector<16x128xf32>
    tpu.vector_store %arg11[%c224, %c0_83], %156 {strides = array<i32>} : memref<800x128xf32, #tpu.memory_space<vmem>>, vector<16x128xf32>,
    %158 = vector.extract_strided_slice %127 {offsets = [0, 7], sizes = [16, 128], strides = [1, 1]} : vector<16x152xf32> to vector<16x128xf32>
    %c240 = arith.constant 240 : index
    %c0_84 = arith.constant 0 : index
    %159 = vector.load %arg11[%c240, %c0_84] : memref<800x128xf32, #tpu.memory_space<vmem>>, vector<16x128xf32>
    tpu.vector_store %arg11[%c240, %c0_84], %158 {strides = array<i32>} : memref<800x128xf32, #tpu.memory_space<vmem>>, vector<16x128xf32>,
    %160 = vector.extract_strided_slice %4 {offsets = [0, 8], sizes = [16, 128], strides = [1, 1]} : vector<16x152xf32> to vector<16x128xf32>
    %c256 = arith.constant 256 : index
    %c0_85 = arith.constant 0 : index
    %161 = vector.load %arg11[%c256, %c0_85] : memref<800x128xf32, #tpu.memory_space<vmem>>, vector<16x128xf32>
    tpu.vector_store %arg11[%c256, %c0_85], %160 {strides = array<i32>} : memref<800x128xf32, #tpu.memory_space<vmem>>, vector<16x128xf32>,
    %162 = vector.extract_strided_slice %127 {offsets = [0, 8], sizes = [16, 128], strides = [1, 1]} : vector<16x152xf32> to vector<16x128xf32>
    %c272 = arith.constant 272 : index
    %c0_86 = arith.constant 0 : index
    %163 = vector.load %arg11[%c272, %c0_86] : memref<800x128xf32, #tpu.memory_space<vmem>>, vector<16x128xf32>
    tpu.vector_store %arg11[%c272, %c0_86], %162 {strides = array<i32>} : memref<800x128xf32, #tpu.memory_space<vmem>>, vector<16x128xf32>,
    %164 = vector.extract_strided_slice %4 {offsets = [0, 9], sizes = [16, 128], strides = [1, 1]} : vector<16x152xf32> to vector<16x128xf32>
    %c288 = arith.constant 288 : index
    %c0_87 = arith.constant 0 : index
    %165 = vector.load %arg11[%c288, %c0_87] : memref<800x128xf32, #tpu.memory_space<vmem>>, vector<16x128xf32>
    tpu.vector_store %arg11[%c288, %c0_87], %164 {strides = array<i32>} : memref<800x128xf32, #tpu.memory_space<vmem>>, vector<16x128xf32>,
    %166 = vector.extract_strided_slice %127 {offsets = [0, 9], sizes = [16, 128], strides = [1, 1]} : vector<16x152xf32> to vector<16x128xf32>
    %c304 = arith.constant 304 : index
    %c0_88 = arith.constant 0 : index
    %167 = vector.load %arg11[%c304, %c0_88] : memref<800x128xf32, #tpu.memory_space<vmem>>, vector<16x128xf32>
    tpu.vector_store %arg11[%c304, %c0_88], %166 {strides = array<i32>} : memref<800x128xf32, #tpu.memory_space<vmem>>, vector<16x128xf32>,
    %168 = vector.extract_strided_slice %4 {offsets = [0, 10], sizes = [16, 128], strides = [1, 1]} : vector<16x152xf32> to vector<16x128xf32>
    %c320 = arith.constant 320 : index
    %c0_89 = arith.constant 0 : index
    %169 = vector.load %arg11[%c320, %c0_89] : memref<800x128xf32, #tpu.memory_space<vmem>>, vector<16x128xf32>
    tpu.vector_store %arg11[%c320, %c0_89], %168 {strides = array<i32>} : memref<800x128xf32, #tpu.memory_space<vmem>>, vector<16x128xf32>,
    %170 = vector.extract_strided_slice %127 {offsets = [0, 10], sizes = [16, 128], strides = [1, 1]} : vector<16x152xf32> to vector<16x128xf32>
    %c336 = arith.constant 336 : index
    %c0_90 = arith.constant 0 : index
    %171 = vector.load %arg11[%c336, %c0_90] : memref<800x128xf32, #tpu.memory_space<vmem>>, vector<16x128xf32>
    tpu.vector_store %arg11[%c336, %c0_90], %170 {strides = array<i32>} : memref<800x128xf32, #tpu.memory_space<vmem>>, vector<16x128xf32>,
    %172 = vector.extract_strided_slice %4 {offsets = [0, 11], sizes = [16, 128], strides = [1, 1]} : vector<16x152xf32> to vector<16x128xf32>
    %c352 = arith.constant 352 : index
    %c0_91 = arith.constant 0 : index
    %173 = vector.load %arg11[%c352, %c0_91] : memref<800x128xf32, #tpu.memory_space<vmem>>, vector<16x128xf32>
    tpu.vector_store %arg11[%c352, %c0_91], %172 {strides = array<i32>} : memref<800x128xf32, #tpu.memory_space<vmem>>, vector<16x128xf32>,
    %174 = vector.extract_strided_slice %127 {offsets = [0, 11], sizes = [16, 128], strides = [1, 1]} : vector<16x152xf32> to vector<16x128xf32>
    %c368 = arith.constant 368 : index
    %c0_92 = arith.constant 0 : index
    %175 = vector.load %arg11[%c368, %c0_92] : memref<800x128xf32, #tpu.memory_space<vmem>>, vector<16x128xf32>
    tpu.vector_store %arg11[%c368, %c0_92], %174 {strides = array<i32>} : memref<800x128xf32, #tpu.memory_space<vmem>>, vector<16x128xf32>,
    %176 = vector.extract_strided_slice %4 {offsets = [0, 12], sizes = [16, 128], strides = [1, 1]} : vector<16x152xf32> to vector<16x128xf32>
    %c384 = arith.constant 384 : index
    %c0_93 = arith.constant 0 : index
    %177 = vector.load %arg11[%c384, %c0_93] : memref<800x128xf32, #tpu.memory_space<vmem>>, vector<16x128xf32>
    tpu.vector_store %arg11[%c384, %c0_93], %176 {strides = array<i32>} : memref<800x128xf32, #tpu.memory_space<vmem>>, vector<16x128xf32>,
    %178 = vector.extract_strided_slice %127 {offsets = [0, 12], sizes = [16, 128], strides = [1, 1]} : vector<16x152xf32> to vector<16x128xf32>
    %c400 = arith.constant 400 : index
    %c0_94 = arith.constant 0 : index
    %179 = vector.load %arg11[%c400, %c0_94] : memref<800x128xf32, #tpu.memory_space<vmem>>, vector<16x128xf32>
    tpu.vector_store %arg11[%c400, %c0_94], %178 {strides = array<i32>} : memref<800x128xf32, #tpu.memory_space<vmem>>, vector<16x128xf32>,
    %180 = vector.extract_strided_slice %4 {offsets = [0, 13], sizes = [16, 128], strides = [1, 1]} : vector<16x152xf32> to vector<16x128xf32>
    %c416 = arith.constant 416 : index
    %c0_95 = arith.constant 0 : index
    %181 = vector.load %arg11[%c416, %c0_95] : memref<800x128xf32, #tpu.memory_space<vmem>>, vector<16x128xf32>
    tpu.vector_store %arg11[%c416, %c0_95], %180 {strides = array<i32>} : memref<800x128xf32, #tpu.memory_space<vmem>>, vector<16x128xf32>,
    %182 = vector.extract_strided_slice %127 {offsets = [0, 13], sizes = [16, 128], strides = [1, 1]} : vector<16x152xf32> to vector<16x128xf32>
    %c432 = arith.constant 432 : index
    %c0_96 = arith.constant 0 : index
    %183 = vector.load %arg11[%c432, %c0_96] : memref<800x128xf32, #tpu.memory_space<vmem>>, vector<16x128xf32>
    tpu.vector_store %arg11[%c432, %c0_96], %182 {strides = array<i32>} : memref<800x128xf32, #tpu.memory_space<vmem>>, vector<16x128xf32>,
    %184 = vector.extract_strided_slice %4 {offsets = [0, 14], sizes = [16, 128], strides = [1, 1]} : vector<16x152xf32> to vector<16x128xf32>
    %c448 = arith.constant 448 : index
    %c0_97 = arith.constant 0 : index
    %185 = vector.load %arg11[%c448, %c0_97] : memref<800x128xf32, #tpu.memory_space<vmem>>, vector<16x128xf32>
    tpu.vector_store %arg11[%c448, %c0_97], %184 {strides = array<i32>} : memref<800x128xf32, #tpu.memory_space<vmem>>, vector<16x128xf32>,
    %186 = vector.extract_strided_slice %127 {offsets = [0, 14], sizes = [16, 128], strides = [1, 1]} : vector<16x152xf32> to vector<16x128xf32>
    %c464 = arith.constant 464 : index
    %c0_98 = arith.constant 0 : index
    %187 = vector.load %arg11[%c464, %c0_98] : memref<800x128xf32, #tpu.memory_space<vmem>>, vector<16x128xf32>
    tpu.vector_store %arg11[%c464, %c0_98], %186 {strides = array<i32>} : memref<800x128xf32, #tpu.memory_space<vmem>>, vector<16x128xf32>,
    %188 = vector.extract_strided_slice %4 {offsets = [0, 15], sizes = [16, 128], strides = [1, 1]} : vector<16x152xf32> to vector<16x128xf32>
    %c480 = arith.constant 480 : index
    %c0_99 = arith.constant 0 : index
    %189 = vector.load %arg11[%c480, %c0_99] : memref<800x128xf32, #tpu.memory_space<vmem>>, vector<16x128xf32>
    tpu.vector_store %arg11[%c480, %c0_99], %188 {strides = array<i32>} : memref<800x128xf32, #tpu.memory_space<vmem>>, vector<16x128xf32>,
    %190 = vector.extract_strided_slice %127 {offsets = [0, 15], sizes = [16, 128], strides = [1, 1]} : vector<16x152xf32> to vector<16x128xf32>
    %c496 = arith.constant 496 : index
    %c0_100 = arith.constant 0 : index
    %191 = vector.load %arg11[%c496, %c0_100] : memref<800x128xf32, #tpu.memory_space<vmem>>, vector<16x128xf32>
    tpu.vector_store %arg11[%c496, %c0_100], %190 {strides = array<i32>} : memref<800x128xf32, #tpu.memory_space<vmem>>, vector<16x128xf32>,
    %192 = vector.extract_strided_slice %4 {offsets = [0, 16], sizes = [16, 128], strides = [1, 1]} : vector<16x152xf32> to vector<16x128xf32>
    %c512 = arith.constant 512 : index
    %c0_101 = arith.constant 0 : index
    %193 = vector.load %arg11[%c512, %c0_101] : memref<800x128xf32, #tpu.memory_space<vmem>>, vector<16x128xf32>
    tpu.vector_store %arg11[%c512, %c0_101], %192 {strides = array<i32>} : memref<800x128xf32, #tpu.memory_space<vmem>>, vector<16x128xf32>,
    %194 = vector.extract_strided_slice %127 {offsets = [0, 16], sizes = [16, 128], strides = [1, 1]} : vector<16x152xf32> to vector<16x128xf32>
    %c528 = arith.constant 528 : index
    %c0_102 = arith.constant 0 : index
    %195 = vector.load %arg11[%c528, %c0_102] : memref<800x128xf32, #tpu.memory_space<vmem>>, vector<16x128xf32>
    tpu.vector_store %arg11[%c528, %c0_102], %194 {strides = array<i32>} : memref<800x128xf32, #tpu.memory_space<vmem>>, vector<16x128xf32>,
    %196 = vector.extract_strided_slice %4 {offsets = [0, 17], sizes = [16, 128], strides = [1, 1]} : vector<16x152xf32> to vector<16x128xf32>
    %c544 = arith.constant 544 : index
    %c0_103 = arith.constant 0 : index
    %197 = vector.load %arg11[%c544, %c0_103] : memref<800x128xf32, #tpu.memory_space<vmem>>, vector<16x128xf32>
    tpu.vector_store %arg11[%c544, %c0_103], %196 {strides = array<i32>} : memref<800x128xf32, #tpu.memory_space<vmem>>, vector<16x128xf32>,
    %198 = vector.extract_strided_slice %127 {offsets = [0, 17], sizes = [16, 128], strides = [1, 1]} : vector<16x152xf32> to vector<16x128xf32>
    %c560 = arith.constant 560 : index
    %c0_104 = arith.constant 0 : index
    %199 = vector.load %arg11[%c560, %c0_104] : memref<800x128xf32, #tpu.memory_space<vmem>>, vector<16x128xf32>
    tpu.vector_store %arg11[%c560, %c0_104], %198 {strides = array<i32>} : memref<800x128xf32, #tpu.memory_space<vmem>>, vector<16x128xf32>,
    %200 = vector.extract_strided_slice %4 {offsets = [0, 18], sizes = [16, 128], strides = [1, 1]} : vector<16x152xf32> to vector<16x128xf32>
    %c576 = arith.constant 576 : index
    %c0_105 = arith.constant 0 : index
    %201 = vector.load %arg11[%c576, %c0_105] : memref<800x128xf32, #tpu.memory_space<vmem>>, vector<16x128xf32>
    tpu.vector_store %arg11[%c576, %c0_105], %200 {strides = array<i32>} : memref<800x128xf32, #tpu.memory_space<vmem>>, vector<16x128xf32>,
    %202 = vector.extract_strided_slice %127 {offsets = [0, 18], sizes = [16, 128], strides = [1, 1]} : vector<16x152xf32> to vector<16x128xf32>
    %c592 = arith.constant 592 : index
    %c0_106 = arith.constant 0 : index
    %203 = vector.load %arg11[%c592, %c0_106] : memref<800x128xf32, #tpu.memory_space<vmem>>, vector<16x128xf32>
    tpu.vector_store %arg11[%c592, %c0_106], %202 {strides = array<i32>} : memref<800x128xf32, #tpu.memory_space<vmem>>, vector<16x128xf32>,
    %204 = vector.extract_strided_slice %4 {offsets = [0, 19], sizes = [16, 128], strides = [1, 1]} : vector<16x152xf32> to vector<16x128xf32>
    %c608 = arith.constant 608 : index
    %c0_107 = arith.constant 0 : index
    %205 = vector.load %arg11[%c608, %c0_107] : memref<800x128xf32, #tpu.memory_space<vmem>>, vector<16x128xf32>
    tpu.vector_store %arg11[%c608, %c0_107], %204 {strides = array<i32>} : memref<800x128xf32, #tpu.memory_space<vmem>>, vector<16x128xf32>,
    %206 = vector.extract_strided_slice %127 {offsets = [0, 19], sizes = [16, 128], strides = [1, 1]} : vector<16x152xf32> to vector<16x128xf32>
    %c624 = arith.constant 624 : index
    %c0_108 = arith.constant 0 : index
    %207 = vector.load %arg11[%c624, %c0_108] : memref<800x128xf32, #tpu.memory_space<vmem>>, vector<16x128xf32>
    tpu.vector_store %arg11[%c624, %c0_108], %206 {strides = array<i32>} : memref<800x128xf32, #tpu.memory_space<vmem>>, vector<16x128xf32>,
    %208 = vector.extract_strided_slice %4 {offsets = [0, 20], sizes = [16, 128], strides = [1, 1]} : vector<16x152xf32> to vector<16x128xf32>
    %c640 = arith.constant 640 : index
    %c0_109 = arith.constant 0 : index
    %209 = vector.load %arg11[%c640, %c0_109] : memref<800x128xf32, #tpu.memory_space<vmem>>, vector<16x128xf32>
    tpu.vector_store %arg11[%c640, %c0_109], %208 {strides = array<i32>} : memref<800x128xf32, #tpu.memory_space<vmem>>, vector<16x128xf32>,
    %210 = vector.extract_strided_slice %127 {offsets = [0, 20], sizes = [16, 128], strides = [1, 1]} : vector<16x152xf32> to vector<16x128xf32>
    %c656 = arith.constant 656 : index
    %c0_110 = arith.constant 0 : index
    %211 = vector.load %arg11[%c656, %c0_110] : memref<800x128xf32, #tpu.memory_space<vmem>>, vector<16x128xf32>
    tpu.vector_store %arg11[%c656, %c0_110], %210 {strides = array<i32>} : memref<800x128xf32, #tpu.memory_space<vmem>>, vector<16x128xf32>,
    %212 = vector.extract_strided_slice %4 {offsets = [0, 21], sizes = [16, 128], strides = [1, 1]} : vector<16x152xf32> to vector<16x128xf32>
    %c672 = arith.constant 672 : index
    %c0_111 = arith.constant 0 : index
    %213 = vector.load %arg11[%c672, %c0_111] : memref<800x128xf32, #tpu.memory_space<vmem>>, vector<16x128xf32>
    tpu.vector_store %arg11[%c672, %c0_111], %212 {strides = array<i32>} : memref<800x128xf32, #tpu.memory_space<vmem>>, vector<16x128xf32>,
    %214 = vector.extract_strided_slice %127 {offsets = [0, 21], sizes = [16, 128], strides = [1, 1]} : vector<16x152xf32> to vector<16x128xf32>
    %c688 = arith.constant 688 : index
    %c0_112 = arith.constant 0 : index
    %215 = vector.load %arg11[%c688, %c0_112] : memref<800x128xf32, #tpu.memory_space<vmem>>, vector<16x128xf32>
    tpu.vector_store %arg11[%c688, %c0_112], %214 {strides = array<i32>} : memref<800x128xf32, #tpu.memory_space<vmem>>, vector<16x128xf32>,
    %216 = vector.extract_strided_slice %4 {offsets = [0, 22], sizes = [16, 128], strides = [1, 1]} : vector<16x152xf32> to vector<16x128xf32>
    %c704 = arith.constant 704 : index
    %c0_113 = arith.constant 0 : index
    %217 = vector.load %arg11[%c704, %c0_113] : memref<800x128xf32, #tpu.memory_space<vmem>>, vector<16x128xf32>
    tpu.vector_store %arg11[%c704, %c0_113], %216 {strides = array<i32>} : memref<800x128xf32, #tpu.memory_space<vmem>>, vector<16x128xf32>,
    %218 = vector.extract_strided_slice %127 {offsets = [0, 22], sizes = [16, 128], strides = [1, 1]} : vector<16x152xf32> to vector<16x128xf32>
    %c720 = arith.constant 720 : index
    %c0_114 = arith.constant 0 : index
    %219 = vector.load %arg11[%c720, %c0_114] : memref<800x128xf32, #tpu.memory_space<vmem>>, vector<16x128xf32>
    tpu.vector_store %arg11[%c720, %c0_114], %218 {strides = array<i32>} : memref<800x128xf32, #tpu.memory_space<vmem>>, vector<16x128xf32>,
    %220 = vector.extract_strided_slice %4 {offsets = [0, 23], sizes = [16, 128], strides = [1, 1]} : vector<16x152xf32> to vector<16x128xf32>
    %c736 = arith.constant 736 : index
    %c0_115 = arith.constant 0 : index
    %221 = vector.load %arg11[%c736, %c0_115] : memref<800x128xf32, #tpu.memory_space<vmem>>, vector<16x128xf32>
    tpu.vector_store %arg11[%c736, %c0_115], %220 {strides = array<i32>} : memref<800x128xf32, #tpu.memory_space<vmem>>, vector<16x128xf32>,
    %222 = vector.extract_strided_slice %127 {offsets = [0, 23], sizes = [16, 128], strides = [1, 1]} : vector<16x152xf32> to vector<16x128xf32>
    %c752 = arith.constant 752 : index
    %c0_116 = arith.constant 0 : index
    %223 = vector.load %arg11[%c752, %c0_116] : memref<800x128xf32, #tpu.memory_space<vmem>>, vector<16x128xf32>
    tpu.vector_store %arg11[%c752, %c0_116], %222 {strides = array<i32>} : memref<800x128xf32, #tpu.memory_space<vmem>>, vector<16x128xf32>,
    %224 = vector.extract_strided_slice %4 {offsets = [0, 24], sizes = [16, 128], strides = [1, 1]} : vector<16x152xf32> to vector<16x128xf32>
    %c768 = arith.constant 768 : index
    %c0_117 = arith.constant 0 : index
    %225 = vector.load %arg11[%c768, %c0_117] : memref<800x128xf32, #tpu.memory_space<vmem>>, vector<16x128xf32>
    tpu.vector_store %arg11[%c768, %c0_117], %224 {strides = array<i32>} : memref<800x128xf32, #tpu.memory_space<vmem>>, vector<16x128xf32>,
    %226 = vector.extract_strided_slice %127 {offsets = [0, 24], sizes = [16, 128], strides = [1, 1]} : vector<16x152xf32> to vector<16x128xf32>
    %c784 = arith.constant 784 : index
    %c0_118 = arith.constant 0 : index
    %227 = vector.load %arg11[%c784, %c0_118] : memref<800x128xf32, #tpu.memory_space<vmem>>, vector<16x128xf32>
    tpu.vector_store %arg11[%c784, %c0_118], %226 {strides = array<i32>} : memref<800x128xf32, #tpu.memory_space<vmem>>, vector<16x128xf32>,
    %c0_119 = arith.constant 0 : index
    %c0_120 = arith.constant 0 : index
    %228 = vector.load %arg5[%c0_119, %c0_120] : memref<32x800xf32, #tpu.memory_space<vmem>>, vector<32x800xf32>
    %c0_121 = arith.constant 0 : index
    %c0_122 = arith.constant 0 : index
    %229 = vector.load %arg11[%c0_121, %c0_122] : memref<800x128xf32, #tpu.memory_space<vmem>>, vector<800x128xf32>
    %cst_123 = arith.constant dense<0.000000e+00> : vector<32x128xf32>
    %230 = tpu.matmul %228, %229, %cst_123 {dimension_numbers = #tpu.dot_dimension_numbers<[1], [0], [0], [1], [0, 0, 1, 1], [], []>} : vector<32x800xf32>, vector<800x128xf32>, vector<32x128xf32> -> vector<32x128xf32>
    %c0_124 = arith.constant 0 : index
    %c0_125 = arith.constant 0 : index
    %231 = vector.load %arg6[%c0_124, %c0_125] : memref<32x1xf32, #tpu.memory_space<vmem>>, vector<32x1xf32>
    %232 = vector.broadcast %231 : vector<32x1xf32> to vector<32x128xf32>
    %233 = arith.mulf %230, %232 : vector<32x128xf32>
    %c0_126 = arith.constant 0 : index
    %c0_127 = arith.constant 0 : index
    %234 = vector.load %arg7[%c0_126, %c0_127] : memref<32x1xf32, #tpu.memory_space<vmem>>, vector<32x1xf32>
    %235 = vector.broadcast %234 : vector<32x1xf32> to vector<32x128xf32>
    %236 = arith.addf %233, %235 : vector<32x128xf32>
    %cst_128 = arith.constant 0.707106769 : f32
    %237 = vector.broadcast %cst_128 : f32 to vector<32x128xf32>
    %238 = arith.mulf %236, %237 : vector<32x128xf32>
    %239 = math.absf %238 : vector<32x128xf32>
    %cst_129 = arith.constant 0.327591091 : f32
    %240 = vector.broadcast %cst_129 : f32 to vector<32x128xf32>
    %241 = arith.mulf %240, %239 : vector<32x128xf32>
    %cst_130 = arith.constant 1.000000e+00 : f32
    %242 = vector.broadcast %cst_130 : f32 to vector<32x128xf32>
    %243 = arith.addf %242, %241 : vector<32x128xf32>
    %cst_131 = arith.constant 1.000000e+00 : f32
    %244 = vector.broadcast %cst_131 : f32 to vector<32x128xf32>
    %245 = arith.divf %244, %243 : vector<32x128xf32>
    %cst_132 = arith.constant 1.06140542 : f32
    %246 = vector.broadcast %cst_132 : f32 to vector<32x128xf32>
    %247 = arith.mulf %245, %246 : vector<32x128xf32>
    %cst_133 = arith.constant -1.45315206 : f32
    %248 = vector.broadcast %cst_133 : f32 to vector<32x128xf32>
    %249 = arith.addf %248, %247 : vector<32x128xf32>
    %250 = arith.mulf %245, %249 : vector<32x128xf32>
    %cst_134 = arith.constant 1.42141378 : f32
    %251 = vector.broadcast %cst_134 : f32 to vector<32x128xf32>
    %252 = arith.addf %251, %250 : vector<32x128xf32>
    %253 = arith.mulf %245, %252 : vector<32x128xf32>
    %cst_135 = arith.constant -0.284496725 : f32
    %254 = vector.broadcast %cst_135 : f32 to vector<32x128xf32>
    %255 = arith.addf %254, %253 : vector<32x128xf32>
    %256 = arith.mulf %245, %255 : vector<32x128xf32>
    %cst_136 = arith.constant 0.254829586 : f32
    %257 = vector.broadcast %cst_136 : f32 to vector<32x128xf32>
    %258 = arith.addf %257, %256 : vector<32x128xf32>
    %259 = arith.mulf %245, %258 : vector<32x128xf32>
    %cst_137 = arith.constant 0.000000e+00 : f32
    %260 = vector.broadcast %cst_137 : f32 to vector<32x128xf32>
    %261 = arith.subf %260, %239 : vector<32x128xf32>
    %262 = arith.mulf %261, %239 : vector<32x128xf32>
    %263 = math.exp %262 : vector<32x128xf32>
    %264 = arith.mulf %259, %263 : vector<32x128xf32>
    %cst_138 = arith.constant 1.000000e+00 : f32
    %265 = vector.broadcast %cst_138 : f32 to vector<32x128xf32>
    %266 = arith.subf %265, %264 : vector<32x128xf32>
    %cst_139 = arith.constant 0.000000e+00 : f32
    %267 = vector.broadcast %cst_139 : f32 to vector<32x128xf32>
    %268 = arith.cmpf oge, %238, %267 : vector<32x128xf32>
    %cst_140 = arith.constant 0.000000e+00 : f32
    %269 = vector.broadcast %cst_140 : f32 to vector<32x128xf32>
    %270 = arith.subf %269, %266 : vector<32x128xf32>
    %271 = arith.select %268, %266, %270 : vector<32x128xi1>, vector<32x128xf32>
    %cst_141 = arith.constant 5.000000e-01 : f32
    %272 = vector.broadcast %cst_141 : f32 to vector<32x128xf32>
    %273 = arith.mulf %272, %236 : vector<32x128xf32>
    %cst_142 = arith.constant 1.000000e+00 : f32
    %274 = vector.broadcast %cst_142 : f32 to vector<32x128xf32>
    %275 = arith.addf %274, %271 : vector<32x128xf32>
    %276 = arith.mulf %273, %275 : vector<32x128xf32>
    %c0_143 = arith.constant 0 : index
    %c0_144 = arith.constant 0 : index
    %277 = vector.load %arg8[%c0_143, %c0_144] : memref<128x32xf32, #tpu.memory_space<vmem>>, vector<128x32xf32>
    %cst_145 = arith.constant dense<0.000000e+00> : vector<32x32xf32>
    %278 = tpu.matmul %276, %277, %cst_145 {dimension_numbers = #tpu.dot_dimension_numbers<[1], [0], [0], [1], [0, 0, 1, 1], [], []>} : vector<32x128xf32>, vector<128x32xf32>, vector<32x32xf32> -> vector<32x32xf32>
    %c0_146 = arith.constant 0 : index
    %c0_147 = arith.constant 0 : index
    %c0_148 = arith.constant 0 : index
    %279 = vector.load %arg9[%c0_146, %c0_147, %c0_148] : memref<1x32x32xf32, #tpu.memory_space<vmem>>, vector<1x32x32xf32>
    %280 = vector.shape_cast %279 : vector<1x32x32xf32> to vector<32x32xf32>
    %281 = vector.shape_cast %278 : vector<32x32xf32> to vector<1x32x32xf32>
    tpu.vector_store %arg9[%c0_146, %c0_147, %c0_148], %281 {strides = array<i32>} : memref<1x32x32xf32, #tpu.memory_space<vmem>>, vector<1x32x32xf32>,
    return
  }
  func.func @transform_0(%arg0: i32, %arg1: i32) -> (i32, i32, i32, i32) {
    %c0_i32 = arith.constant 0 : i32
    %c0_i32_0 = arith.constant 0 : i32
    %c0_i32_1 = arith.constant 0 : i32
    return %arg0, %arg1, %c0_i32, %c0_i32_0 : i32, i32, i32, i32
  }
  func.func @transform_1(%arg0: i32, %arg1: i32) -> (i32, i32) {
    %c0_i32 = arith.constant 0 : i32
    %c0_i32_0 = arith.constant 0 : i32
    %c0_i32_1 = arith.constant 0 : i32
    return %c0_i32, %c0_i32_0 : i32, i32
  }
  func.func @transform_2(%arg0: i32, %arg1: i32) -> (i32, i32) {
    %c0_i32 = arith.constant 0 : i32
    %c0_i32_0 = arith.constant 0 : i32
    %c0_i32_1 = arith.constant 0 : i32
    return %c0_i32, %c0_i32_0 : i32, i32
  }
  func.func @transform_3(%arg0: i32, %arg1: i32) -> (i32, i32) {
    %c0_i32 = arith.constant 0 : i32
    %c0_i32_0 = arith.constant 0 : i32
    %c0_i32_1 = arith.constant 0 : i32
    return %c0_i32, %c0_i32_0 : i32, i32
  }
  func.func @transform_4(%arg0: i32, %arg1: i32) -> (i32, i32) {
    %c0_i32 = arith.constant 0 : i32
    %c0_i32_0 = arith.constant 0 : i32
    %c0_i32_1 = arith.constant 0 : i32
    return %c0_i32, %c0_i32_0 : i32, i32
  }
  func.func @transform_5(%arg0: i32, %arg1: i32) -> (i32, i32) {
    %c0_i32 = arith.constant 0 : i32
    %c0_i32_0 = arith.constant 0 : i32
    %c0_i32_1 = arith.constant 0 : i32
    return %c0_i32, %c0_i32_0 : i32, i32
  }
  func.func @transform_6(%arg0: i32, %arg1: i32) -> (i32, i32) {
    %c0_i32 = arith.constant 0 : i32
    %c0_i32_0 = arith.constant 0 : i32
    %c0_i32_1 = arith.constant 0 : i32
    return %c0_i32, %c0_i32_0 : i32, i32
  }
  func.func @transform_7(%arg0: i32, %arg1: i32) -> (i32, i32, i32) {
    %c0_i32 = arith.constant 0 : i32
    %c0_i32_0 = arith.constant 0 : i32
    return %arg0, %c0_i32, %arg1 : i32, i32, i32
  }
}

</mosaic_0001>

<llo_original>
// kernel: tpu_custom_call.1
$region0: #{tpu_custom_call.1}
  #allocation0 [shape = 'u32[]', space=smem, size = 0x4, offset = 0x4, fixed_abs, tag = 'smem constant byte address 0x4 - core index']
  #allocation1 [shape = 'u32[72,128]{1,0:T(1,128)}', space=vmem, size = 0x9000, scoped, tag = 'internal scratch']
  #allocation2 [shape = 'f32[51,152]{1,0:T(8,128)}', space=vmem, size = 0xe000, scoped, tag = 'scratch operand']
  #allocation3 [shape = 'f32[800,128]{1,0:T(8,128)}', space=vmem, size = 0x64000, scoped, tag = 'scratch operand']
  %s0 = inlined_call_operand.vmem [shape: f32[2,1,8,202], index: 0, kind: input, shape index: {}]
  %s1 = inlined_call_operand.vmem [shape: f32[16,8], index: 1, kind: input, shape index: {}]
  %s2 = inlined_call_operand.vmem [shape: f32[16,51], index: 2, kind: input, shape index: {}]
  %s3 = inlined_call_operand.hbm [shape: f32[32,800], index: 3, kind: input, shape index: {}]
  %s4 = inlined_call_operand.vmem [shape: f32[32,1], index: 4, kind: input, shape index: {}]
  %s5 = inlined_call_operand.vmem [shape: f32[32,1], index: 5, kind: input, shape index: {}]
  %s6 = inlined_call_operand.vmem [shape: f32[128,32], index: 6, kind: input, shape index: {}]
  %s7 = inlined_call_operand.hbm [shape: f32[2,32,32], index: 7, kind: output, shape index: {}]
  %s8 = sld [smem:[#allocation0]]
  $region65: #{tpu_custom_call.1} parent=0
    _
  %s10 = ssub.s32 1, %s8
  %s11 = scalar_select 0, %s10, %s8
  $region1: #{tpu_custom_call.1} parent=0
    #allocation4 [shape = 'u8[114688]{0}', space=vmem, size = 0x1c000, scoped, tag = 'input window, operand 3, single buffered']
    #allocation5 [shape = 's32[2]{0}', space=sflag, size = 0x8, scoped, tag = 'scoped memory for tpu_custom_call.1']
    #allocation6 [shape = 's32[2]{0}', space=sflag, size = 0x8, scoped, tag = 'scoped memory for tpu_custom_call.1']
    #allocation7 [shape = 'u8[32768]{0}', space=vmem, size = 0x8000, scoped, tag = 'output window, operand 0']
    %12 = vsyncpa [#allocation5], 0
    %13 = vsyncpa [#allocation6], 0
    %s14 = scalar_lea.sflag [#allocation6], 1
    %15 = vsyncpa %s14, 0
    loop: start=0, step=1, limit=4
    $region2: #{tpu_custom_call.1} parent=1 // loop_pre_header
      _
    $region3: #{tpu_custom_call.1} parent=1 // loop_header
      %s17 = sphi 0, %s21
      %p18 = scmp.ge.s32.totalorder %s17, 4
      %s24 = sphi 0, %s36
      %s25 = sphi 0, %s32
      %s26 = sphi 0, %s24
      %s27 = sphi 0, %s25
      %s28 = sphi 0, %s26
      %s29 = sphi 0, %s27
      %s41 = sphi 0, %s43
      %s44 = sphi 0, %s41
      %s45 = sphi 0, %s44
      %s61 = sphi 0, %s45
      %s65 = sphi 0, %s65
      %s67 = sphi 0, %s65
      %s68 = sphi 0, %s67
      %s82 = sphi 0, %s68
      %s86 = sphi 0, %s86
      %s88 = sphi 0, %s86
      %s89 = sphi 0, %s88
      %s103 = sphi 0, %s89
      %s107 = sphi 0, %s107
      %s109 = sphi 0, %s107
      %s110 = sphi 0, %s109
      %s124 = sphi 0, %s110
      %s128 = sphi 0, %s128
      %s130 = sphi 0, %s128
      %s131 = sphi 0, %s130
      %s145 = sphi 0, %s131
      %s149 = sphi 0, %s149
      %s151 = sphi 0, %s149
      %s152 = sphi 0, %s151
      %s166 = sphi 0, %s152
      %s170 = sphi 0, %s170
      %s172 = sphi 0, %s170
      %s173 = sphi 0, %s172
      %s187 = sphi 0, %s173
      %s195 = sphi 0, %s197
      %s198 = sphi 0, %s195
      %s199 = sphi 0, %s198
      %s215 = sphi 0, %s199
    $region4: #{tpu_custom_call.1} parent=1 // loop_header_branch
      %20 = sbr.rel (%p18) target = $region8
    $region5: #{tpu_custom_call.1} parent=1 // loop_body
      %s22 = ssub.s32 %s17, 1
      %s23 = ssub.s32 %s17, 2
      %s30 = sadd.s32 1, %s25
      %p31 = scmp.ge.s32.totalorder %s30, 1
      %s32 = scalar_select %p31, 0, %s30
      %s33 = sadd.s32 1, %s24
      %s34 = scalar_select %p31, %s33, %s24
      %p35 = scmp.ge.s32.totalorder %s34, 2
      %s36 = scalar_select %p35, 0, %s34
      %s37 = ssub.s32 %s24, %s36
      %s38 = ssub.s32 %s25, %s32
      %s39 = sor.u32 %s37, %s38
      %p40 = scmp.eq.s32.totalorder %s39, 0
      %s42 = sadd.s32 %s41, 1
      %s43 = scalar_select %p40, %s41, %s42
      %p46 = pneg %p40
      %p47 = scmp.eq.s32.totalorder %s17, 1
      %p48 = por %p46, %p47
      %p49 = scmp.ne.s32.totalorder %s41, %s44
      %p50 = scmp.eq.s32.totalorder %s17, 0
      %p51 = por %p49, %p50
      %p52 = scmp.ne.s32.totalorder %s41, %s44
      %p53 = scmp.eq.s32.totalorder %s22, 1
      %p54 = por %p52, %p53
      %p55 = scmp.ne.s32.totalorder %s44, %s45
      %p56 = scmp.eq.s32.totalorder %s22, 0
      %p57 = por %p55, %p56
      %p58 = scmp.ne.s32.totalorder %s44, %s45
      %p59 = scmp.eq.s32.totalorder %s23, 1
      %p60 = por %p58, %p59
      %p62 = scmp.ne.s32.totalorder %s45, %s61
      %p63 = scmp.eq.s32.totalorder %s23, 0
      %p64 = por %p62, %p63
      %s66 = sadd.s32 %s65, 1
      %p69 = scmp.eq.s32.totalorder %s17, 1
      %p70 = scmp.ne.s32.totalorder %s65, %s67
      %p71 = scmp.eq.s32.totalorder %s17, 0
      %p72 = por %p70, %p71
      %p73 = scmp.ne.s32.totalorder %s65, %s67
      %p74 = scmp.eq.s32.totalorder %s22, 1
      %p75 = por %p73, %p74
      %p76 = scmp.ne.s32.totalorder %s67, %s68
      %p77 = scmp.eq.s32.totalorder %s22, 0
      %p78 = por %p76, %p77
      %p79 = scmp.ne.s32.totalorder %s67, %s68
      %p80 = scmp.eq.s32.totalorder %s23, 1
      %p81 = por %p79, %p80
      %p83 = scmp.ne.s32.totalorder %s68, %s82
      %p84 = scmp.eq.s32.totalorder %s23, 0
      %p85 = por %p83, %p84
      %s87 = sadd.s32 %s86, 1
      %p90 = scmp.eq.s32.totalorder %s17, 1
      %p91 = scmp.ne.s32.totalorder %s86, %s88
      %p92 = scmp.eq.s32.totalorder %s17, 0
      %p93 = por %p91, %p92
      %p94 = scmp.ne.s32.totalorder %s86, %s88
      %p95 = scmp.eq.s32.totalorder %s22, 1
      %p96 = por %p94, %p95
      %p97 = scmp.ne.s32.totalorder %s88, %s89
      %p98 = scmp.eq.s32.totalorder %s22, 0
      %p99 = por %p97, %p98
      %p100 = scmp.ne.s32.totalorder %s88, %s89
      %p101 = scmp.eq.s32.totalorder %s23, 1
      %p102 = por %p100, %p101
      %p104 = scmp.ne.s32.totalorder %s89, %s103
      %p105 = scmp.eq.s32.totalorder %s23, 0
      %p106 = por %p104, %p105
      %s108 = sadd.s32 %s107, 1
      %p111 = scmp.eq.s32.totalorder %s17, 1
      %p112 = scmp.ne.s32.totalorder %s107, %s109
      %p113 = scmp.eq.s32.totalorder %s17, 0
      %p114 = por %p112, %p113
      %p115 = scmp.ne.s32.totalorder %s107, %s109
      %p116 = scmp.eq.s32.totalorder %s22, 1
      %p117 = por %p115, %p116
      %p118 = scmp.ne.s32.totalorder %s109, %s110
      %p119 = scmp.eq.s32.totalorder %s22, 0
      %p120 = por %p118, %p119
      %p121 = scmp.ne.s32.totalorder %s109, %s110
      %p122 = scmp.eq.s32.totalorder %s23, 1
      %p123 = por %p121, %p122
      %p125 = scmp.ne.s32.totalorder %s110, %s124
      %p126 = scmp.eq.s32.totalorder %s23, 0
      %p127 = por %p125, %p126
      %s129 = sadd.s32 %s128, 1
      %p132 = scmp.eq.s32.totalorder %s17, 1
      %p133 = scmp.ne.s32.totalorder %s128, %s130
      %p134 = scmp.eq.s32.totalorder %s17, 0
      %p135 = por %p133, %p134
      %p136 = scmp.ne.s32.totalorder %s128, %s130
      %p137 = scmp.eq.s32.totalorder %s22, 1
      %p138 = por %p136, %p137
      %p139 = scmp.ne.s32.totalorder %s130, %s131
      %p140 = scmp.eq.s32.totalorder %s22, 0
      %p141 = por %p139, %p140
      %p142 = scmp.ne.s32.totalorder %s130, %s131
      %p143 = scmp.eq.s32.totalorder %s23, 1
      %p144 = por %p142, %p143
      %p146 = scmp.ne.s32.totalorder %s131, %s145
      %p147 = scmp.eq.s32.totalorder %s23, 0
      %p148 = por %p146, %p147
      %s150 = sadd.s32 %s149, 1
      %p153 = scmp.eq.s32.totalorder %s17, 1
      %p154 = scmp.ne.s32.totalorder %s149, %s151
      %p155 = scmp.eq.s32.totalorder %s17, 0
      %p156 = por %p154, %p155
      %p157 = scmp.ne.s32.totalorder %s149, %s151
      %p158 = scmp.eq.s32.totalorder %s22, 1
      %p159 = por %p157, %p158
      %p160 = scmp.ne.s32.totalorder %s151, %s152
      %p161 = scmp.eq.s32.totalorder %s22, 0
      %p162 = por %p160, %p161
      %p163 = scmp.ne.s32.totalorder %s151, %s152
      %p164 = scmp.eq.s32.totalorder %s23, 1
      %p165 = por %p163, %p164
      %p167 = scmp.ne.s32.totalorder %s152, %s166
      %p168 = scmp.eq.s32.totalorder %s23, 0
      %p169 = por %p167, %p168
      %s171 = sadd.s32 %s170, 1
      %p174 = scmp.eq.s32.totalorder %s17, 1
      %p175 = scmp.ne.s32.totalorder %s170, %s172
      %p176 = scmp.eq.s32.totalorder %s17, 0
      %p177 = por %p175, %p176
      %p178 = scmp.ne.s32.totalorder %s170, %s172
      %p179 = scmp.eq.s32.totalorder %s22, 1
      %p180 = por %p178, %p179
      %p181 = scmp.ne.s32.totalorder %s172, %s173
      %p182 = scmp.eq.s32.totalorder %s22, 0
      %p183 = por %p181, %p182
      %p184 = scmp.ne.s32.totalorder %s172, %s173
      %p185 = scmp.eq.s32.totalorder %s23, 1
      %p186 = por %p184, %p185
      %p188 = scmp.ne.s32.totalorder %s173, %s187
      %p189 = scmp.eq.s32.totalorder %s23, 0
      %p190 = por %p188, %p189
      %s191 = ssub.s32 %s24, %s36
      %s192 = ssub.s32 %s25, %s32
      %s193 = sor.u32 %s191, %s192
      %p194 = scmp.eq.s32.totalorder %s193, 0
      %s196 = sadd.s32 %s195, 1
      %s197 = scalar_select %p194, %s195, %s196
      %p200 = pneg %p194
      %p201 = scmp.eq.s32.totalorder %s17, 1
      %p202 = por %p200, %p201
      %p203 = scmp.ne.s32.totalorder %s195, %s198
      %p204 = scmp.eq.s32.totalorder %s17, 0
      %p205 = por %p203, %p204
      %p206 = scmp.ne.s32.totalorder %s195, %s198
      %p207 = scmp.eq.s32.totalorder %s22, 1
      %p208 = por %p206, %p207
      %p209 = scmp.ne.s32.totalorder %s198, %s199
      %p210 = scmp.eq.s32.totalorder %s22, 0
      %p211 = por %p209, %p210
      %p212 = scmp.ne.s32.totalorder %s198, %s199
      %p213 = scmp.eq.s32.totalorder %s23, 1
      %p214 = por %p212, %p213
      %p216 = scmp.ne.s32.totalorder %s199, %s215
      %p217 = scmp.eq.s32.totalorder %s23, 0
      %p218 = por %p216, %p217
      %p219 = scmp.le.s32.totalorder 1, %s17
      %p220 = scmp.lt.s32.totalorder %s17, 3
      %p221 = pnand %p219, %p220
      %p222 = pneg %p221
      // Predicated region
      $region9: #{tpu_custom_call.1} parent=5 // pred_check
        _
      $region10: #{tpu_custom_call.1} parent=5 // pred_check_branch
        %224 = sbr.rel (%p221) target = $region12
      $region11: #{tpu_custom_call.1} parent=5 // pred_region
        %s225 = ssub.s32 %s17, 1
        // Predicated region
        $region13: #{tpu_custom_call.1} parent=11 // pred_check
          %p226 = pneg %p78
        $region14: #{tpu_custom_call.1} parent=11 // pred_check_branch
          %228 = sbr.rel (%p226) target = $region16
        $region15: #{tpu_custom_call.1} parent=11 // pred_region
          _
        $region16: #{tpu_custom_call.1} parent=11 // pred_fallthru
          _
        // Predicated region
        $region17: #{tpu_custom_call.1} parent=11 // pred_check
          %p229 = pneg %p99
        $region18: #{tpu_custom_call.1} parent=11 // pred_check_branch
          %231 = sbr.rel (%p229) target = $region20
        $region19: #{tpu_custom_call.1} parent=11 // pred_region
          _
        $region20: #{tpu_custom_call.1} parent=11 // pred_fallthru
          _
        // Predicated region
        $region21: #{tpu_custom_call.1} parent=11 // pred_check
          %p232 = pneg %p120
        $region22: #{tpu_custom_call.1} parent=11 // pred_check_branch
          %234 = sbr.rel (%p232) target = $region24
        $region23: #{tpu_custom_call.1} parent=11 // pred_region
          %236 = vsyncadd [#allocation5], 0
          %s237 = sshll.u32 %s3, 4
          %s238 = int_to_ptr.hbm [resolvable:$true] %s237
          %s239 = sshll.u32 [#allocation4], 4
          %s240 = int_to_ptr.vmem [resolvable:$true] %s239
          %245 = dma.hbm_to_vmem [thread:$0]  %s238, 3584, %s240, [#allocation5], 896, 896, 56
        $region24: #{tpu_custom_call.1} parent=11 // pred_fallthru
          _
        // Predicated region
        $region25: #{tpu_custom_call.1} parent=11 // pred_check
          %p246 = pneg %p141
        $region26: #{tpu_custom_call.1} parent=11 // pred_check_branch
          %248 = sbr.rel (%p246) target = $region28
        $region27: #{tpu_custom_call.1} parent=11 // pred_region
          _
        $region28: #{tpu_custom_call.1} parent=11 // pred_fallthru
          _
        // Predicated region
        $region29: #{tpu_custom_call.1} parent=11 // pred_check
          %p249 = pneg %p162
        $region30: #{tpu_custom_call.1} parent=11 // pred_check_branch
          %251 = sbr.rel (%p249) target = $region32
        $region31: #{tpu_custom_call.1} parent=11 // pred_region
          _
        $region32: #{tpu_custom_call.1} parent=11 // pred_fallthru
          _
        // Predicated region
        $region33: #{tpu_custom_call.1} parent=11 // pred_check
          %p252 = pneg %p183
        $region34: #{tpu_custom_call.1} parent=11 // pred_check_branch
          %254 = sbr.rel (%p252) target = $region36
        $region35: #{tpu_custom_call.1} parent=11 // pred_region
          _
        $region36: #{tpu_custom_call.1} parent=11 // pred_fallthru
          _
      $region12: #{tpu_custom_call.1} parent=5 // pred_fallthru
        _
      %p255 = scmp.lt.s32.totalorder %s17, 2
      // Predicated region
      $region37: #{tpu_custom_call.1} parent=5 // pred_check
        %p256 = pneg %p255
      $region38: #{tpu_custom_call.1} parent=5 // pred_check_branch
        %258 = sbr.rel (%p256) target = $region40
      $region39: #{tpu_custom_call.1} parent=5 // pred_region
        // Predicated region
        $region41: #{tpu_custom_call.1} parent=39 // pred_check
          %p259 = pneg %p51
        $region42: #{tpu_custom_call.1} parent=39 // pred_check_branch
          %261 = sbr.rel (%p259) target = $region44
        $region43: #{tpu_custom_call.1} parent=39 // pred_region
          %p262 = scmp.lt.s32.totalorder %s24, 1
          %s263 = scalar_select %p262, %s24, 1
          %p264 = scmp.lt.s32.totalorder %s25, 0
          %s265 = scalar_select %p264, %s25, 0
          %s266 = smul.addr %s265, 2
          %s267 = smul.addr %s263, 2
          %s268 = sadd.s32 %s266, %s267
          %s269 = smul.addr %s268, 8
          %s270 = scalar_lea.vmem %s0, %s269
        $region44: #{tpu_custom_call.1} parent=39 // pred_fallthru
          _
      $region40: #{tpu_custom_call.1} parent=5 // pred_fallthru
        _
      %p271 = scmp.le.s32.totalorder 1, %s17
      %p272 = scmp.lt.s32.totalorder %s17, 3
      %p273 = pnand %p271, %p272
      %p274 = pneg %p273
      // Predicated region
      $region45: #{tpu_custom_call.1} parent=5 // pred_check
        _
      $region46: #{tpu_custom_call.1} parent=5 // pred_check_branch
        %276 = sbr.rel (%p273) target = $region48
      $region47: #{tpu_custom_call.1} parent=5 // pred_region
        %s277 = ssub.s32 %s17, 1
        // Predicated region
        $region49: #{tpu_custom_call.1} parent=47 // pred_check
          %p278 = pneg %p120
        $region50: #{tpu_custom_call.1} parent=47 // pred_check_branch
          %280 = sbr.rel (%p278) target = $region52
        $region51: #{tpu_custom_call.1} parent=47 // pred_region
          %282 = dma.done [#allocation5], 3584
        $region52: #{tpu_custom_call.1} parent=47 // pred_fallthru
          _
        %p283 = scmp.lt.s32.totalorder %s26, 1
        %s284 = scalar_select %p283, %s26, 1
        %p285 = scmp.lt.s32.totalorder %s27, 0
        %s286 = scalar_select %p285, %s27, 0
        %s287 = smul.addr %s286, 2
        %s288 = smul.addr %s284, 2
        %s289 = sadd.s32 %s287, %s288
        %s290 = smul.addr %s289, 8
        %s291 = scalar_lea.vmem %s0, %s290
        %p292 = pneg %p57
        %p293 = pneg %p54
        %p294 = pneg %p78
        %p295 = pneg %p75
        %p296 = pneg %p99
        %p297 = pneg %p96
        %p298 = pneg %p120
        %p299 = pneg %p117
        %p300 = pneg %p141
        %p301 = pneg %p138
        %p302 = pneg %p162
        %p303 = pneg %p159
        %p304 = pneg %p183
        %p305 = pneg %p180
        %p306 = pneg %p211
        %p307 = pneg %p208
        %s308 = sand.u32 %s198, 1
        %s309 = scalar_lea.sflag [#allocation6], %s308
        %s310 = sand.u32 %s198, 1
        %s311 = smul.addr %s310, 32
        %s312 = scalar_lea.vmem [#allocation7], %s311
        %p313 = scmp.lt.s32.totalorder %s26, 1
        %s314 = scalar_select %p313, %s26, 1
        %p315 = scmp.lt.s32.totalorder %s27, 0
        %s316 = scalar_select %p315, %s27, 0
        %s317 = smul.addr %s316, 2
        %s318 = smul.addr %s314, 2
        %s319 = sadd.s32 %s317, %s318
        %s320 = smul.addr %s319, 8
        %s321 = scalar_lea.vmem %s0, %s320
        %v322 = vld [vmem:[%s321] sm:$0xff]
        %v323 = vld [vmem:[%s321 + $0x8] sm:$0xff]
        %v324 = vld [vmem:[%s1] sm:$0xff]
        %v325 = vld [vmem:[%s1 + $0x8] sm:$0xff]
        %328 = vrot.lane.b32.xlu0 %v322, 103
        %v329 = vpop.permute.xlu0 %328
        %330 = vrot.lane.b32.xlu0 %v323, 103
        %v331 = vpop.permute.xlu0 %330
        %vm332 = vcmask 842752
        %v333 = vsel %vm332, %v329, %v331
        %vm336 = vcmask 64512
        %v338 = vsel %vm336, %v324, 0
        %v341 = vsel %vm336, %v325, 0
        %343 = vmatpush.msra.mxu0 0.0
        %344 = vmatpush.msra.mxu0 0.0
        %345 = vmatpush.msra.mxu0 0.0
        %346 = vmatpush.msra.mxu0 0.0
        %347 = vmatpush.msra.mxu0 0.0
        %348 = vmatpush.msra.mxu0 0.0
        %349 = vmatpush.msra.mxu0 0.0
        %350 = vmatpush.msra.mxu0 0.0
        %351 = vmatpush.msra.mxu0 0.0
        %352 = vmatpush.msra.mxu0 0.0
        %353 = vmatpush.msra.mxu0 0.0
        %354 = vmatpush.msra.mxu0 0.0
        %355 = vmatpush.msra.mxu0 0.0
        %356 = vmatpush.msra.mxu0 0.0
        %357 = vmatpush.msra.mxu0 0.0
        %358 = vmatpush.msra.mxu0 %v333
        %359 = vmatmul.f32.gmra.mxu0 %v338
        %v360 = vpop.f32.mrf.mxu0
        %v361 = vadd.f32 0.0, %v360
        %362 = vmatmul.f32.gmra.mxu0 %v341
        %v363 = vpop.f32.mrf.mxu0
        %v364 = vadd.f32 0.0, %v363
        %365 = vdwg.mxu0
        %366 = vmatpush.msra.mxu0 0.0
        %367 = vmatpush.msra.mxu0 0.0
        %368 = vmatpush.msra.mxu0 0.0
        %369 = vmatpush.msra.mxu0 0.0
        %370 = vmatpush.msra.mxu0 0.0
        %371 = vmatpush.msra.mxu0 0.0
        %372 = vmatpush.msra.mxu0 0.0
        %373 = vmatpush.msra.mxu0 0.0
        %374 = vmatpush.msra.mxu0 0.0
        %375 = vmatpush.msra.mxu0 0.0
        %376 = vmatpush.msra.mxu0 0.0
        %377 = vmatpush.msra.mxu0 0.0
        %378 = vmatpush.msra.mxu0 0.0
        %379 = vmatpush.msra.mxu0 0.0
        %380 = vmatpush.msra.mxu0 0.0
        %381 = vmatpush.msra.mxu0 %v331
        %382 = vmatmul.f32.gmra.mxu0 %v338
        %v383 = vpop.f32.mrf.mxu0
        %v384 = vadd.f32 0.0, %v383
        %385 = vmatmul.f32.gmra.mxu0 %v341
        %v386 = vpop.f32.mrf.mxu0
        %v387 = vadd.f32 0.0, %v386
        %388 = vdwg.mxu0
        %v389 = vrot.slane %v322, 4
        %v390 = vadd.f32 %v322, %v389
        %v391 = vrot.slane %v390, 2
        %v392 = vadd.f32 %v390, %v391
        %v393 = vrot.slane %v392, 1
        %v394 = vadd.f32 %v392, %v393
        %vm395 = vcmask 605184
        %v396 = vsel %vm395, %v323, 0.0
        %v397 = vrot.slane %v396, 4
        %v398 = vadd.f32 %v396, %v397
        %v399 = vrot.slane %v398, 2
        %v400 = vadd.f32 %v398, %v399
        %v401 = vrot.slane %v400, 1
        %v402 = vadd.f32 %v400, %v401
        %v403 = vmul.f32 %v394, 0.125
        %v404 = vmul.f32 %v402, 0.125
        %v407 = vrot.slane %v404, 7
        %vm408 = vcmask 1040384
        %v409 = vsel %vm408, %v403, %v407
        %v411 = vlaneseq
        %vm412 = vcmp.ge.s32.totalorder %v411, 0
        %vm413 = vcmp.lt.s32.totalorder %v411, 152
        %vm414 = vmand %vm412, %vm413
        %415 = vst.msk [vmem:[#allocation2] ss:$8 sm:$0x3] %vm414, %v409
        %416 = vst.msk [vmem:[#allocation2] ss:$8 sm:$0x0] %vm414, %v409
        %417 = vrot.lane.b32.xlu0 %v409, 127
        %v418 = vpop.permute.xlu0 %417
        %v419 = vrot.slane %v418, 1
        %vm420 = vcmask 1039360
        %v421 = vsel %vm420, %v418, %v419
        %s423 = scalar_lea.vmem [#allocation2], 1
        %424 = vst.msk [vmem:[%s423] ss:$8 sm:$0x3] %vm414, %v421
        %425 = vst.msk [vmem:[%s423] ss:$8 sm:$0x0] %vm414, %v421
        %426 = vrot.lane.b32.xlu0 %v409, 126
        %v427 = vpop.permute.xlu0 %426
        %v428 = vrot.slane %v427, 1
        %vm429 = vcmask 1031168
        %v430 = vsel %vm429, %v427, %v428
        %s432 = scalar_lea.vmem [#allocation2], 2
        %433 = vst.msk [vmem:[%s432] ss:$8 sm:$0x3] %vm414, %v430
        %434 = vst.msk [vmem:[%s432] ss:$8 sm:$0x0] %vm414, %v430
        %435 = vrot.lane.b32.xlu0 %v409, 125
        %v436 = vpop.permute.xlu0 %435
        %v437 = vrot.slane %v436, 1
        %vm438 = vcmask 1022976
        %v439 = vsel %vm438, %v436, %v437
        %s441 = scalar_lea.vmem [#allocation2], 3
        %442 = vst.msk [vmem:[%s441] ss:$8 sm:$0x3] %vm414, %v439
        %443 = vst.msk [vmem:[%s441] ss:$8 sm:$0x0] %vm414, %v439
        %444 = vrot.lane.b32.xlu0 %v409, 124
        %v445 = vpop.permute.xlu0 %444
        %v446 = vrot.slane %v445, 1
        %vm447 = vcmask 1014784
        %v448 = vsel %vm447, %v445, %v446
        %s450 = scalar_lea.vmem [#allocation2], 4
        %451 = vst.msk [vmem:[%s450] ss:$8 sm:$0x3] %vm414, %v448
        %452 = vst.msk [vmem:[%s450] ss:$8 sm:$0x0] %vm414, %v448
        %453 = vrot.lane.b32.xlu0 %v409, 123
        %v454 = vpop.permute.xlu0 %453
        %v455 = vrot.slane %v454, 1
        %vm456 = vcmask 1006592
        %v457 = vsel %vm456, %v454, %v455
        %s459 = scalar_lea.vmem [#allocation2], 5
        %460 = vst.msk [vmem:[%s459] ss:$8 sm:$0x3] %vm414, %v457
        %461 = vst.msk [vmem:[%s459] ss:$8 sm:$0x0] %vm414, %v457
        %462 = vrot.lane.b32.xlu0 %v409, 122
        %v463 = vpop.permute.xlu0 %462
        %v464 = vrot.slane %v463, 1
        %vm465 = vcmask 998400
        %v466 = vsel %vm465, %v463, %v464
        %s468 = scalar_lea.vmem [#allocation2], 6
        %469 = vst.msk [vmem:[%s468] ss:$8 sm:$0x3] %vm414, %v466
        %470 = vst.msk [vmem:[%s468] ss:$8 sm:$0x0] %vm414, %v466
        %471 = vrot.lane.b32.xlu0 %v409, 121
        %v472 = vpop.permute.xlu0 %471
        %v473 = vrot.slane %v472, 1
        %vm474 = vcmask 990208
        %v475 = vsel %vm474, %v472, %v473
        %s477 = scalar_lea.vmem [#allocation2], 7
        %478 = vst.msk [vmem:[%s477] ss:$8 sm:$0x3] %vm414, %v475
        %479 = vst.msk [vmem:[%s477] ss:$8 sm:$0x0] %vm414, %v475
        %480 = vrot.lane.b32.xlu0 %v409, 120
        %v481 = vpop.permute.xlu0 %480
        %v482 = vrot.slane %v481, 1
        %vm483 = vcmask 982016
        %v484 = vsel %vm483, %v481, %v482
        %s486 = scalar_lea.vmem [#allocation2], 16
        %487 = vst.msk [vmem:[%s486] ss:$8 sm:$0x3] %vm414, %v484
        %488 = vst.msk [vmem:[%s486] ss:$8 sm:$0x0] %vm414, %v484
        %489 = vrot.lane.b32.xlu0 %v409, 119
        %v490 = vpop.permute.xlu0 %489
        %v491 = vrot.slane %v490, 1
        %vm492 = vcmask 973824
        %v493 = vsel %vm492, %v490, %v491
        %s495 = scalar_lea.vmem [#allocation2], 17
        %496 = vst.msk [vmem:[%s495] ss:$8 sm:$0x3] %vm414, %v493
        %497 = vst.msk [vmem:[%s495] ss:$8 sm:$0x0] %vm414, %v493
        %498 = vrot.lane.b32.xlu0 %v409, 118
        %v499 = vpop.permute.xlu0 %498
        %v500 = vrot.slane %v499, 1
        %vm501 = vcmask 965632
        %v502 = vsel %vm501, %v499, %v500
        %s504 = scalar_lea.vmem [#allocation2], 18
        %505 = vst.msk [vmem:[%s504] ss:$8 sm:$0x3] %vm414, %v502
        %506 = vst.msk [vmem:[%s504] ss:$8 sm:$0x0] %vm414, %v502
        %507 = vrot.lane.b32.xlu0 %v409, 117
        %v508 = vpop.permute.xlu0 %507
        %v509 = vrot.slane %v508, 1
        %vm510 = vcmask 957440
        %v511 = vsel %vm510, %v508, %v509
        %s513 = scalar_lea.vmem [#allocation2], 19
        %514 = vst.msk [vmem:[%s513] ss:$8 sm:$0x3] %vm414, %v511
        %515 = vst.msk [vmem:[%s513] ss:$8 sm:$0x0] %vm414, %v511
        %516 = vrot.lane.b32.xlu0 %v409, 116
        %v517 = vpop.permute.xlu0 %516
        %v518 = vrot.slane %v517, 1
        %vm519 = vcmask 949248
        %v520 = vsel %vm519, %v517, %v518
        %s522 = scalar_lea.vmem [#allocation2], 20
        %523 = vst.msk [vmem:[%s522] ss:$8 sm:$0x3] %vm414, %v520
        %524 = vst.msk [vmem:[%s522] ss:$8 sm:$0x0] %vm414, %v520
        %525 = vrot.lane.b32.xlu0 %v409, 115
        %v526 = vpop.permute.xlu0 %525
        %v527 = vrot.slane %v526, 1
        %vm528 = vcmask 941056
        %v529 = vsel %vm528, %v526, %v527
        %s531 = scalar_lea.vmem [#allocation2], 21
        %532 = vst.msk [vmem:[%s531] ss:$8 sm:$0x3] %vm414, %v529
        %533 = vst.msk [vmem:[%s531] ss:$8 sm:$0x0] %vm414, %v529
        %534 = vrot.lane.b32.xlu0 %v409, 114
        %v535 = vpop.permute.xlu0 %534
        %v536 = vrot.slane %v535, 1
        %vm537 = vcmask 932864
        %v538 = vsel %vm537, %v535, %v536
        %s540 = scalar_lea.vmem [#allocation2], 22
        %541 = vst.msk [vmem:[%s540] ss:$8 sm:$0x3] %vm414, %v538
        %542 = vst.msk [vmem:[%s540] ss:$8 sm:$0x0] %vm414, %v538
        %543 = vrot.lane.b32.xlu0 %v409, 113
        %v544 = vpop.permute.xlu0 %543
        %v545 = vrot.slane %v544, 1
        %vm546 = vcmask 924672
        %v547 = vsel %vm546, %v544, %v545
        %s549 = scalar_lea.vmem [#allocation2], 23
        %550 = vst.msk [vmem:[%s549] ss:$8 sm:$0x3] %vm414, %v547
        %551 = vst.msk [vmem:[%s549] ss:$8 sm:$0x0] %vm414, %v547
        %552 = vrot.lane.b32.xlu0 %v409, 112
        %v553 = vpop.permute.xlu0 %552
        %v554 = vrot.slane %v553, 1
        %vm555 = vcmask 916480
        %v556 = vsel %vm555, %v553, %v554
        %s558 = scalar_lea.vmem [#allocation2], 32
        %559 = vst.msk [vmem:[%s558] ss:$8 sm:$0x3] %vm414, %v556
        %560 = vst.msk [vmem:[%s558] ss:$8 sm:$0x0] %vm414, %v556
        %561 = vrot.lane.b32.xlu0 %v409, 111
        %v562 = vpop.permute.xlu0 %561
        %v563 = vrot.slane %v562, 1
        %vm564 = vcmask 908288
        %v565 = vsel %vm564, %v562, %v563
        %s567 = scalar_lea.vmem [#allocation2], 33
        %568 = vst.msk [vmem:[%s567] ss:$8 sm:$0x3] %vm414, %v565
        %569 = vst.msk [vmem:[%s567] ss:$8 sm:$0x0] %vm414, %v565
        %570 = vrot.lane.b32.xlu0 %v409, 110
        %v571 = vpop.permute.xlu0 %570
        %v572 = vrot.slane %v571, 1
        %vm573 = vcmask 900096
        %v574 = vsel %vm573, %v571, %v572
        %s576 = scalar_lea.vmem [#allocation2], 34
        %577 = vst.msk [vmem:[%s576] ss:$8 sm:$0x3] %vm414, %v574
        %578 = vst.msk [vmem:[%s576] ss:$8 sm:$0x0] %vm414, %v574
        %579 = vrot.lane.b32.xlu0 %v409, 109
        %v580 = vpop.permute.xlu0 %579
        %v581 = vrot.slane %v580, 1
        %vm582 = vcmask 891904
        %v583 = vsel %vm582, %v580, %v581
        %s585 = scalar_lea.vmem [#allocation2], 35
        %586 = vst.msk [vmem:[%s585] ss:$8 sm:$0x3] %vm414, %v583
        %587 = vst.msk [vmem:[%s585] ss:$8 sm:$0x0] %vm414, %v583
        %588 = vrot.lane.b32.xlu0 %v409, 108
        %v589 = vpop.permute.xlu0 %588
        %v590 = vrot.slane %v589, 1
        %vm591 = vcmask 883712
        %v592 = vsel %vm591, %v589, %v590
        %s594 = scalar_lea.vmem [#allocation2], 36
        %595 = vst.msk [vmem:[%s594] ss:$8 sm:$0x3] %vm414, %v592
        %596 = vst.msk [vmem:[%s594] ss:$8 sm:$0x0] %vm414, %v592
        %597 = vrot.lane.b32.xlu0 %v409, 107
        %v598 = vpop.permute.xlu0 %597
        %v599 = vrot.slane %v598, 1
        %vm600 = vcmask 875520
        %v601 = vsel %vm600, %v598, %v599
        %s603 = scalar_lea.vmem [#allocation2], 37
        %604 = vst.msk [vmem:[%s603] ss:$8 sm:$0x3] %vm414, %v601
        %605 = vst.msk [vmem:[%s603] ss:$8 sm:$0x0] %vm414, %v601
        %606 = vrot.lane.b32.xlu0 %v409, 106
        %v607 = vpop.permute.xlu0 %606
        %v608 = vrot.slane %v607, 1
        %vm609 = vcmask 867328
        %v610 = vsel %vm609, %v607, %v608
        %s612 = scalar_lea.vmem [#allocation2], 38
        %613 = vst.msk [vmem:[%s612] ss:$8 sm:$0x3] %vm414, %v610
        %614 = vst.msk [vmem:[%s612] ss:$8 sm:$0x0] %vm414, %v610
        %615 = vrot.lane.b32.xlu0 %v409, 105
        %v616 = vpop.permute.xlu0 %615
        %v617 = vrot.slane %v616, 1
        %vm618 = vcmask 859136
        %v619 = vsel %vm618, %v616, %v617
        %s621 = scalar_lea.vmem [#allocation2], 39
        %622 = vst.msk [vmem:[%s621] ss:$8 sm:$0x3] %vm414, %v619
        %623 = vst.msk [vmem:[%s621] ss:$8 sm:$0x0] %vm414, %v619
        %624 = vrot.lane.b32.xlu0 %v409, 104
        %v625 = vpop.permute.xlu0 %624
        %v626 = vrot.slane %v625, 1
        %vm627 = vcmask 850944
        %v628 = vsel %vm627, %v625, %v626
        %s630 = scalar_lea.vmem [#allocation2], 48
        %631 = vst.msk [vmem:[%s630] ss:$8 sm:$0x3] %vm414, %v628
        %632 = vst.msk [vmem:[%s630] ss:$8 sm:$0x0] %vm414, %v628
        %633 = vrot.lane.b32.xlu0 %v409, 103
        %v634 = vpop.permute.xlu0 %633
        %v635 = vrot.slane %v634, 1
        %v636 = vsel %vm332, %v634, %v635
        %s638 = scalar_lea.vmem [#allocation2], 49
        %639 = vst.msk [vmem:[%s638] ss:$8 sm:$0x3] %vm414, %v636
        %640 = vst.msk [vmem:[%s638] ss:$8 sm:$0x0] %vm414, %v636
        %641 = vrot.lane.b32.xlu0 %v409, 102
        %v642 = vpop.permute.xlu0 %641
        %v643 = vrot.slane %v642, 1
        %vm644 = vcmask 834560
        %v645 = vsel %vm644, %v642, %v643
        %s647 = scalar_lea.vmem [#allocation2], 50
        %648 = vst.msk [vmem:[%s647] ss:$8 sm:$0x3] %vm414, %v645
        %649 = vst.msk [vmem:[%s647] ss:$8 sm:$0x0] %vm414, %v645
        %650 = vrot.lane.b32.xlu0 %v409, 101
        %v651 = vpop.permute.xlu0 %650
        %v652 = vrot.slane %v651, 1
        %vm653 = vcmask 826368
        %v654 = vsel %vm653, %v651, %v652
        %s656 = scalar_lea.vmem [#allocation2], 51
        %657 = vst.msk [vmem:[%s656] ss:$8 sm:$0x3] %vm414, %v654
        %658 = vst.msk [vmem:[%s656] ss:$8 sm:$0x0] %vm414, %v654
        %659 = vrot.lane.b32.xlu0 %v409, 100
        %v660 = vpop.permute.xlu0 %659
        %v661 = vrot.slane %v660, 1
        %vm662 = vcmask 818176
        %v663 = vsel %vm662, %v660, %v661
        %s665 = scalar_lea.vmem [#allocation2], 52
        %666 = vst.msk [vmem:[%s665] ss:$8 sm:$0x3] %vm414, %v663
        %667 = vst.msk [vmem:[%s665] ss:$8 sm:$0x0] %vm414, %v663
        %668 = vrot.lane.b32.xlu0 %v409, 99
        %v669 = vpop.permute.xlu0 %668
        %v670 = vrot.slane %v669, 1
        %vm671 = vcmask 809984
        %v672 = vsel %vm671, %v669, %v670
        %s674 = scalar_lea.vmem [#allocation2], 53
        %675 = vst.msk [vmem:[%s674] ss:$8 sm:$0x3] %vm414, %v672
        %676 = vst.msk [vmem:[%s674] ss:$8 sm:$0x0] %vm414, %v672
        %677 = vrot.lane.b32.xlu0 %v409, 98
        %v678 = vpop.permute.xlu0 %677
        %v679 = vrot.slane %v678, 1
        %vm680 = vcmask 801792
        %v681 = vsel %vm680, %v678, %v679
        %s683 = scalar_lea.vmem [#allocation2], 54
        %684 = vst.msk [vmem:[%s683] ss:$8 sm:$0x3] %vm414, %v681
        %685 = vst.msk [vmem:[%s683] ss:$8 sm:$0x0] %vm414, %v681
        %686 = vrot.lane.b32.xlu0 %v409, 97
        %v687 = vpop.permute.xlu0 %686
        %v688 = vrot.slane %v687, 1
        %vm689 = vcmask 793600
        %v690 = vsel %vm689, %v687, %v688
        %s692 = scalar_lea.vmem [#allocation2], 55
        %693 = vst.msk [vmem:[%s692] ss:$8 sm:$0x3] %vm414, %v690
        %694 = vst.msk [vmem:[%s692] ss:$8 sm:$0x0] %vm414, %v690
        %695 = vrot.lane.b32.xlu0 %v409, 96
        %v696 = vpop.permute.xlu0 %695
        %v697 = vrot.slane %v696, 1
        %vm698 = vcmask 785408
        %v699 = vsel %vm698, %v696, %v697
        %s701 = scalar_lea.vmem [#allocation2], 64
        %702 = vst.msk [vmem:[%s701] ss:$8 sm:$0x3] %vm414, %v699
        %703 = vst.msk [vmem:[%s701] ss:$8 sm:$0x0] %vm414, %v699
        %704 = vrot.lane.b32.xlu0 %v409, 95
        %v705 = vpop.permute.xlu0 %704
        %v706 = vrot.slane %v705, 1
        %vm707 = vcmask 777216
        %v708 = vsel %vm707, %v705, %v706
        %s710 = scalar_lea.vmem [#allocation2], 65
        %711 = vst.msk [vmem:[%s710] ss:$8 sm:$0x3] %vm414, %v708
        %712 = vst.msk [vmem:[%s710] ss:$8 sm:$0x0] %vm414, %v708
        %713 = vrot.lane.b32.xlu0 %v409, 94
        %v714 = vpop.permute.xlu0 %713
        %v715 = vrot.slane %v714, 1
        %vm716 = vcmask 769024
        %v717 = vsel %vm716, %v714, %v715
        %s719 = scalar_lea.vmem [#allocation2], 66
        %720 = vst.msk [vmem:[%s719] ss:$8 sm:$0x3] %vm414, %v717
        %721 = vst.msk [vmem:[%s719] ss:$8 sm:$0x0] %vm414, %v717
        %722 = vrot.lane.b32.xlu0 %v409, 93
        %v723 = vpop.permute.xlu0 %722
        %v724 = vrot.slane %v723, 1
        %vm725 = vcmask 760832
        %v726 = vsel %vm725, %v723, %v724
        %s728 = scalar_lea.vmem [#allocation2], 67
        %729 = vst.msk [vmem:[%s728] ss:$8 sm:$0x3] %vm414, %v726
        %730 = vst.msk [vmem:[%s728] ss:$8 sm:$0x0] %vm414, %v726
        %731 = vrot.lane.b32.xlu0 %v409, 92
        %v732 = vpop.permute.xlu0 %731
        %v733 = vrot.slane %v732, 1
        %vm734 = vcmask 752640
        %v735 = vsel %vm734, %v732, %v733
        %s737 = scalar_lea.vmem [#allocation2], 68
        %738 = vst.msk [vmem:[%s737] ss:$8 sm:$0x3] %vm414, %v735
        %739 = vst.msk [vmem:[%s737] ss:$8 sm:$0x0] %vm414, %v735
        %740 = vrot.lane.b32.xlu0 %v409, 91
        %v741 = vpop.permute.xlu0 %740
        %v742 = vrot.slane %v741, 1
        %vm743 = vcmask 744448
        %v744 = vsel %vm743, %v741, %v742
        %s746 = scalar_lea.vmem [#allocation2], 69
        %747 = vst.msk [vmem:[%s746] ss:$8 sm:$0x3] %vm414, %v744
        %748 = vst.msk [vmem:[%s746] ss:$8 sm:$0x0] %vm414, %v744
        %749 = vrot.lane.b32.xlu0 %v409, 90
        %v750 = vpop.permute.xlu0 %749
        %v751 = vrot.slane %v750, 1
        %vm752 = vcmask 736256
        %v753 = vsel %vm752, %v750, %v751
        %s755 = scalar_lea.vmem [#allocation2], 70
        %756 = vst.msk [vmem:[%s755] ss:$8 sm:$0x3] %vm414, %v753
        %757 = vst.msk [vmem:[%s755] ss:$8 sm:$0x0] %vm414, %v753
        %758 = vrot.lane.b32.xlu0 %v409, 89
        %v759 = vpop.permute.xlu0 %758
        %v760 = vrot.slane %v759, 1
        %vm761 = vcmask 728064
        %v762 = vsel %vm761, %v759, %v760
        %s764 = scalar_lea.vmem [#allocation2], 71
        %765 = vst.msk [vmem:[%s764] ss:$8 sm:$0x3] %vm414, %v762
        %766 = vst.msk [vmem:[%s764] ss:$8 sm:$0x0] %vm414, %v762
        %767 = vrot.lane.b32.xlu0 %v409, 88
        %v768 = vpop.permute.xlu0 %767
        %v769 = vrot.slane %v768, 1
        %vm770 = vcmask 719872
        %v771 = vsel %vm770, %v768, %v769
        %s773 = scalar_lea.vmem [#allocation2], 80
        %774 = vst.msk [vmem:[%s773] ss:$8 sm:$0x3] %vm414, %v771
        %775 = vst.msk [vmem:[%s773] ss:$8 sm:$0x0] %vm414, %v771
        %776 = vrot.lane.b32.xlu0 %v409, 87
        %v777 = vpop.permute.xlu0 %776
        %v778 = vrot.slane %v777, 1
        %vm779 = vcmask 711680
        %v780 = vsel %vm779, %v777, %v778
        %s782 = scalar_lea.vmem [#allocation2], 81
        %783 = vst.msk [vmem:[%s782] ss:$8 sm:$0x3] %vm414, %v780
        %784 = vst.msk [vmem:[%s782] ss:$8 sm:$0x0] %vm414, %v780
        %785 = vrot.lane.b32.xlu0 %v409, 86
        %v786 = vpop.permute.xlu0 %785
        %v787 = vrot.slane %v786, 1
        %vm788 = vcmask 703488
        %v789 = vsel %vm788, %v786, %v787
        %s791 = scalar_lea.vmem [#allocation2], 82
        %792 = vst.msk [vmem:[%s791] ss:$8 sm:$0x3] %vm414, %v789
        %793 = vst.msk [vmem:[%s791] ss:$8 sm:$0x0] %vm414, %v789
        %794 = vrot.lane.b32.xlu0 %v409, 85
        %v795 = vpop.permute.xlu0 %794
        %v796 = vrot.slane %v795, 1
        %vm797 = vcmask 695296
        %v798 = vsel %vm797, %v795, %v796
        %s800 = scalar_lea.vmem [#allocation2], 83
        %801 = vst.msk [vmem:[%s800] ss:$8 sm:$0x3] %vm414, %v798
        %802 = vst.msk [vmem:[%s800] ss:$8 sm:$0x0] %vm414, %v798
        %803 = vrot.lane.b32.xlu0 %v409, 84
        %v804 = vpop.permute.xlu0 %803
        %v805 = vrot.slane %v804, 1
        %vm806 = vcmask 687104
        %v807 = vsel %vm806, %v804, %v805
        %s809 = scalar_lea.vmem [#allocation2], 84
        %810 = vst.msk [vmem:[%s809] ss:$8 sm:$0x3] %vm414, %v807
        %811 = vst.msk [vmem:[%s809] ss:$8 sm:$0x0] %vm414, %v807
        %812 = vrot.lane.b32.xlu0 %v409, 83
        %v813 = vpop.permute.xlu0 %812
        %v814 = vrot.slane %v813, 1
        %vm815 = vcmask 678912
        %v816 = vsel %vm815, %v813, %v814
        %s818 = scalar_lea.vmem [#allocation2], 85
        %819 = vst.msk [vmem:[%s818] ss:$8 sm:$0x3] %vm414, %v816
        %820 = vst.msk [vmem:[%s818] ss:$8 sm:$0x0] %vm414, %v816
        %821 = vrot.lane.b32.xlu0 %v409, 82
        %v822 = vpop.permute.xlu0 %821
        %v823 = vrot.slane %v822, 1
        %vm824 = vcmask 670720
        %v825 = vsel %vm824, %v822, %v823
        %s827 = scalar_lea.vmem [#allocation2], 86
        %828 = vst.msk [vmem:[%s827] ss:$8 sm:$0x3] %vm414, %v825
        %829 = vst.msk [vmem:[%s827] ss:$8 sm:$0x0] %vm414, %v825
        %830 = vrot.lane.b32.xlu0 %v409, 81
        %v831 = vpop.permute.xlu0 %830
        %v832 = vrot.slane %v831, 1
        %vm833 = vcmask 662528
        %v834 = vsel %vm833, %v831, %v832
        %s836 = scalar_lea.vmem [#allocation2], 87
        %837 = vst.msk [vmem:[%s836] ss:$8 sm:$0x3] %vm414, %v834
        %838 = vst.msk [vmem:[%s836] ss:$8 sm:$0x0] %vm414, %v834
        %839 = vrot.lane.b32.xlu0 %v409, 80
        %v840 = vpop.permute.xlu0 %839
        %v841 = vrot.slane %v840, 1
        %vm842 = vcmask 654336
        %v843 = vsel %vm842, %v840, %v841
        %s845 = scalar_lea.vmem [#allocation2], 96
        %846 = vst.msk [vmem:[%s845] ss:$8 sm:$0x3] %vm414, %v843
        %847 = vst.msk [vmem:[%s845] ss:$8 sm:$0x0] %vm414, %v843
        %848 = vrot.lane.b32.xlu0 %v409, 79
        %v849 = vpop.permute.xlu0 %848
        %v850 = vrot.slane %v849, 1
        %vm851 = vcmask 646144
        %v852 = vsel %vm851, %v849, %v850
        %s854 = scalar_lea.vmem [#allocation2], 97
        %855 = vst.msk [vmem:[%s854] ss:$8 sm:$0x3] %vm414, %v852
        %856 = vst.msk [vmem:[%s854] ss:$8 sm:$0x0] %vm414, %v852
        %857 = vrot.lane.b32.xlu0 %v409, 78
        %v858 = vpop.permute.xlu0 %857
        %v859 = vrot.slane %v858, 1
        %vm860 = vcmask 637952
        %v861 = vsel %vm860, %v858, %v859
        %s863 = scalar_lea.vmem [#allocation2], 98
        %864 = vst.msk [vmem:[%s863] ss:$8 sm:$0x3] %vm414, %v861
        %865 = vst.msk [vmem:[%s863] ss:$8 sm:$0x0] %vm414, %v861
        %v866 = vld [vmem:[%s2] sm:$0xff]
        %v867 = vld [vmem:[%s2 + $0x8] sm:$0xff]
        %v868 = vld [vmem:[#allocation2] sm:$0xff]
        %v869 = vld [vmem:[#allocation2 + $0x8] sm:$0xff]
        %v870 = vld [vmem:[#allocation2 + $0x10] sm:$0xff]
        %v871 = vld [vmem:[#allocation2 + $0x18] sm:$0xff]
        %v872 = vld [vmem:[#allocation2 + $0x20] sm:$0xff]
        %v873 = vld [vmem:[#allocation2 + $0x28] sm:$0xff]
        %v874 = vld [vmem:[#allocation2 + $0x30] sm:$0xff]
        %v875 = vld [vmem:[#allocation2 + $0x38] sm:$0xff]
        %v876 = vld [vmem:[#allocation2 + $0x40] sm:$0xff]
        %v877 = vld [vmem:[#allocation2 + $0x48] sm:$0xff]
        %v878 = vld [vmem:[#allocation2 + $0x50] sm:$0xff]
        %v879 = vld [vmem:[#allocation2 + $0x58] sm:$0xff]
        %v880 = vld [vmem:[#allocation2 + $0x60] sm:$0x7]
        %v881 = vld [vmem:[#allocation2 + $0x68] sm:$0x7]
        %vm882 = vcmask 416768
        %v884 = vsel %vm882, %v866, 0
        %v887 = vsel %vm882, %v867, 0
        %vm889 = vcmask 1042432
        %v891 = vsel %vm889, %v880, 0
        %v894 = vsel %vm889, %v881, 0
        %896 = vmatpush.msra.mxu0 0.0
        %897 = vmatpush.msra.mxu0 0.0
        %898 = vmatpush.msra.mxu0 0.0
        %899 = vmatpush.msra.mxu0 0.0
        %900 = vmatpush.msra.mxu0 0.0
        %901 = vmatpush.msra.mxu0 0.0
        %902 = vmatpush.msra.mxu0 0.0
        %903 = vmatpush.msra.mxu0 0.0
        %904 = vmatpush.msra.mxu0 0.0
        %905 = vmatpush.msra.mxu0 %v891
        %906 = vmatpush.msra.mxu0 %v878
        %907 = vmatpush.msra.mxu0 %v876
        %908 = vmatpush.msra.mxu0 %v874
        %909 = vmatpush.msra.mxu0 %v872
        %910 = vmatpush.msra.mxu0 %v870
        %911 = vmatpush.msra.mxu0 %v868
        %912 = vmatmul.f32.gmra.mxu0 %v884
        %v913 = vpop.f32.mrf.mxu0
        %v914 = vadd.f32 0.0, %v913
        %915 = vmatmul.f32.gmra.mxu0 %v887
        %v916 = vpop.f32.mrf.mxu0
        %v917 = vadd.f32 0.0, %v916
        %918 = vdwg.mxu0
        %919 = vmatpush.msra.mxu0 0.0
        %920 = vmatpush.msra.mxu0 0.0
        %921 = vmatpush.msra.mxu0 0.0
        %922 = vmatpush.msra.mxu0 0.0
        %923 = vmatpush.msra.mxu0 0.0
        %924 = vmatpush.msra.mxu0 0.0
        %925 = vmatpush.msra.mxu0 0.0
        %926 = vmatpush.msra.mxu0 0.0
        %927 = vmatpush.msra.mxu0 0.0
        %928 = vmatpush.msra.mxu0 %v894
        %929 = vmatpush.msra.mxu0 %v879
        %930 = vmatpush.msra.mxu0 %v877
        %931 = vmatpush.msra.mxu0 %v875
        %932 = vmatpush.msra.mxu0 %v873
        %933 = vmatpush.msra.mxu0 %v871
        %934 = vmatpush.msra.mxu0 %v869
        %935 = vmatmul.f32.gmra.mxu0 %v884
        %v936 = vpop.f32.mrf.mxu0
        %v937 = vadd.f32 0.0, %v936
        %938 = vmatmul.f32.gmra.mxu0 %v887
        %v939 = vpop.f32.mrf.mxu0
        %v940 = vadd.f32 0.0, %v939
        %941 = vdwg.mxu0
        %v942 = vlaneseq
        %v943 = vand.u32 %v942, 127
        %v944 = vadd.s32 %v943, 128
        %s945 = smul.u32 %s27, 128
        %s946 = ssub.s32 %s945, 12
        %v947 = vstv %s946
        %v948 = vadd.s32 %v943, %v947
        %v949 = vadd.s32 %v944, %v947
        %vm950 = vcmp.ge.s32.totalorder %v948, 0
        %vm951 = vcmp.ge.s32.totalorder %v949, 0
        %vm952 = vcmp.lt.s32.totalorder %v948, 64
        %vm953 = vcmp.lt.s32.totalorder %v949, 64
        %vm954 = vmand %vm950, %vm952
        %vm955 = vmand %vm951, %vm953
        %v956 = vsel %vm954, 1, 0
        %v957 = vsel %vm955, 1, 0
        %vm958 = vcmp.eq.s32.totalorder %v956, 1
        %vm959 = vcmp.eq.s32.totalorder %v957, 1
        %v960 = vsel %vm958, %v914, 0.0
        %v961 = vsel %vm959, %v937, 0.0
        %v962 = vsel %vm958, %v917, 0.0
        %v963 = vsel %vm959, %v940, 0.0
        %964 = vst [vmem:[#allocation3] sm:$0xff] %v361
        %965 = vst [vmem:[#allocation3 + $0x8] sm:$0xff] %v364
        %966 = vst [vmem:[#allocation3 + $0x10] sm:$0xff] %v960
        %967 = vst [vmem:[#allocation3 + $0x18] sm:$0xff] %v962
        %972 = vrot.lane.b32.xlu0 %v361, 127
        %v973 = vpop.permute.xlu0 %972
        %974 = vrot.lane.b32.xlu0 %v384, 127
        %v975 = vpop.permute.xlu0 %974
        %976 = vrot.lane.b32.xlu0 %v364, 127
        %v977 = vpop.permute.xlu0 %976
        %978 = vrot.lane.b32.xlu0 %v387, 127
        %v979 = vpop.permute.xlu0 %978
        %v980 = vsel %vm420, %v973, %v975
        %v981 = vsel %vm420, %v977, %v979
        %984 = vst [vmem:[#allocation3 + $0x20] sm:$0xff] %v980
        %985 = vst [vmem:[#allocation3 + $0x28] sm:$0xff] %v981
        %990 = vrot.lane.b32.xlu0 %v960, 127
        %v991 = vpop.permute.xlu0 %990
        %992 = vrot.lane.b32.xlu0 %v961, 127
        %v993 = vpop.permute.xlu0 %992
        %994 = vrot.lane.b32.xlu0 %v962, 127
        %v995 = vpop.permute.xlu0 %994
        %996 = vrot.lane.b32.xlu0 %v963, 127
        %v997 = vpop.permute.xlu0 %996
        %v998 = vsel %vm420, %v991, %v993
        %v999 = vsel %vm420, %v995, %v997
        %1002 = vst [vmem:[#allocation3 + $0x30] sm:$0xff] %v998
        %1003 = vst [vmem:[#allocation3 + $0x38] sm:$0xff] %v999
        %1004 = vrot.lane.b32.xlu0 %v361, 126
        %v1005 = vpop.permute.xlu0 %1004
        %1006 = vrot.lane.b32.xlu0 %v384, 126
        %v1007 = vpop.permute.xlu0 %1006
        %1008 = vrot.lane.b32.xlu0 %v364, 126
        %v1009 = vpop.permute.xlu0 %1008
        %1010 = vrot.lane.b32.xlu0 %v387, 126
        %v1011 = vpop.permute.xlu0 %1010
        %v1012 = vsel %vm429, %v1005, %v1007
        %v1013 = vsel %vm429, %v1009, %v1011
        %1016 = vst [vmem:[#allocation3 + $0x40] sm:$0xff] %v1012
        %1017 = vst [vmem:[#allocation3 + $0x48] sm:$0xff] %v1013
        %1018 = vrot.lane.b32.xlu0 %v960, 126
        %v1019 = vpop.permute.xlu0 %1018
        %1020 = vrot.lane.b32.xlu0 %v961, 126
        %v1021 = vpop.permute.xlu0 %1020
        %1022 = vrot.lane.b32.xlu0 %v962, 126
        %v1023 = vpop.permute.xlu0 %1022
        %1024 = vrot.lane.b32.xlu0 %v963, 126
        %v1025 = vpop.permute.xlu0 %1024
        %v1026 = vsel %vm429, %v1019, %v1021
        %v1027 = vsel %vm429, %v1023, %v1025
        %1030 = vst [vmem:[#allocation3 + $0x50] sm:$0xff] %v1026
        %1031 = vst [vmem:[#allocation3 + $0x58] sm:$0xff] %v1027
        %1032 = vrot.lane.b32.xlu0 %v361, 125
        %v1033 = vpop.permute.xlu0 %1032
        %1034 = vrot.lane.b32.xlu0 %v384, 125
        %v1035 = vpop.permute.xlu0 %1034
        %1036 = vrot.lane.b32.xlu0 %v364, 125
        %v1037 = vpop.permute.xlu0 %1036
        %1038 = vrot.lane.b32.xlu0 %v387, 125
        %v1039 = vpop.permute.xlu0 %1038
        %v1040 = vsel %vm438, %v1033, %v1035
        %v1041 = vsel %vm438, %v1037, %v1039
        %1044 = vst [vmem:[#allocation3 + $0x60] sm:$0xff] %v1040
        %1045 = vst [vmem:[#allocation3 + $0x68] sm:$0xff] %v1041
        %1046 = vrot.lane.b32.xlu0 %v960, 125
        %v1047 = vpop.permute.xlu0 %1046
        %1048 = vrot.lane.b32.xlu0 %v961, 125
        %v1049 = vpop.permute.xlu0 %1048
        %1050 = vrot.lane.b32.xlu0 %v962, 125
        %v1051 = vpop.permute.xlu0 %1050
        %1052 = vrot.lane.b32.xlu0 %v963, 125
        %v1053 = vpop.permute.xlu0 %1052
        %v1054 = vsel %vm438, %v1047, %v1049
        %v1055 = vsel %vm438, %v1051, %v1053
        %1058 = vst [vmem:[#allocation3 + $0x70] sm:$0xff] %v1054
        %1059 = vst [vmem:[#allocation3 + $0x78] sm:$0xff] %v1055
        %1060 = vrot.lane.b32.xlu0 %v361, 124
        %v1061 = vpop.permute.xlu0 %1060
        %1062 = vrot.lane.b32.xlu0 %v384, 124
        %v1063 = vpop.permute.xlu0 %1062
        %1064 = vrot.lane.b32.xlu0 %v364, 124
        %v1065 = vpop.permute.xlu0 %1064
        %1066 = vrot.lane.b32.xlu0 %v387, 124
        %v1067 = vpop.permute.xlu0 %1066
        %v1068 = vsel %vm447, %v1061, %v1063
        %v1069 = vsel %vm447, %v1065, %v1067
        %1072 = vst [vmem:[#allocation3 + $0x80] sm:$0xff] %v1068
        %1073 = vst [vmem:[#allocation3 + $0x88] sm:$0xff] %v1069
        %1074 = vrot.lane.b32.xlu0 %v960, 124
        %v1075 = vpop.permute.xlu0 %1074
        %1076 = vrot.lane.b32.xlu0 %v961, 124
        %v1077 = vpop.permute.xlu0 %1076
        %1078 = vrot.lane.b32.xlu0 %v962, 124
        %v1079 = vpop.permute.xlu0 %1078
        %1080 = vrot.lane.b32.xlu0 %v963, 124
        %v1081 = vpop.permute.xlu0 %1080
        %v1082 = vsel %vm447, %v1075, %v1077
        %v1083 = vsel %vm447, %v1079, %v1081
        %1086 = vst [vmem:[#allocation3 + $0x90] sm:$0xff] %v1082
        %1087 = vst [vmem:[#allocation3 + $0x98] sm:$0xff] %v1083
        %1088 = vrot.lane.b32.xlu0 %v361, 123
        %v1089 = vpop.permute.xlu0 %1088
        %1090 = vrot.lane.b32.xlu0 %v384, 123
        %v1091 = vpop.permute.xlu0 %1090
        %1092 = vrot.lane.b32.xlu0 %v364, 123
        %v1093 = vpop.permute.xlu0 %1092
        %1094 = vrot.lane.b32.xlu0 %v387, 123
        %v1095 = vpop.permute.xlu0 %1094
        %v1096 = vsel %vm456, %v1089, %v1091
        %v1097 = vsel %vm456, %v1093, %v1095
        %1100 = vst [vmem:[#allocation3 + $0xa0] sm:$0xff] %v1096
        %1101 = vst [vmem:[#allocation3 + $0xa8] sm:$0xff] %v1097
        %1102 = vrot.lane.b32.xlu0 %v960, 123
        %v1103 = vpop.permute.xlu0 %1102
        %1104 = vrot.lane.b32.xlu0 %v961, 123
        %v1105 = vpop.permute.xlu0 %1104
        %1106 = vrot.lane.b32.xlu0 %v962, 123
        %v1107 = vpop.permute.xlu0 %1106
        %1108 = vrot.lane.b32.xlu0 %v963, 123
        %v1109 = vpop.permute.xlu0 %1108
        %v1110 = vsel %vm456, %v1103, %v1105
        %v1111 = vsel %vm456, %v1107, %v1109
        %1114 = vst [vmem:[#allocation3 + $0xb0] sm:$0xff] %v1110
        %1115 = vst [vmem:[#allocation3 + $0xb8] sm:$0xff] %v1111
        %1116 = vrot.lane.b32.xlu0 %v361, 122
        %v1117 = vpop.permute.xlu0 %1116
        %1118 = vrot.lane.b32.xlu0 %v384, 122
        %v1119 = vpop.permute.xlu0 %1118
        %1120 = vrot.lane.b32.xlu0 %v364, 122
        %v1121 = vpop.permute.xlu0 %1120
        %1122 = vrot.lane.b32.xlu0 %v387, 122
        %v1123 = vpop.permute.xlu0 %1122
        %v1124 = vsel %vm465, %v1117, %v1119
        %v1125 = vsel %vm465, %v1121, %v1123
        %1128 = vst [vmem:[#allocation3 + $0xc0] sm:$0xff] %v1124
        %1129 = vst [vmem:[#allocation3 + $0xc8] sm:$0xff] %v1125
        %1130 = vrot.lane.b32.xlu0 %v960, 122
        %v1131 = vpop.permute.xlu0 %1130
        %1132 = vrot.lane.b32.xlu0 %v961, 122
        %v1133 = vpop.permute.xlu0 %1132
        %1134 = vrot.lane.b32.xlu0 %v962, 122
        %v1135 = vpop.permute.xlu0 %1134
        %1136 = vrot.lane.b32.xlu0 %v963, 122
        %v1137 = vpop.permute.xlu0 %1136
        %v1138 = vsel %vm465, %v1131, %v1133
        %v1139 = vsel %vm465, %v1135, %v1137
        %1142 = vst [vmem:[#allocation3 + $0xd0] sm:$0xff] %v1138
        %1143 = vst [vmem:[#allocation3 + $0xd8] sm:$0xff] %v1139
        %1144 = vrot.lane.b32.xlu0 %v361, 121
        %v1145 = vpop.permute.xlu0 %1144
        %1146 = vrot.lane.b32.xlu0 %v384, 121
        %v1147 = vpop.permute.xlu0 %1146
        %1148 = vrot.lane.b32.xlu0 %v364, 121
        %v1149 = vpop.permute.xlu0 %1148
        %1150 = vrot.lane.b32.xlu0 %v387, 121
        %v1151 = vpop.permute.xlu0 %1150
        %v1152 = vsel %vm474, %v1145, %v1147
        %v1153 = vsel %vm474, %v1149, %v1151
        %1156 = vst [vmem:[#allocation3 + $0xe0] sm:$0xff] %v1152
        %1157 = vst [vmem:[#allocation3 + $0xe8] sm:$0xff] %v1153
        %1158 = vrot.lane.b32.xlu0 %v960, 121
        %v1159 = vpop.permute.xlu0 %1158
        %1160 = vrot.lane.b32.xlu0 %v961, 121
        %v1161 = vpop.permute.xlu0 %1160
        %1162 = vrot.lane.b32.xlu0 %v962, 121
        %v1163 = vpop.permute.xlu0 %1162
        %1164 = vrot.lane.b32.xlu0 %v963, 121
        %v1165 = vpop.permute.xlu0 %1164
        %v1166 = vsel %vm474, %v1159, %v1161
        %v1167 = vsel %vm474, %v1163, %v1165
        %1170 = vst [vmem:[#allocation3 + $0xf0] sm:$0xff] %v1166
        %1171 = vst [vmem:[#allocation3 + $0xf8] sm:$0xff] %v1167
        %1172 = vrot.lane.b32.xlu0 %v361, 120
        %v1173 = vpop.permute.xlu0 %1172
        %1174 = vrot.lane.b32.xlu0 %v384, 120
        %v1175 = vpop.permute.xlu0 %1174
        %1176 = vrot.lane.b32.xlu0 %v364, 120
        %v1177 = vpop.permute.xlu0 %1176
        %1178 = vrot.lane.b32.xlu0 %v387, 120
        %v1179 = vpop.permute.xlu0 %1178
        %v1180 = vsel %vm483, %v1173, %v1175
        %v1181 = vsel %vm483, %v1177, %v1179
        %1184 = vst [vmem:[#allocation3 + $0x100] sm:$0xff] %v1180
        %1185 = vst [vmem:[#allocation3 + $0x108] sm:$0xff] %v1181
        %1186 = vrot.lane.b32.xlu0 %v960, 120
        %v1187 = vpop.permute.xlu0 %1186
        %1188 = vrot.lane.b32.xlu0 %v961, 120
        %v1189 = vpop.permute.xlu0 %1188
        %1190 = vrot.lane.b32.xlu0 %v962, 120
        %v1191 = vpop.permute.xlu0 %1190
        %1192 = vrot.lane.b32.xlu0 %v963, 120
        %v1193 = vpop.permute.xlu0 %1192
        %v1194 = vsel %vm483, %v1187, %v1189
        %v1195 = vsel %vm483, %v1191, %v1193
        %1198 = vst [vmem:[#allocation3 + $0x110] sm:$0xff] %v1194
        %1199 = vst [vmem:[#allocation3 + $0x118] sm:$0xff] %v1195
        %1200 = vrot.lane.b32.xlu0 %v361, 119
        %v1201 = vpop.permute.xlu0 %1200
        %1202 = vrot.lane.b32.xlu0 %v384, 119
        %v1203 = vpop.permute.xlu0 %1202
        %1204 = vrot.lane.b32.xlu0 %v364, 119
        %v1205 = vpop.permute.xlu0 %1204
        %1206 = vrot.lane.b32.xlu0 %v387, 119
        %v1207 = vpop.permute.xlu0 %1206
        %v1208 = vsel %vm492, %v1201, %v1203
        %v1209 = vsel %vm492, %v1205, %v1207
        %1212 = vst [vmem:[#allocation3 + $0x120] sm:$0xff] %v1208
        %1213 = vst [vmem:[#allocation3 + $0x128] sm:$0xff] %v1209
        %1214 = vrot.lane.b32.xlu0 %v960, 119
        %v1215 = vpop.permute.xlu0 %1214
        %1216 = vrot.lane.b32.xlu0 %v961, 119
        %v1217 = vpop.permute.xlu0 %1216
        %1218 = vrot.lane.b32.xlu0 %v962, 119
        %v1219 = vpop.permute.xlu0 %1218
        %1220 = vrot.lane.b32.xlu0 %v963, 119
        %v1221 = vpop.permute.xlu0 %1220
        %v1222 = vsel %vm492, %v1215, %v1217
        %v1223 = vsel %vm492, %v1219, %v1221
        %1226 = vst [vmem:[#allocation3 + $0x130] sm:$0xff] %v1222
        %1227 = vst [vmem:[#allocation3 + $0x138] sm:$0xff] %v1223
        %1228 = vrot.lane.b32.xlu0 %v361, 118
        %v1229 = vpop.permute.xlu0 %1228
        %1230 = vrot.lane.b32.xlu0 %v384, 118
        %v1231 = vpop.permute.xlu0 %1230
        %1232 = vrot.lane.b32.xlu0 %v364, 118
        %v1233 = vpop.permute.xlu0 %1232
        %1234 = vrot.lane.b32.xlu0 %v387, 118
        %v1235 = vpop.permute.xlu0 %1234
        %v1236 = vsel %vm501, %v1229, %v1231
        %v1237 = vsel %vm501, %v1233, %v1235
        %1240 = vst [vmem:[#allocation3 + $0x140] sm:$0xff] %v1236
        %1241 = vst [vmem:[#allocation3 + $0x148] sm:$0xff] %v1237
        %1242 = vrot.lane.b32.xlu0 %v960, 118
        %v1243 = vpop.permute.xlu0 %1242
        %1244 = vrot.lane.b32.xlu0 %v961, 118
        %v1245 = vpop.permute.xlu0 %1244
        %1246 = vrot.lane.b32.xlu0 %v962, 118
        %v1247 = vpop.permute.xlu0 %1246
        %1248 = vrot.lane.b32.xlu0 %v963, 118
        %v1249 = vpop.permute.xlu0 %1248
        %v1250 = vsel %vm501, %v1243, %v1245
        %v1251 = vsel %vm501, %v1247, %v1249
        %1254 = vst [vmem:[#allocation3 + $0x150] sm:$0xff] %v1250
        %1255 = vst [vmem:[#allocation3 + $0x158] sm:$0xff] %v1251
        %1256 = vrot.lane.b32.xlu0 %v361, 117
        %v1257 = vpop.permute.xlu0 %1256
        %1258 = vrot.lane.b32.xlu0 %v384, 117
        %v1259 = vpop.permute.xlu0 %1258
        %1260 = vrot.lane.b32.xlu0 %v364, 117
        %v1261 = vpop.permute.xlu0 %1260
        %1262 = vrot.lane.b32.xlu0 %v387, 117
        %v1263 = vpop.permute.xlu0 %1262
        %v1264 = vsel %vm510, %v1257, %v1259
        %v1265 = vsel %vm510, %v1261, %v1263
        %1268 = vst [vmem:[#allocation3 + $0x160] sm:$0xff] %v1264
        %1269 = vst [vmem:[#allocation3 + $0x168] sm:$0xff] %v1265
        %1270 = vrot.lane.b32.xlu0 %v960, 117
        %v1271 = vpop.permute.xlu0 %1270
        %1272 = vrot.lane.b32.xlu0 %v961, 117
        %v1273 = vpop.permute.xlu0 %1272
        %1274 = vrot.lane.b32.xlu0 %v962, 117
        %v1275 = vpop.permute.xlu0 %1274
        %1276 = vrot.lane.b32.xlu0 %v963, 117
        %v1277 = vpop.permute.xlu0 %1276
        %v1278 = vsel %vm510, %v1271, %v1273
        %v1279 = vsel %vm510, %v1275, %v1277
        %1282 = vst [vmem:[#allocation3 + $0x170] sm:$0xff] %v1278
        %1283 = vst [vmem:[#allocation3 + $0x178] sm:$0xff] %v1279
        %1284 = vrot.lane.b32.xlu0 %v361, 116
        %v1285 = vpop.permute.xlu0 %1284
        %1286 = vrot.lane.b32.xlu0 %v384, 116
        %v1287 = vpop.permute.xlu0 %1286
        %1288 = vrot.lane.b32.xlu0 %v364, 116
        %v1289 = vpop.permute.xlu0 %1288
        %1290 = vrot.lane.b32.xlu0 %v387, 116
        %v1291 = vpop.permute.xlu0 %1290
        %v1292 = vsel %vm519, %v1285, %v1287
        %v1293 = vsel %vm519, %v1289, %v1291
        %1296 = vst [vmem:[#allocation3 + $0x180] sm:$0xff] %v1292
        %1297 = vst [vmem:[#allocation3 + $0x188] sm:$0xff] %v1293
        %1298 = vrot.lane.b32.xlu0 %v960, 116
        %v1299 = vpop.permute.xlu0 %1298
        %1300 = vrot.lane.b32.xlu0 %v961, 116
        %v1301 = vpop.permute.xlu0 %1300
        %1302 = vrot.lane.b32.xlu0 %v962, 116
        %v1303 = vpop.permute.xlu0 %1302
        %1304 = vrot.lane.b32.xlu0 %v963, 116
        %v1305 = vpop.permute.xlu0 %1304
        %v1306 = vsel %vm519, %v1299, %v1301
        %v1307 = vsel %vm519, %v1303, %v1305
        %1310 = vst [vmem:[#allocation3 + $0x190] sm:$0xff] %v1306
        %1311 = vst [vmem:[#allocation3 + $0x198] sm:$0xff] %v1307
        %1312 = vrot.lane.b32.xlu0 %v361, 115
        %v1313 = vpop.permute.xlu0 %1312
        %1314 = vrot.lane.b32.xlu0 %v384, 115
        %v1315 = vpop.permute.xlu0 %1314
        %1316 = vrot.lane.b32.xlu0 %v364, 115
        %v1317 = vpop.permute.xlu0 %1316
        %1318 = vrot.lane.b32.xlu0 %v387, 115
        %v1319 = vpop.permute.xlu0 %1318
        %v1320 = vsel %vm528, %v1313, %v1315
        %v1321 = vsel %vm528, %v1317, %v1319
        %1324 = vst [vmem:[#allocation3 + $0x1a0] sm:$0xff] %v1320
        %1325 = vst [vmem:[#allocation3 + $0x1a8] sm:$0xff] %v1321
        %1326 = vrot.lane.b32.xlu0 %v960, 115
        %v1327 = vpop.permute.xlu0 %1326
        %1328 = vrot.lane.b32.xlu0 %v961, 115
        %v1329 = vpop.permute.xlu0 %1328
        %1330 = vrot.lane.b32.xlu0 %v962, 115
        %v1331 = vpop.permute.xlu0 %1330
        %1332 = vrot.lane.b32.xlu0 %v963, 115
        %v1333 = vpop.permute.xlu0 %1332
        %v1334 = vsel %vm528, %v1327, %v1329
        %v1335 = vsel %vm528, %v1331, %v1333
        %1338 = vst [vmem:[#allocation3 + $0x1b0] sm:$0xff] %v1334
        %1339 = vst [vmem:[#allocation3 + $0x1b8] sm:$0xff] %v1335
        %1340 = vrot.lane.b32.xlu0 %v361, 114
        %v1341 = vpop.permute.xlu0 %1340
        %1342 = vrot.lane.b32.xlu0 %v384, 114
        %v1343 = vpop.permute.xlu0 %1342
        %1344 = vrot.lane.b32.xlu0 %v364, 114
        %v1345 = vpop.permute.xlu0 %1344
        %1346 = vrot.lane.b32.xlu0 %v387, 114
        %v1347 = vpop.permute.xlu0 %1346
        %v1348 = vsel %vm537, %v1341, %v1343
        %v1349 = vsel %vm537, %v1345, %v1347
        %1352 = vst [vmem:[#allocation3 + $0x1c0] sm:$0xff] %v1348
        %1353 = vst [vmem:[#allocation3 + $0x1c8] sm:$0xff] %v1349
        %1354 = vrot.lane.b32.xlu0 %v960, 114
        %v1355 = vpop.permute.xlu0 %1354
        %1356 = vrot.lane.b32.xlu0 %v961, 114
        %v1357 = vpop.permute.xlu0 %1356
        %1358 = vrot.lane.b32.xlu0 %v962, 114
        %v1359 = vpop.permute.xlu0 %1358
        %1360 = vrot.lane.b32.xlu0 %v963, 114
        %v1361 = vpop.permute.xlu0 %1360
        %v1362 = vsel %vm537, %v1355, %v1357
        %v1363 = vsel %vm537, %v1359, %v1361
        %1366 = vst [vmem:[#allocation3 + $0x1d0] sm:$0xff] %v1362
        %1367 = vst [vmem:[#allocation3 + $0x1d8] sm:$0xff] %v1363
        %1368 = vrot.lane.b32.xlu0 %v361, 113
        %v1369 = vpop.permute.xlu0 %1368
        %1370 = vrot.lane.b32.xlu0 %v384, 113
        %v1371 = vpop.permute.xlu0 %1370
        %1372 = vrot.lane.b32.xlu0 %v364, 113
        %v1373 = vpop.permute.xlu0 %1372
        %1374 = vrot.lane.b32.xlu0 %v387, 113
        %v1375 = vpop.permute.xlu0 %1374
        %v1376 = vsel %vm546, %v1369, %v1371
        %v1377 = vsel %vm546, %v1373, %v1375
        %1380 = vst [vmem:[#allocation3 + $0x1e0] sm:$0xff] %v1376
        %1381 = vst [vmem:[#allocation3 + $0x1e8] sm:$0xff] %v1377
        %1382 = vrot.lane.b32.xlu0 %v960, 113
        %v1383 = vpop.permute.xlu0 %1382
        %1384 = vrot.lane.b32.xlu0 %v961, 113
        %v1385 = vpop.permute.xlu0 %1384
        %1386 = vrot.lane.b32.xlu0 %v962, 113
        %v1387 = vpop.permute.xlu0 %1386
        %1388 = vrot.lane.b32.xlu0 %v963, 113
        %v1389 = vpop.permute.xlu0 %1388
        %v1390 = vsel %vm546, %v1383, %v1385
        %v1391 = vsel %vm546, %v1387, %v1389
        %1394 = vst [vmem:[#allocation3 + $0x1f0] sm:$0xff] %v1390
        %1395 = vst [vmem:[#allocation3 + $0x1f8] sm:$0xff] %v1391
        %1396 = vrot.lane.b32.xlu0 %v361, 112
        %v1397 = vpop.permute.xlu0 %1396
        %1398 = vrot.lane.b32.xlu0 %v384, 112
        %v1399 = vpop.permute.xlu0 %1398
        %1400 = vrot.lane.b32.xlu0 %v364, 112
        %v1401 = vpop.permute.xlu0 %1400
        %1402 = vrot.lane.b32.xlu0 %v387, 112
        %v1403 = vpop.permute.xlu0 %1402
        %v1404 = vsel %vm555, %v1397, %v1399
        %v1405 = vsel %vm555, %v1401, %v1403
        %1408 = vst [vmem:[#allocation3 + $0x200] sm:$0xff] %v1404
        %1409 = vst [vmem:[#allocation3 + $0x208] sm:$0xff] %v1405
        %1410 = vrot.lane.b32.xlu0 %v960, 112
        %v1411 = vpop.permute.xlu0 %1410
        %1412 = vrot.lane.b32.xlu0 %v961, 112
        %v1413 = vpop.permute.xlu0 %1412
        %1414 = vrot.lane.b32.xlu0 %v962, 112
        %v1415 = vpop.permute.xlu0 %1414
        %1416 = vrot.lane.b32.xlu0 %v963, 112
        %v1417 = vpop.permute.xlu0 %1416
        %v1418 = vsel %vm555, %v1411, %v1413
        %v1419 = vsel %vm555, %v1415, %v1417
        %1422 = vst [vmem:[#allocation3 + $0x210] sm:$0xff] %v1418
        %1423 = vst [vmem:[#allocation3 + $0x218] sm:$0xff] %v1419
        %1424 = vrot.lane.b32.xlu0 %v361, 111
        %v1425 = vpop.permute.xlu0 %1424
        %1426 = vrot.lane.b32.xlu0 %v384, 111
        %v1427 = vpop.permute.xlu0 %1426
        %1428 = vrot.lane.b32.xlu0 %v364, 111
        %v1429 = vpop.permute.xlu0 %1428
        %1430 = vrot.lane.b32.xlu0 %v387, 111
        %v1431 = vpop.permute.xlu0 %1430
        %v1432 = vsel %vm564, %v1425, %v1427
        %v1433 = vsel %vm564, %v1429, %v1431
        %1436 = vst [vmem:[#allocation3 + $0x220] sm:$0xff] %v1432
        %1437 = vst [vmem:[#allocation3 + $0x228] sm:$0xff] %v1433
        %1438 = vrot.lane.b32.xlu0 %v960, 111
        %v1439 = vpop.permute.xlu0 %1438
        %1440 = vrot.lane.b32.xlu0 %v961, 111
        %v1441 = vpop.permute.xlu0 %1440
        %1442 = vrot.lane.b32.xlu0 %v962, 111
        %v1443 = vpop.permute.xlu0 %1442
        %1444 = vrot.lane.b32.xlu0 %v963, 111
        %v1445 = vpop.permute.xlu0 %1444
        %v1446 = vsel %vm564, %v1439, %v1441
        %v1447 = vsel %vm564, %v1443, %v1445
        %1450 = vst [vmem:[#allocation3 + $0x230] sm:$0xff] %v1446
        %1451 = vst [vmem:[#allocation3 + $0x238] sm:$0xff] %v1447
        %1452 = vrot.lane.b32.xlu0 %v361, 110
        %v1453 = vpop.permute.xlu0 %1452
        %1454 = vrot.lane.b32.xlu0 %v384, 110
        %v1455 = vpop.permute.xlu0 %1454
        %1456 = vrot.lane.b32.xlu0 %v364, 110
        %v1457 = vpop.permute.xlu0 %1456
        %1458 = vrot.lane.b32.xlu0 %v387, 110
        %v1459 = vpop.permute.xlu0 %1458
        %v1460 = vsel %vm573, %v1453, %v1455
        %v1461 = vsel %vm573, %v1457, %v1459
        %1464 = vst [vmem:[#allocation3 + $0x240] sm:$0xff] %v1460
        %1465 = vst [vmem:[#allocation3 + $0x248] sm:$0xff] %v1461
        %1466 = vrot.lane.b32.xlu0 %v960, 110
        %v1467 = vpop.permute.xlu0 %1466
        %1468 = vrot.lane.b32.xlu0 %v961, 110
        %v1469 = vpop.permute.xlu0 %1468
        %1470 = vrot.lane.b32.xlu0 %v962, 110
        %v1471 = vpop.permute.xlu0 %1470
        %1472 = vrot.lane.b32.xlu0 %v963, 110
        %v1473 = vpop.permute.xlu0 %1472
        %v1474 = vsel %vm573, %v1467, %v1469
        %v1475 = vsel %vm573, %v1471, %v1473
        %1478 = vst [vmem:[#allocation3 + $0x250] sm:$0xff] %v1474
        %1479 = vst [vmem:[#allocation3 + $0x258] sm:$0xff] %v1475
        %1480 = vrot.lane.b32.xlu0 %v361, 109
        %v1481 = vpop.permute.xlu0 %1480
        %1482 = vrot.lane.b32.xlu0 %v384, 109
        %v1483 = vpop.permute.xlu0 %1482
        %1484 = vrot.lane.b32.xlu0 %v364, 109
        %v1485 = vpop.permute.xlu0 %1484
        %1486 = vrot.lane.b32.xlu0 %v387, 109
        %v1487 = vpop.permute.xlu0 %1486
        %v1488 = vsel %vm582, %v1481, %v1483
        %v1489 = vsel %vm582, %v1485, %v1487
        %1492 = vst [vmem:[#allocation3 + $0x260] sm:$0xff] %v1488
        %1493 = vst [vmem:[#allocation3 + $0x268] sm:$0xff] %v1489
        %1494 = vrot.lane.b32.xlu0 %v960, 109
        %v1495 = vpop.permute.xlu0 %1494
        %1496 = vrot.lane.b32.xlu0 %v961, 109
        %v1497 = vpop.permute.xlu0 %1496
        %1498 = vrot.lane.b32.xlu0 %v962, 109
        %v1499 = vpop.permute.xlu0 %1498
        %1500 = vrot.lane.b32.xlu0 %v963, 109
        %v1501 = vpop.permute.xlu0 %1500
        %v1502 = vsel %vm582, %v1495, %v1497
        %v1503 = vsel %vm582, %v1499, %v1501
        %1506 = vst [vmem:[#allocation3 + $0x270] sm:$0xff] %v1502
        %1507 = vst [vmem:[#allocation3 + $0x278] sm:$0xff] %v1503
        %1508 = vrot.lane.b32.xlu0 %v361, 108
        %v1509 = vpop.permute.xlu0 %1508
        %1510 = vrot.lane.b32.xlu0 %v384, 108
        %v1511 = vpop.permute.xlu0 %1510
        %1512 = vrot.lane.b32.xlu0 %v364, 108
        %v1513 = vpop.permute.xlu0 %1512
        %1514 = vrot.lane.b32.xlu0 %v387, 108
        %v1515 = vpop.permute.xlu0 %1514
        %v1516 = vsel %vm591, %v1509, %v1511
        %v1517 = vsel %vm591, %v1513, %v1515
        %1520 = vst [vmem:[#allocation3 + $0x280] sm:$0xff] %v1516
        %1521 = vst [vmem:[#allocation3 + $0x288] sm:$0xff] %v1517
        %1522 = vrot.lane.b32.xlu0 %v960, 108
        %v1523 = vpop.permute.xlu0 %1522
        %1524 = vrot.lane.b32.xlu0 %v961, 108
        %v1525 = vpop.permute.xlu0 %1524
        %1526 = vrot.lane.b32.xlu0 %v962, 108
        %v1527 = vpop.permute.xlu0 %1526
        %1528 = vrot.lane.b32.xlu0 %v963, 108
        %v1529 = vpop.permute.xlu0 %1528
        %v1530 = vsel %vm591, %v1523, %v1525
        %v1531 = vsel %vm591, %v1527, %v1529
        %1534 = vst [vmem:[#allocation3 + $0x290] sm:$0xff] %v1530
        %1535 = vst [vmem:[#allocation3 + $0x298] sm:$0xff] %v1531
        %1536 = vrot.lane.b32.xlu0 %v361, 107
        %v1537 = vpop.permute.xlu0 %1536
        %1538 = vrot.lane.b32.xlu0 %v384, 107
        %v1539 = vpop.permute.xlu0 %1538
        %1540 = vrot.lane.b32.xlu0 %v364, 107
        %v1541 = vpop.permute.xlu0 %1540
        %1542 = vrot.lane.b32.xlu0 %v387, 107
        %v1543 = vpop.permute.xlu0 %1542
        %v1544 = vsel %vm600, %v1537, %v1539
        %v1545 = vsel %vm600, %v1541, %v1543
        %1548 = vst [vmem:[#allocation3 + $0x2a0] sm:$0xff] %v1544
        %1549 = vst [vmem:[#allocation3 + $0x2a8] sm:$0xff] %v1545
        %1550 = vrot.lane.b32.xlu0 %v960, 107
        %v1551 = vpop.permute.xlu0 %1550
        %1552 = vrot.lane.b32.xlu0 %v961, 107
        %v1553 = vpop.permute.xlu0 %1552
        %1554 = vrot.lane.b32.xlu0 %v962, 107
        %v1555 = vpop.permute.xlu0 %1554
        %1556 = vrot.lane.b32.xlu0 %v963, 107
        %v1557 = vpop.permute.xlu0 %1556
        %v1558 = vsel %vm600, %v1551, %v1553
        %v1559 = vsel %vm600, %v1555, %v1557
        %1562 = vst [vmem:[#allocation3 + $0x2b0] sm:$0xff] %v1558
        %1563 = vst [vmem:[#allocation3 + $0x2b8] sm:$0xff] %v1559
        %1564 = vrot.lane.b32.xlu0 %v361, 106
        %v1565 = vpop.permute.xlu0 %1564
        %1566 = vrot.lane.b32.xlu0 %v384, 106
        %v1567 = vpop.permute.xlu0 %1566
        %1568 = vrot.lane.b32.xlu0 %v364, 106
        %v1569 = vpop.permute.xlu0 %1568
        %1570 = vrot.lane.b32.xlu0 %v387, 106
        %v1571 = vpop.permute.xlu0 %1570
        %v1572 = vsel %vm609, %v1565, %v1567
        %v1573 = vsel %vm609, %v1569, %v1571
        %1576 = vst [vmem:[#allocation3 + $0x2c0] sm:$0xff] %v1572
        %1577 = vst [vmem:[#allocation3 + $0x2c8] sm:$0xff] %v1573
        %1578 = vrot.lane.b32.xlu0 %v960, 106
        %v1579 = vpop.permute.xlu0 %1578
        %1580 = vrot.lane.b32.xlu0 %v961, 106
        %v1581 = vpop.permute.xlu0 %1580
        %1582 = vrot.lane.b32.xlu0 %v962, 106
        %v1583 = vpop.permute.xlu0 %1582
        %1584 = vrot.lane.b32.xlu0 %v963, 106
        %v1585 = vpop.permute.xlu0 %1584
        %v1586 = vsel %vm609, %v1579, %v1581
        %v1587 = vsel %vm609, %v1583, %v1585
        %1590 = vst [vmem:[#allocation3 + $0x2d0] sm:$0xff] %v1586
        %1591 = vst [vmem:[#allocation3 + $0x2d8] sm:$0xff] %v1587
        %1592 = vrot.lane.b32.xlu0 %v361, 105
        %v1593 = vpop.permute.xlu0 %1592
        %1594 = vrot.lane.b32.xlu0 %v384, 105
        %v1595 = vpop.permute.xlu0 %1594
        %1596 = vrot.lane.b32.xlu0 %v364, 105
        %v1597 = vpop.permute.xlu0 %1596
        %1598 = vrot.lane.b32.xlu0 %v387, 105
        %v1599 = vpop.permute.xlu0 %1598
        %v1600 = vsel %vm618, %v1593, %v1595
        %v1601 = vsel %vm618, %v1597, %v1599
        %1604 = vst [vmem:[#allocation3 + $0x2e0] sm:$0xff] %v1600
        %1605 = vst [vmem:[#allocation3 + $0x2e8] sm:$0xff] %v1601
        %1606 = vrot.lane.b32.xlu0 %v960, 105
        %v1607 = vpop.permute.xlu0 %1606
        %1608 = vrot.lane.b32.xlu0 %v961, 105
        %v1609 = vpop.permute.xlu0 %1608
        %1610 = vrot.lane.b32.xlu0 %v962, 105
        %v1611 = vpop.permute.xlu0 %1610
        %1612 = vrot.lane.b32.xlu0 %v963, 105
        %v1613 = vpop.permute.xlu0 %1612
        %v1614 = vsel %vm618, %v1607, %v1609
        %v1615 = vsel %vm618, %v1611, %v1613
        %1618 = vst [vmem:[#allocation3 + $0x2f0] sm:$0xff] %v1614
        %1619 = vst [vmem:[#allocation3 + $0x2f8] sm:$0xff] %v1615
        %1620 = vrot.lane.b32.xlu0 %v361, 104
        %v1621 = vpop.permute.xlu0 %1620
        %1622 = vrot.lane.b32.xlu0 %v384, 104
        %v1623 = vpop.permute.xlu0 %1622
        %1624 = vrot.lane.b32.xlu0 %v364, 104
        %v1625 = vpop.permute.xlu0 %1624
        %1626 = vrot.lane.b32.xlu0 %v387, 104
        %v1627 = vpop.permute.xlu0 %1626
        %v1628 = vsel %vm627, %v1621, %v1623
        %v1629 = vsel %vm627, %v1625, %v1627
        %1632 = vst [vmem:[#allocation3 + $0x300] sm:$0xff] %v1628
        %1633 = vst [vmem:[#allocation3 + $0x308] sm:$0xff] %v1629
        %1634 = vrot.lane.b32.xlu0 %v960, 104
        %v1635 = vpop.permute.xlu0 %1634
        %1636 = vrot.lane.b32.xlu0 %v961, 104
        %v1637 = vpop.permute.xlu0 %1636
        %1638 = vrot.lane.b32.xlu0 %v962, 104
        %v1639 = vpop.permute.xlu0 %1638
        %1640 = vrot.lane.b32.xlu0 %v963, 104
        %v1641 = vpop.permute.xlu0 %1640
        %v1642 = vsel %vm627, %v1635, %v1637
        %v1643 = vsel %vm627, %v1639, %v1641
        %1646 = vst [vmem:[#allocation3 + $0x310] sm:$0xff] %v1642
        %1647 = vst [vmem:[#allocation3 + $0x318] sm:$0xff] %v1643
        %v1648 = vld [vmem:[#allocation4] sm:$0xff]
        %v1649 = vld [vmem:[#allocation4 + $0x8] sm:$0xff]
        %v1650 = vld [vmem:[#allocation4 + $0x10] sm:$0xff]
        %v1651 = vld [vmem:[#allocation4 + $0x18] sm:$0xff]
        %v1652 = vld [vmem:[#allocation4 + $0x20] sm:$0xff]
        %v1653 = vld [vmem:[#allocation4 + $0x28] sm:$0xff]
        %v1654 = vld [vmem:[#allocation4 + $0x30] sm:$0xff]
        %v1655 = vld [vmem:[#allocation4 + $0x38] sm:$0xff]
        %v1656 = vld [vmem:[#allocation4 + $0x40] sm:$0xff]
        %v1657 = vld [vmem:[#allocation4 + $0x48] sm:$0xff]
        %v1658 = vld [vmem:[#allocation4 + $0x50] sm:$0xff]
        %v1659 = vld [vmem:[#allocation4 + $0x58] sm:$0xff]
        %v1660 = vld [vmem:[#allocation4 + $0x60] sm:$0xff]
        %v1661 = vld [vmem:[#allocation4 + $0x68] sm:$0xff]
        %v1662 = vld [vmem:[#allocation4 + $0x70] sm:$0xff]
        %v1663 = vld [vmem:[#allocation4 + $0x78] sm:$0xff]
        %v1664 = vld [vmem:[#allocation4 + $0x80] sm:$0xff]
        %v1665 = vld [vmem:[#allocation4 + $0x88] sm:$0xff]
        %v1666 = vld [vmem:[#allocation4 + $0x90] sm:$0xff]
        %v1667 = vld [vmem:[#allocation4 + $0x98] sm:$0xff]
        %v1668 = vld [vmem:[#allocation4 + $0xa0] sm:$0xff]
        %v1669 = vld [vmem:[#allocation4 + $0xa8] sm:$0xff]
        %v1670 = vld [vmem:[#allocation4 + $0xb0] sm:$0xff]
        %v1671 = vld [vmem:[#allocation4 + $0xb8] sm:$0xff]
        %v1672 = vld [vmem:[#allocation4 + $0xc0] sm:$0xff]
        %v1673 = vld [vmem:[#allocation4 + $0xc8] sm:$0xff]
        %v1674 = vld [vmem:[#allocation4 + $0xd0] sm:$0xff]
        %v1675 = vld [vmem:[#allocation4 + $0xd8] sm:$0xff]
        %v1676 = vld [vmem:[#allocation3] sm:$0xff]
        %v1677 = vld [vmem:[#allocation3 + $0x8] sm:$0xff]
        %v1678 = vld [vmem:[#allocation3 + $0x10] sm:$0xff]
        %v1679 = vld [vmem:[#allocation3 + $0x18] sm:$0xff]
        %v1680 = vld [vmem:[#allocation3 + $0x20] sm:$0xff]
        %v1681 = vld [vmem:[#allocation3 + $0x28] sm:$0xff]
        %v1682 = vld [vmem:[#allocation3 + $0x30] sm:$0xff]
        %v1683 = vld [vmem:[#allocation3 + $0x38] sm:$0xff]
        %v1684 = vld [vmem:[#allocation3 + $0x40] sm:$0xff]
        %v1685 = vld [vmem:[#allocation3 + $0x48] sm:$0xff]
        %v1686 = vld [vmem:[#allocation3 + $0x50] sm:$0xff]
        %v1687 = vld [vmem:[#allocation3 + $0x58] sm:$0xff]
        %v1688 = vld [vmem:[#allocation3 + $0x60] sm:$0xff]
        %v1689 = vld [vmem:[#allocation3 + $0x68] sm:$0xff]
        %v1690 = vld [vmem:[#allocation3 + $0x70] sm:$0xff]
        %v1691 = vld [vmem:[#allocation3 + $0x78] sm:$0xff]
        %v1692 = vld [vmem:[#allocation3 + $0x80] sm:$0xff]
        %v1693 = vld [vmem:[#allocation3 + $0x88] sm:$0xff]
        %v1694 = vld [vmem:[#allocation3 + $0x90] sm:$0xff]
        %v1695 = vld [vmem:[#allocation3 + $0x98] sm:$0xff]
        %v1696 = vld [vmem:[#allocation3 + $0xa0] sm:$0xff]
        %v1697 = vld [vmem:[#allocation3 + $0xa8] sm:$0xff]
        %v1698 = vld [vmem:[#allocation3 + $0xb0] sm:$0xff]
        %v1699 = vld [vmem:[#allocation3 + $0xb8] sm:$0xff]
        %v1700 = vld [vmem:[#allocation3 + $0xc0] sm:$0xff]
        %v1701 = vld [vmem:[#allocation3 + $0xc8] sm:$0xff]
        %v1702 = vld [vmem:[#allocation3 + $0xd0] sm:$0xff]
        %v1703 = vld [vmem:[#allocation3 + $0xd8] sm:$0xff]
        %v1704 = vld [vmem:[#allocation3 + $0xe0] sm:$0xff]
        %v1705 = vld [vmem:[#allocation3 + $0xe8] sm:$0xff]
        %v1706 = vld [vmem:[#allocation3 + $0xf0] sm:$0xff]
        %v1707 = vld [vmem:[#allocation3 + $0xf8] sm:$0xff]
        %v1708 = vld [vmem:[#allocation3 + $0x100] sm:$0xff]
        %v1709 = vld [vmem:[#allocation3 + $0x108] sm:$0xff]
        %v1710 = vld [vmem:[#allocation3 + $0x110] sm:$0xff]
        %v1711 = vld [vmem:[#allocation3 + $0x118] sm:$0xff]
        %v1712 = vld [vmem:[#allocation3 + $0x120] sm:$0xff]
        %v1713 = vld [vmem:[#allocation3 + $0x128] sm:$0xff]
        %v1714 = vld [vmem:[#allocation3 + $0x130] sm:$0xff]
        %v1715 = vld [vmem:[#allocation3 + $0x138] sm:$0xff]
        %v1716 = vld [vmem:[#allocation3 + $0x140] sm:$0xff]
        %v1717 = vld [vmem:[#allocation3 + $0x148] sm:$0xff]
        %v1718 = vld [vmem:[#allocation3 + $0x150] sm:$0xff]
        %v1719 = vld [vmem:[#allocation3 + $0x158] sm:$0xff]
        %v1720 = vld [vmem:[#allocation3 + $0x160] sm:$0xff]
        %v1721 = vld [vmem:[#allocation3 + $0x168] sm:$0xff]
        %v1722 = vld [vmem:[#allocation3 + $0x170] sm:$0xff]
        %v1723 = vld [vmem:[#allocation3 + $0x178] sm:$0xff]
        %v1724 = vld [vmem:[#allocation3 + $0x180] sm:$0xff]
        %v1725 = vld [vmem:[#allocation3 + $0x188] sm:$0xff]
        %v1726 = vld [vmem:[#allocation3 + $0x190] sm:$0xff]
        %v1727 = vld [vmem:[#allocation3 + $0x198] sm:$0xff]
        %v1728 = vld [vmem:[#allocation3 + $0x1a0] sm:$0xff]
        %v1729 = vld [vmem:[#allocation3 + $0x1a8] sm:$0xff]
        %v1730 = vld [vmem:[#allocation3 + $0x1b0] sm:$0xff]
        %v1731 = vld [vmem:[#allocation3 + $0x1b8] sm:$0xff]
        %v1732 = vld [vmem:[#allocation3 + $0x1c0] sm:$0xff]
        %v1733 = vld [vmem:[#allocation3 + $0x1c8] sm:$0xff]
        %v1734 = vld [vmem:[#allocation3 + $0x1d0] sm:$0xff]
        %v1735 = vld [vmem:[#allocation3 + $0x1d8] sm:$0xff]
        %v1736 = vld [vmem:[#allocation3 + $0x1e0] sm:$0xff]
        %v1737 = vld [vmem:[#allocation3 + $0x1e8] sm:$0xff]
        %v1738 = vld [vmem:[#allocation3 + $0x1f0] sm:$0xff]
        %v1739 = vld [vmem:[#allocation3 + $0x1f8] sm:$0xff]
        %v1740 = vld [vmem:[#allocation3 + $0x200] sm:$0xff]
        %v1741 = vld [vmem:[#allocation3 + $0x208] sm:$0xff]
        %v1742 = vld [vmem:[#allocation3 + $0x210] sm:$0xff]
        %v1743 = vld [vmem:[#allocation3 + $0x218] sm:$0xff]
        %v1744 = vld [vmem:[#allocation3 + $0x220] sm:$0xff]
        %v1745 = vld [vmem:[#allocation3 + $0x228] sm:$0xff]
        %v1746 = vld [vmem:[#allocation3 + $0x230] sm:$0xff]
        %v1747 = vld [vmem:[#allocation3 + $0x238] sm:$0xff]
        %v1748 = vld [vmem:[#allocation3 + $0x240] sm:$0xff]
        %v1749 = vld [vmem:[#allocation3 + $0x248] sm:$0xff]
        %v1750 = vld [vmem:[#allocation3 + $0x250] sm:$0xff]
        %v1751 = vld [vmem:[#allocation3 + $0x258] sm:$0xff]
        %v1752 = vld [vmem:[#allocation3 + $0x260] sm:$0xff]
        %v1753 = vld [vmem:[#allocation3 + $0x268] sm:$0xff]
        %v1754 = vld [vmem:[#allocation3 + $0x270] sm:$0xff]
        %v1755 = vld [vmem:[#allocation3 + $0x278] sm:$0xff]
        %v1756 = vld [vmem:[#allocation3 + $0x280] sm:$0xff]
        %v1757 = vld [vmem:[#allocation3 + $0x288] sm:$0xff]
        %v1758 = vld [vmem:[#allocation3 + $0x290] sm:$0xff]
        %v1759 = vld [vmem:[#allocation3 + $0x298] sm:$0xff]
        %v1760 = vld [vmem:[#allocation3 + $0x2a0] sm:$0xff]
        %v1761 = vld [vmem:[#allocation3 + $0x2a8] sm:$0xff]
        %v1762 = vld [vmem:[#allocation3 + $0x2b0] sm:$0xff]
        %v1763 = vld [vmem:[#allocation3 + $0x2b8] sm:$0xff]
        %v1764 = vld [vmem:[#allocation3 + $0x2c0] sm:$0xff]
        %v1765 = vld [vmem:[#allocation3 + $0x2c8] sm:$0xff]
        %v1766 = vld [vmem:[#allocation3 + $0x2d0] sm:$0xff]
        %v1767 = vld [vmem:[#allocation3 + $0x2d8] sm:$0xff]
        %v1768 = vld [vmem:[#allocation3 + $0x2e0] sm:$0xff]
        %v1769 = vld [vmem:[#allocation3 + $0x2e8] sm:$0xff]
        %v1770 = vld [vmem:[#allocation3 + $0x2f0] sm:$0xff]
        %v1771 = vld [vmem:[#allocation3 + $0x2f8] sm:$0xff]
        %v1772 = vld [vmem:[#allocation3 + $0x300] sm:$0xff]
        %v1773 = vld [vmem:[#allocation3 + $0x308] sm:$0xff]
        %v1774 = vld [vmem:[#allocation3 + $0x310] sm:$0xff]
        %v1775 = vld [vmem:[#allocation3 + $0x318] sm:$0xff]
        %vm1776 = vcmask 261120
        %v1778 = vsel %vm1776, %v1654, 0
        %v1781 = vsel %vm1776, %v1661, 0
        %v1784 = vsel %vm1776, %v1668, 0
        %v1787 = vsel %vm1776, %v1675, 0
        %1789 = vmatpush.msra.mxu0 %v1691
        %1790 = vmatpush.msra.mxu0 %v1690
        %1791 = vmatpush.msra.mxu0 %v1689
        %1792 = vmatpush.msra.mxu0 %v1688
        %1793 = vmatpush.msra.mxu0 %v1687
        %1794 = vmatpush.msra.mxu0 %v1686
        %1795 = vmatpush.msra.mxu0 %v1685
        %1796 = vmatpush.msra.mxu0 %v1684
        %1797 = vmatpush.msra.mxu0 %v1683
        %1798 = vmatpush.msra.mxu0 %v1682
        %1799 = vmatpush.msra.mxu0 %v1681
        %1800 = vmatpush.msra.mxu0 %v1680
        %1801 = vmatpush.msra.mxu0 %v1679
        %1802 = vmatpush.msra.mxu0 %v1678
        %1803 = vmatpush.msra.mxu0 %v1677
        %1804 = vmatpush.msra.mxu0 %v1676
        %1805 = vmatmul.f32.gmra.mxu0 %v1648
        %v1806 = vpop.f32.mrf.mxu0
        %v1807 = vadd.f32 0.0, %v1806
        %1808 = vmatmul.f32.gmra.mxu0 %v1655
        %v1809 = vpop.f32.mrf.mxu0
        %v1810 = vadd.f32 0.0, %v1809
        %1811 = vmatmul.f32.gmra.mxu0 %v1662
        %v1812 = vpop.f32.mrf.mxu0
        %v1813 = vadd.f32 0.0, %v1812
        %1814 = vmatmul.f32.gmra.mxu0 %v1669
        %v1815 = vpop.f32.mrf.mxu0
        %v1816 = vadd.f32 0.0, %v1815
        %1817 = vdwg.mxu0
        %1818 = vmatpush.msra.mxu0 %v1707
        %1819 = vmatpush.msra.mxu0 %v1706
        %1820 = vmatpush.msra.mxu0 %v1705
        %1821 = vmatpush.msra.mxu0 %v1704
        %1822 = vmatpush.msra.mxu0 %v1703
        %1823 = vmatpush.msra.mxu0 %v1702
        %1824 = vmatpush.msra.mxu0 %v1701
        %1825 = vmatpush.msra.mxu0 %v1700
        %1826 = vmatpush.msra.mxu0 %v1699
        %1827 = vmatpush.msra.mxu0 %v1698
        %1828 = vmatpush.msra.mxu0 %v1697
        %1829 = vmatpush.msra.mxu0 %v1696
        %1830 = vmatpush.msra.mxu0 %v1695
        %1831 = vmatpush.msra.mxu0 %v1694
        %1832 = vmatpush.msra.mxu0 %v1693
        %1833 = vmatpush.msra.mxu0 %v1692
        %1834 = vmatmul.f32.gmra.mxu0 %v1649
        %v1835 = vpop.f32.mrf.mxu0
        %v1836 = vadd.f32 %v1807, %v1835
        %1837 = vmatmul.f32.gmra.mxu0 %v1656
        %v1838 = vpop.f32.mrf.mxu0
        %v1839 = vadd.f32 %v1810, %v1838
        %1840 = vmatmul.f32.gmra.mxu0 %v1663
        %v1841 = vpop.f32.mrf.mxu0
        %v1842 = vadd.f32 %v1813, %v1841
        %1843 = vmatmul.f32.gmra.mxu0 %v1670
        %v1844 = vpop.f32.mrf.mxu0
        %v1845 = vadd.f32 %v1816, %v1844
        %1846 = vdwg.mxu0
        %1847 = vmatpush.msra.mxu0 %v1723
        %1848 = vmatpush.msra.mxu0 %v1722
        %1849 = vmatpush.msra.mxu0 %v1721
        %1850 = vmatpush.msra.mxu0 %v1720
        %1851 = vmatpush.msra.mxu0 %v1719
        %1852 = vmatpush.msra.mxu0 %v1718
        %1853 = vmatpush.msra.mxu0 %v1717
        %1854 = vmatpush.msra.mxu0 %v1716
        %1855 = vmatpush.msra.mxu0 %v1715
        %1856 = vmatpush.msra.mxu0 %v1714
        %1857 = vmatpush.msra.mxu0 %v1713
        %1858 = vmatpush.msra.mxu0 %v1712
        %1859 = vmatpush.msra.mxu0 %v1711
        %1860 = vmatpush.msra.mxu0 %v1710
        %1861 = vmatpush.msra.mxu0 %v1709
        %1862 = vmatpush.msra.mxu0 %v1708
        %1863 = vmatmul.f32.gmra.mxu0 %v1650
        %v1864 = vpop.f32.mrf.mxu0
        %v1865 = vadd.f32 %v1836, %v1864
        %1866 = vmatmul.f32.gmra.mxu0 %v1657
        %v1867 = vpop.f32.mrf.mxu0
        %v1868 = vadd.f32 %v1839, %v1867
        %1869 = vmatmul.f32.gmra.mxu0 %v1664
        %v1870 = vpop.f32.mrf.mxu0
        %v1871 = vadd.f32 %v1842, %v1870
        %1872 = vmatmul.f32.gmra.mxu0 %v1671
        %v1873 = vpop.f32.mrf.mxu0
        %v1874 = vadd.f32 %v1845, %v1873
        %1875 = vdwg.mxu0
        %1876 = vmatpush.msra.mxu0 %v1739
        %1877 = vmatpush.msra.mxu0 %v1738
        %1878 = vmatpush.msra.mxu0 %v1737
        %1879 = vmatpush.msra.mxu0 %v1736
        %1880 = vmatpush.msra.mxu0 %v1735
        %1881 = vmatpush.msra.mxu0 %v1734
        %1882 = vmatpush.msra.mxu0 %v1733
        %1883 = vmatpush.msra.mxu0 %v1732
        %1884 = vmatpush.msra.mxu0 %v1731
        %1885 = vmatpush.msra.mxu0 %v1730
        %1886 = vmatpush.msra.mxu0 %v1729
        %1887 = vmatpush.msra.mxu0 %v1728
        %1888 = vmatpush.msra.mxu0 %v1727
        %1889 = vmatpush.msra.mxu0 %v1726
        %1890 = vmatpush.msra.mxu0 %v1725
        %1891 = vmatpush.msra.mxu0 %v1724
        %1892 = vmatmul.f32.gmra.mxu0 %v1651
        %v1893 = vpop.f32.mrf.mxu0
        %v1894 = vadd.f32 %v1865, %v1893
        %1895 = vmatmul.f32.gmra.mxu0 %v1658
        %v1896 = vpop.f32.mrf.mxu0
        %v1897 = vadd.f32 %v1868, %v1896
        %1898 = vmatmul.f32.gmra.mxu0 %v1665
        %v1899 = vpop.f32.mrf.mxu0
        %v1900 = vadd.f32 %v1871, %v1899
        %1901 = vmatmul.f32.gmra.mxu0 %v1672
        %v1902 = vpop.f32.mrf.mxu0
        %v1903 = vadd.f32 %v1874, %v1902
        %1904 = vdwg.mxu0
        %1905 = vmatpush.msra.mxu0 %v1755
        %1906 = vmatpush.msra.mxu0 %v1754
        %1907 = vmatpush.msra.mxu0 %v1753
        %1908 = vmatpush.msra.mxu0 %v1752
        %1909 = vmatpush.msra.mxu0 %v1751
        %1910 = vmatpush.msra.mxu0 %v1750
        %1911 = vmatpush.msra.mxu0 %v1749
        %1912 = vmatpush.msra.mxu0 %v1748
        %1913 = vmatpush.msra.mxu0 %v1747
        %1914 = vmatpush.msra.mxu0 %v1746
        %1915 = vmatpush.msra.mxu0 %v1745
        %1916 = vmatpush.msra.mxu0 %v1744
        %1917 = vmatpush.msra.mxu0 %v1743
        %1918 = vmatpush.msra.mxu0 %v1742
        %1919 = vmatpush.msra.mxu0 %v1741
        %1920 = vmatpush.msra.mxu0 %v1740
        %1921 = vmatmul.f32.gmra.mxu0 %v1652
        %v1922 = vpop.f32.mrf.mxu0
        %v1923 = vadd.f32 %v1894, %v1922
        %1924 = vmatmul.f32.gmra.mxu0 %v1659
        %v1925 = vpop.f32.mrf.mxu0
        %v1926 = vadd.f32 %v1897, %v1925
        %1927 = vmatmul.f32.gmra.mxu0 %v1666
        %v1928 = vpop.f32.mrf.mxu0
        %v1929 = vadd.f32 %v1900, %v1928
        %1930 = vmatmul.f32.gmra.mxu0 %v1673
        %v1931 = vpop.f32.mrf.mxu0
        %v1932 = vadd.f32 %v1903, %v1931
        %1933 = vdwg.mxu0
        %1934 = vmatpush.msra.mxu0 %v1771
        %1935 = vmatpush.msra.mxu0 %v1770
        %1936 = vmatpush.msra.mxu0 %v1769
        %1937 = vmatpush.msra.mxu0 %v1768
        %1938 = vmatpush.msra.mxu0 %v1767
        %1939 = vmatpush.msra.mxu0 %v1766
        %1940 = vmatpush.msra.mxu0 %v1765
        %1941 = vmatpush.msra.mxu0 %v1764
        %1942 = vmatpush.msra.mxu0 %v1763
        %1943 = vmatpush.msra.mxu0 %v1762
        %1944 = vmatpush.msra.mxu0 %v1761
        %1945 = vmatpush.msra.mxu0 %v1760
        %1946 = vmatpush.msra.mxu0 %v1759
        %1947 = vmatpush.msra.mxu0 %v1758
        %1948 = vmatpush.msra.mxu0 %v1757
        %1949 = vmatpush.msra.mxu0 %v1756
        %1950 = vmatmul.f32.gmra.mxu0 %v1653
        %v1951 = vpop.f32.mrf.mxu0
        %v1952 = vadd.f32 %v1923, %v1951
        %1953 = vmatmul.f32.gmra.mxu0 %v1660
        %v1954 = vpop.f32.mrf.mxu0
        %v1955 = vadd.f32 %v1926, %v1954
        %1956 = vmatmul.f32.gmra.mxu0 %v1667
        %v1957 = vpop.f32.mrf.mxu0
        %v1958 = vadd.f32 %v1929, %v1957
        %1959 = vmatmul.f32.gmra.mxu0 %v1674
        %v1960 = vpop.f32.mrf.mxu0
        %v1961 = vadd.f32 %v1932, %v1960
        %1962 = vdwg.mxu0
        %1963 = vmatpush.msra.mxu0 0.0
        %1964 = vmatpush.msra.mxu0 0.0
        %1965 = vmatpush.msra.mxu0 0.0
        %1966 = vmatpush.msra.mxu0 0.0
        %1967 = vmatpush.msra.mxu0 0.0
        %1968 = vmatpush.msra.mxu0 0.0
        %1969 = vmatpush.msra.mxu0 0.0
        %1970 = vmatpush.msra.mxu0 0.0
        %1971 = vmatpush.msra.mxu0 0.0
        %1972 = vmatpush.msra.mxu0 0.0
        %1973 = vmatpush.msra.mxu0 0.0
        %1974 = vmatpush.msra.mxu0 0.0
        %1975 = vmatpush.msra.mxu0 %v1775
        %1976 = vmatpush.msra.mxu0 %v1774
        %1977 = vmatpush.msra.mxu0 %v1773
        %1978 = vmatpush.msra.mxu0 %v1772
        %1979 = vmatmul.f32.gmra.mxu0 %v1778
        %v1980 = vpop.f32.mrf.mxu0
        %v1981 = vadd.f32 %v1952, %v1980
        %1982 = vmatmul.f32.gmra.mxu0 %v1781
        %v1983 = vpop.f32.mrf.mxu0
        %v1984 = vadd.f32 %v1955, %v1983
        %1985 = vmatmul.f32.gmra.mxu0 %v1784
        %v1986 = vpop.f32.mrf.mxu0
        %v1987 = vadd.f32 %v1958, %v1986
        %1988 = vmatmul.f32.gmra.mxu0 %v1787
        %v1989 = vpop.f32.mrf.mxu0
        %v1990 = vadd.f32 %v1961, %v1989
        %1991 = vdwg.mxu0
        %v1992 = vld [vmem:[%s4] sm:$0xff]
        %v1993 = vld [vmem:[%s4 + $0x8] sm:$0xff]
        %v1994 = vld [vmem:[%s4 + $0x10] sm:$0xff]
        %v1995 = vld [vmem:[%s4 + $0x18] sm:$0xff]
        %1997 = vset.pattern.permute.xlu0 0
        %1998 = vperm.xlu0 %1997, %v1992
        %v1999 = vpop.permute.xlu0 %1998
        %2002 = vset.pattern.permute.xlu0 0
        %2003 = vperm.xlu0 %2002, %v1993
        %v2004 = vpop.permute.xlu0 %2003
        %2007 = vset.pattern.permute.xlu0 0
        %2008 = vperm.xlu0 %2007, %v1994
        %v2009 = vpop.permute.xlu0 %2008
        %2012 = vset.pattern.permute.xlu0 0
        %2013 = vperm.xlu0 %2012, %v1995
        %v2014 = vpop.permute.xlu0 %2013
        %v2016 = vmul.f32 %v1981, %v1999
        %v2017 = vmul.f32 %v1984, %v2004
        %v2018 = vmul.f32 %v1987, %v2009
        %v2019 = vmul.f32 %v1990, %v2014
        %v2020 = vld [vmem:[%s5] sm:$0xff]
        %v2021 = vld [vmem:[%s5 + $0x8] sm:$0xff]
        %v2022 = vld [vmem:[%s5 + $0x10] sm:$0xff]
        %v2023 = vld [vmem:[%s5 + $0x18] sm:$0xff]
        %2025 = vset.pattern.permute.xlu0 0
        %2026 = vperm.xlu0 %2025, %v2020
        %v2027 = vpop.permute.xlu0 %2026
        %2030 = vset.pattern.permute.xlu0 0
        %2031 = vperm.xlu0 %2030, %v2021
        %v2032 = vpop.permute.xlu0 %2031
        %2035 = vset.pattern.permute.xlu0 0
        %2036 = vperm.xlu0 %2035, %v2022
        %v2037 = vpop.permute.xlu0 %2036
        %2040 = vset.pattern.permute.xlu0 0
        %2041 = vperm.xlu0 %2040, %v2023
        %v2042 = vpop.permute.xlu0 %2041
        %v2044 = vadd.f32 %v2016, %v2027
        %v2045 = vadd.f32 %v2017, %v2032
        %v2046 = vadd.f32 %v2018, %v2037
        %v2047 = vadd.f32 %v2019, %v2042
        %v2048 = vmul.f32 %v2044, 0.70710677
        %v2049 = vmul.f32 %v2045, 0.70710677
        %v2050 = vmul.f32 %v2046, 0.70710677
        %v2051 = vmul.f32 %v2047, 0.70710677
        %v2052 = vand.u32 2147483647, %v2048
        %v2053 = vand.u32 2147483647, %v2049
        %v2054 = vand.u32 2147483647, %v2050
        %v2055 = vand.u32 2147483647, %v2051
        %v2056 = vmul.f32 %v2052, 0.3275911
        %v2057 = vmul.f32 %v2053, 0.3275911
        %v2058 = vmul.f32 %v2054, 0.3275911
        %v2059 = vmul.f32 %v2055, 0.3275911
        %v2060 = vadd.f32 %v2056, 1.0
        %v2061 = vadd.f32 %v2057, 1.0
        %v2062 = vadd.f32 %v2058, 1.0
        %v2063 = vadd.f32 %v2059, 1.0
        %v2064 = vrcp.pop %v2060
        %v2065 = vmul.f32 %v2060, %v2064
        %v2066 = vsub.f32 1.0, %v2065
        %v2067 = vmul.f32 %v2064, %v2066
        %v2068 = vadd.f32 %v2064, %v2067
        %vm2069 = vweird.f32 %v2060
        %vm2070 = vweird.f32 %v2064
        %vm2071 = vmor %vm2069, %vm2070
        %v2072 = vsel %vm2071, %v2064, %v2068
        %v2073 = vand.u32 2147483647, %v2060
        %vm2074 = vcmp.eq.f32.partialorder %v2073, 8.507059e+37
        %v2075 = vand.u32 %v2060, 2147483648
        %v2076 = vor.u32 1.1754944e-38, %v2075
        %v2077 = vsel %vm2074, %v2076, %v2072
        %v2078 = vmul.f32 1.0, %v2077
        %v2079 = vrcp.pop %v2061
        %v2080 = vmul.f32 %v2061, %v2079
        %v2081 = vsub.f32 1.0, %v2080
        %v2082 = vmul.f32 %v2079, %v2081
        %v2083 = vadd.f32 %v2079, %v2082
        %vm2084 = vweird.f32 %v2061
        %vm2085 = vweird.f32 %v2079
        %vm2086 = vmor %vm2084, %vm2085
        %v2087 = vsel %vm2086, %v2079, %v2083
        %v2088 = vand.u32 2147483647, %v2061
        %vm2089 = vcmp.eq.f32.partialorder %v2088, 8.507059e+37
        %v2090 = vand.u32 %v2061, 2147483648
        %v2091 = vor.u32 1.1754944e-38, %v2090
        %v2092 = vsel %vm2089, %v2091, %v2087
        %v2093 = vmul.f32 1.0, %v2092
        %v2094 = vrcp.pop %v2062
        %v2095 = vmul.f32 %v2062, %v2094
        %v2096 = vsub.f32 1.0, %v2095
        %v2097 = vmul.f32 %v2094, %v2096
        %v2098 = vadd.f32 %v2094, %v2097
        %vm2099 = vweird.f32 %v2062
        %vm2100 = vweird.f32 %v2094
        %vm2101 = vmor %vm2099, %vm2100
        %v2102 = vsel %vm2101, %v2094, %v2098
        %v2103 = vand.u32 2147483647, %v2062
        %vm2104 = vcmp.eq.f32.partialorder %v2103, 8.507059e+37
        %v2105 = vand.u32 %v2062, 2147483648
        %v2106 = vor.u32 1.1754944e-38, %v2105
        %v2107 = vsel %vm2104, %v2106, %v2102
        %v2108 = vmul.f32 1.0, %v2107
        %v2109 = vrcp.pop %v2063
        %v2110 = vmul.f32 %v2063, %v2109
        %v2111 = vsub.f32 1.0, %v2110
        %v2112 = vmul.f32 %v2109, %v2111
        %v2113 = vadd.f32 %v2109, %v2112
        %vm2114 = vweird.f32 %v2063
        %vm2115 = vweird.f32 %v2109
        %vm2116 = vmor %vm2114, %vm2115
        %v2117 = vsel %vm2116, %v2109, %v2113
        %v2118 = vand.u32 2147483647, %v2063
        %vm2119 = vcmp.eq.f32.partialorder %v2118, 8.507059e+37
        %v2120 = vand.u32 %v2063, 2147483648
        %v2121 = vor.u32 1.1754944e-38, %v2120
        %v2122 = vsel %vm2119, %v2121, %v2117
        %v2123 = vmul.f32 1.0, %v2122
        %v2124 = vmul.f32 %v2078, 1.0614054
        %v2125 = vmul.f32 %v2093, 1.0614054
        %v2126 = vmul.f32 %v2108, 1.0614054
        %v2127 = vmul.f32 %v2123, 1.0614054
        %v2128 = vadd.f32 %v2124, -1.4531521
        %v2129 = vadd.f32 %v2125, -1.4531521
        %v2130 = vadd.f32 %v2126, -1.4531521
        %v2131 = vadd.f32 %v2127, -1.4531521
        %v2132 = vmul.f32 %v2078, %v2128
        %v2133 = vmul.f32 %v2093, %v2129
        %v2134 = vmul.f32 %v2108, %v2130
        %v2135 = vmul.f32 %v2123, %v2131
        %v2136 = vadd.f32 %v2132, 1.4214138
        %v2137 = vadd.f32 %v2133, 1.4214138
        %v2138 = vadd.f32 %v2134, 1.4214138
        %v2139 = vadd.f32 %v2135, 1.4214138
        %v2140 = vmul.f32 %v2078, %v2136
        %v2141 = vmul.f32 %v2093, %v2137
        %v2142 = vmul.f32 %v2108, %v2138
        %v2143 = vmul.f32 %v2123, %v2139
        %v2144 = vadd.f32 %v2140, -0.28449672
        %v2145 = vadd.f32 %v2141, -0.28449672
        %v2146 = vadd.f32 %v2142, -0.28449672
        %v2147 = vadd.f32 %v2143, -0.28449672
        %v2148 = vmul.f32 %v2078, %v2144
        %v2149 = vmul.f32 %v2093, %v2145
        %v2150 = vmul.f32 %v2108, %v2146
        %v2151 = vmul.f32 %v2123, %v2147
        %v2152 = vadd.f32 %v2148, 0.2548296
        %v2153 = vadd.f32 %v2149, 0.2548296
        %v2154 = vadd.f32 %v2150, 0.2548296
        %v2155 = vadd.f32 %v2151, 0.2548296
        %v2156 = vmul.f32 %v2078, %v2152
        %v2157 = vmul.f32 %v2093, %v2153
        %v2158 = vmul.f32 %v2108, %v2154
        %v2159 = vmul.f32 %v2123, %v2155
        %v2160 = vsub.f32 0.0, %v2052
        %v2161 = vsub.f32 0.0, %v2053
        %v2162 = vsub.f32 0.0, %v2054
        %v2163 = vsub.f32 0.0, %v2055
        %v2164 = vmul.f32 %v2160, %v2052
        %v2165 = vmul.f32 %v2161, %v2053
        %v2166 = vmul.f32 %v2162, %v2054
        %v2167 = vmul.f32 %v2163, %v2055
        %v2168 = vmul.f32 %v2164, 1.442695
        %v2169 = vpow.pop %v2168
        %v2170 = vmul.f32 %v2165, 1.442695
        %v2171 = vpow.pop %v2170
        %v2172 = vmul.f32 %v2166, 1.442695
        %v2173 = vpow.pop %v2172
        %v2174 = vmul.f32 %v2167, 1.442695
        %v2175 = vpow.pop %v2174
        %v2176 = vmul.f32 %v2156, %v2169
        %v2177 = vmul.f32 %v2157, %v2171
        %v2178 = vmul.f32 %v2158, %v2173
        %v2179 = vmul.f32 %v2159, %v2175
        %v2180 = vsub.f32 1.0, %v2176
        %v2181 = vsub.f32 1.0, %v2177
        %v2182 = vsub.f32 1.0, %v2178
        %v2183 = vsub.f32 1.0, %v2179
        %vm2184 = vcmp.ge.f32.partialorder %v2048, 0.0
        %vm2185 = vcmp.ge.f32.partialorder %v2049, 0.0
        %vm2186 = vcmp.ge.f32.partialorder %v2050, 0.0
        %vm2187 = vcmp.ge.f32.partialorder %v2051, 0.0
        %v2188 = vsub.f32 0.0, %v2180
        %v2189 = vsub.f32 0.0, %v2181
        %v2190 = vsub.f32 0.0, %v2182
        %v2191 = vsub.f32 0.0, %v2183
        %v2192 = vsel %vm2184, %v2180, %v2188
        %v2193 = vsel %vm2185, %v2181, %v2189
        %v2194 = vsel %vm2186, %v2182, %v2190
        %v2195 = vsel %vm2187, %v2183, %v2191
        %v2196 = vmul.f32 %v2044, 0.5
        %v2197 = vmul.f32 %v2045, 0.5
        %v2198 = vmul.f32 %v2046, 0.5
        %v2199 = vmul.f32 %v2047, 0.5
        %v2200 = vadd.f32 %v2192, 1.0
        %v2201 = vadd.f32 %v2193, 1.0
        %v2202 = vadd.f32 %v2194, 1.0
        %v2203 = vadd.f32 %v2195, 1.0
        %v2204 = vmul.f32 %v2196, %v2200
        %v2205 = vmul.f32 %v2197, %v2201
        %v2206 = vmul.f32 %v2198, %v2202
        %v2207 = vmul.f32 %v2199, %v2203
        %v2208 = vld [vmem:[%s6] sm:$0xff]
        %v2209 = vld [vmem:[%s6 + $0x8] sm:$0xff]
        %v2210 = vld [vmem:[%s6 + $0x10] sm:$0xff]
        %v2211 = vld [vmem:[%s6 + $0x18] sm:$0xff]
        %v2212 = vld [vmem:[%s6 + $0x20] sm:$0xff]
        %v2213 = vld [vmem:[%s6 + $0x28] sm:$0xff]
        %v2214 = vld [vmem:[%s6 + $0x30] sm:$0xff]
        %v2215 = vld [vmem:[%s6 + $0x38] sm:$0xff]
        %v2216 = vld [vmem:[%s6 + $0x40] sm:$0xff]
        %v2217 = vld [vmem:[%s6 + $0x48] sm:$0xff]
        %v2218 = vld [vmem:[%s6 + $0x50] sm:$0xff]
        %v2219 = vld [vmem:[%s6 + $0x58] sm:$0xff]
        %v2220 = vld [vmem:[%s6 + $0x60] sm:$0xff]
        %v2221 = vld [vmem:[%s6 + $0x68] sm:$0xff]
        %v2222 = vld [vmem:[%s6 + $0x70] sm:$0xff]
        %v2223 = vld [vmem:[%s6 + $0x78] sm:$0xff]
        %2224 = vmatpush.msra.mxu0 %v2223
        %2225 = vmatpush.msra.mxu0 %v2222
        %2226 = vmatpush.msra.mxu0 %v2221
        %2227 = vmatpush.msra.mxu0 %v2220
        %2228 = vmatpush.msra.mxu0 %v2219
        %2229 = vmatpush.msra.mxu0 %v2218
        %2230 = vmatpush.msra.mxu0 %v2217
        %2231 = vmatpush.msra.mxu0 %v2216
        %2232 = vmatpush.msra.mxu0 %v2215
        %2233 = vmatpush.msra.mxu0 %v2214
        %2234 = vmatpush.msra.mxu0 %v2213
        %2235 = vmatpush.msra.mxu0 %v2212
        %2236 = vmatpush.msra.mxu0 %v2211
        %2237 = vmatpush.msra.mxu0 %v2210
        %2238 = vmatpush.msra.mxu0 %v2209
        %2239 = vmatpush.msra.mxu0 %v2208
        %2240 = vmatmul.f32.gmra.mxu0 %v2204
        %v2241 = vpop.f32.mrf.mxu0
        %v2242 = vadd.f32 0.0, %v2241
        %2243 = vmatmul.f32.gmra.mxu0 %v2205
        %v2244 = vpop.f32.mrf.mxu0
        %v2245 = vadd.f32 0.0, %v2244
        %2246 = vmatmul.f32.gmra.mxu0 %v2206
        %v2247 = vpop.f32.mrf.mxu0
        %v2248 = vadd.f32 0.0, %v2247
        %2249 = vmatmul.f32.gmra.mxu0 %v2207
        %v2250 = vpop.f32.mrf.mxu0
        %v2251 = vadd.f32 0.0, %v2250
        %2252 = vdwg.mxu0
        %2253 = vst.msk [vmem:[%s312] sm:$0xff] %vm1776, %v2242
        %2254 = vst.msk [vmem:[%s312 + $0x8] sm:$0xff] %vm1776, %v2245
        %2255 = vst.msk [vmem:[%s312 + $0x10] sm:$0xff] %vm1776, %v2248
        %2256 = vst.msk [vmem:[%s312 + $0x18] sm:$0xff] %vm1776, %v2251
        %s2257 = sand.u32 %s198, 1
        %s2258 = scalar_lea.sflag [#allocation6], %s2257
        %s2259 = sand.u32 %s198, 1
        %s2260 = smul.addr %s2259, 32
        %s2261 = scalar_lea.vmem [#allocation7], %s2260
        // Predicated region
        $region53: #{tpu_custom_call.1} parent=47 // pred_check
          %p2262 = pneg %p208
        $region54: #{tpu_custom_call.1} parent=47 // pred_check_branch
          %2264 = sbr.rel (%p2262) target = $region56
        $region55: #{tpu_custom_call.1} parent=47 // pred_region
          %2266 = vsyncadd %s2258, 0
          %s2267 = smul.addr %s26, 4
          %s2268 = sadd.s32 %s27, %s2267
          %s2269 = smul.addr %s2268, 8
          %s2270 = scalar_lea.hbm %s7, %s2269
          %s2271 = sshll.u32 %s2261, 4
          %s2272 = int_to_ptr.vmem [resolvable:$true] %s2271
          %s2273 = sshll.u32 %s2270, 4
          %s2274 = int_to_ptr.hbm [resolvable:$true] %s2273
          %2279 = dma.vmem_to_hbm [thread:$0]  %s2272, 512, %s2274, %s2258, 128, 128, 8
        $region56: #{tpu_custom_call.1} parent=47 // pred_fallthru
          _
      $region48: #{tpu_custom_call.1} parent=5 // pred_fallthru
        _
      %p2280 = scmp.le.s32.totalorder 2, %s17
      // Predicated region
      $region57: #{tpu_custom_call.1} parent=5 // pred_check
        %p2281 = pneg %p2280
      $region58: #{tpu_custom_call.1} parent=5 // pred_check_branch
        %2283 = sbr.rel (%p2281) target = $region60
      $region59: #{tpu_custom_call.1} parent=5 // pred_region
        %s2284 = ssub.s32 %s17, 2
        // Predicated region
        $region61: #{tpu_custom_call.1} parent=59 // pred_check
          %p2285 = pneg %p214
        $region62: #{tpu_custom_call.1} parent=59 // pred_check_branch
          %2287 = sbr.rel (%p2285) target = $region64
        $region63: #{tpu_custom_call.1} parent=59 // pred_region
          %s2288 = sand.u32 %s199, 1
          %s2289 = scalar_lea.sflag [#allocation6], %s2288
          %s2290 = sand.u32 %s199, 1
          %s2291 = smul.addr %s2290, 32
          %s2292 = scalar_lea.vmem [#allocation7], %s2291
          %2294 = dma.done %s2289, 512
        $region64: #{tpu_custom_call.1} parent=59 // pred_fallthru
          _
      $region60: #{tpu_custom_call.1} parent=5 // pred_fallthru
        _
    $region6: #{tpu_custom_call.1} parent=1 // loop_footer
      %s21 = sadd.s32 1, %s17
    $region7: #{tpu_custom_call.1} parent=1 // loop_footer_branch
      %16 = sbr.rel target = $region3
    $region8: #{tpu_custom_call.1} parent=1 // loop_exit
      _
    %2295 = vsyncpa [#allocation5], 1
    %s2296 = scalar_lea.sflag [#allocation5], 1
    %2297 = vsyncpa %s2296, 1
    %2298 = vsyncpa [#allocation6], 1
    %s2299 = scalar_lea.sflag [#allocation6], 1
    %2300 = vsyncpa %s2299, 1

</llo_original>
